<compile_context>
chip_gen: v5e
topology: v5e:2x2
jax: 0.10.0
libtpu: 0.0.40
codegen_flags: <defaults>
</compile_context>

<pallas_src>
import functools
import numpy as np
import jax
import jax.numpy as jnp
from jax.experimental import pallas as pl
from jax.experimental.pallas import tpu as pltpu


def get_quantized_range(bitwidth: int):
    return -(1 << (bitwidth - 1)), (1 << (bitwidth - 1)) - 1


def _round_up(x, m):
    return ((x + m - 1) // m) * m


def _vmem_limit_bytes():
    # v5e/v6e: 128 MiB physical VMEM, v7x: 64 MiB.  Budget ~7/8, capped.
    try:
        cap = int(pltpu.get_tpu_info().vmem_capacity_bytes)
        return max(32 * 1024 * 1024, min(cap * 7 // 8, 96 * 1024 * 1024))
    except Exception:
        return 64 * 1024 * 1024


# ----------------------------------------------------------------------------
# Pallas kernel: fused im2col (tap packing) + one K-deep matmul + requant
# ----------------------------------------------------------------------------
def _qconv_kernel(x_ref, w_ref, b_ref, s_ref, o_ref, stage_ref, *,
                  taps, TOH, OWp, Cin_g, K_total, Kp, K_CHUNK, TCO,
                  output_zero_point, qmin, qmax):
    # x_ref : (1, 1, HS_total, Ws, Cin_g) int8   resident activation slab
    # w_ref : (1, Kp, TCO) int8                  weight tile (K = KH*KW*Cin_g)
    # b_ref : (1, 1, TCO) int32,  s_ref: (1, 1, TCO) float32
    # o_ref : (1, 1, TOH, OWp, TCO) int8         one output-row tile
    # stage_ref: (TOH*OWp, Kp) float32 VMEM scratch (im2col staging)
    t = pl.program_id(3)                         # OH-tile index (last axis)
    M = TOH * OWp
    row_base = t * TOH

    # Padded K columns are matched by zero weight columns, but the staging
    # scratch is uninitialized -> clear them so garbage (possibly NaN) * 0
    # cannot poison the accumulator.
    if Kp > K_total:
        stage_ref[:, pl.ds(K_total, Kp - K_total)] = jnp.zeros(
            (M, Kp - K_total), jnp.float32)

    # Build the (M, K) im2col tile: one copy per tap.  The kw shift is a
    # sublane-offset read folded into this staging copy; kh / stride-phase
    # shifts are plain row offsets on a non-layout dim.
    for tt, (r_off, c_off) in enumerate(taps):
        sub = x_ref[0, 0, pl.ds(row_base + r_off, TOH), pl.ds(c_off, OWp), :]
        sub = sub.astype(jnp.float32).reshape(M, Cin_g)
        stage_ref[:, pl.ds(tt * Cin_g, Cin_g)] = sub

    # One K-deep MXU matmul.  int8 values are exact in bf16 and each <=512
    # deep chunk sum stays < 2^24, so the f32 partials are exact integers;
    # accumulate across chunks in int32 (exact for any K).
    # TODO(synk): int8 MXU datapath on v5e/v6e for 2x peak.
    acc = jnp.zeros((M, TCO), jnp.int32)
    for k0 in range(0, Kp, K_CHUNK):
        kc = min(K_CHUNK, Kp - k0)
        part = jnp.dot(stage_ref[:, pl.ds(k0, kc)].astype(jnp.bfloat16),
                       w_ref[0, pl.ds(k0, kc), :].astype(jnp.bfloat16),
                       preferred_element_type=jnp.float32)
        acc = acc + part.astype(jnp.int32)

    # Fused requantization epilogue (module semantics: int32 acc + bias,
    # cast to f32, per-channel scale, + zero point, round, clamp, int8).
    acc = acc + b_ref[0]
    out = acc.astype(jnp.float32) * s_ref[0] + jnp.float32(output_zero_point)
    out = jnp.clip(jnp.round(out), qmin, qmax)
    out = out.reshape(TOH, OWp, TCO)
    o_ref[0, 0] = out.astype(jnp.int32).astype(jnp.int8)


# ----------------------------------------------------------------------------
# Full quantized_conv2d forward
# ----------------------------------------------------------------------------
def quantized_conv2d_pallas(x, weight, bias, feature_bitwidth, weight_bitwidth,
                            input_zero_point, output_zero_point, input_scale,
                            weight_scale, output_scale, stride, padding,
                            dilation, groups):
    """padding is (left, right, top, bottom), matching the PyTorch module."""
    assert len(padding) == 4
    assert x.dtype == jnp.int8 and weight.dtype == jnp.int8
    N, C, H, W = x.shape
    Cout, Cin_g, KH, KW = weight.shape
    G = groups
    assert C % G == 0 and Cout % G == 0 and Cin_g == C // G
    Co_g = Cout // G
    sh, sw = stride
    dh, dw = dilation
    p_left, p_right, p_top, p_bot = padding

    Hp = H + p_top + p_bot
    Wp = W + p_left + p_right
    OH = (Hp - (dh * (KH - 1) + 1)) // sh + 1
    OW = (Wp - (dw * (KW - 1) + 1)) // sw + 1
    assert OH >= 1 and OW >= 1

    qmin, qmax = get_quantized_range(feature_bitwidth)

    # ---- output tiling (M ~ 256+ rows per tile, 8-aligned) -------------------
    OWp = _round_up(OW, 8)
    OH8 = _round_up(OH, 8)
    TOH = 8
    while TOH * OWp < 256 and TOH * 2 <= OH8:
        TOH *= 2
    OHp = _round_up(OH, TOH)
    T = OHp // TOH
    M_TILE = TOH * OWp

    # ---- activation: pad + (stride-phase) space-to-depth, per-group NHWC ----
    Hs = OHp + ((KH - 1) * dh) // sh             # phase-plane height
    Ws = OWp + ((KW - 1) * dw) // sw             # phase-plane width
    Ht, Wt = sh * Hs, sw * Ws
    xp = jnp.pad(
        x,
        ((0, 0), (0, 0),
         (p_top, p_bot + max(0, Ht - Hp)),
         (p_left, p_right + max(0, Wt - Wp))),
        constant_values=np.int8(input_zero_point))
    xp = xp[:, :, :Ht, :Wt]
    xp = xp.reshape(N, G, Cin_g, Ht, Wt).transpose(0, 1, 3, 4, 2)  # N,G,H,W,C
    if sh == 1 and sw == 1:
        xs = xp                                   # stride-1 fast path
    else:
        xs = xp.reshape(N, G, Hs, sh, Ws, sw, Cin_g)
        xs = xs.transpose(0, 1, 3, 5, 2, 4, 6)    # (N, G, sh, sw, Hs, Ws, C)
    xs = xs.reshape(N, G, sh * sw * Hs, Ws, Cin_g)
    HS_total = sh * sw * Hs

    # tap (kh, kw) -> (row offset in the phase-stacked axis, col offset)
    taps = []
    for kh in range(KH):
        for kw in range(KW):
            pidx = ((kh * dh) % sh) * sw + (kw * dw) % sw
            taps.append((pidx * Hs + (kh * dh) // sh, (kw * dw) // sw))
    taps = tuple(taps)

    # ---- weight / bias / scale in matmul layout ------------------------------
    K_total = KH * KW * Cin_g
    Kp = _round_up(K_total, 128)
    Co_gp = _round_up(Co_g, 128)
    TCO = 256 if Co_gp % 256 == 0 else 128        # 128 is also v5e-native
    K_CHUNK = 512                                 # bf16/f32 exactness bound

    w2 = weight.reshape(G, Co_g, Cin_g, KH, KW)
    w2 = w2.transpose(0, 3, 4, 2, 1).reshape(G, K_total, Co_g)
    wt = jnp.zeros((G, Kp, Co_gp), jnp.int8).at[:, :K_total, :Co_g].set(w2)

    bias_all = bias if bias is not None else jnp.zeros((Cout,), jnp.int32)
    # Compute the combined per-channel scale on the host in f32 (same op
    # order as the reference; avoids XLA constant re-association).
    scale_all = (np.float32(input_scale)
                 * np.asarray(weight_scale, np.float32)
                 / np.float32(output_scale))
    bt = jnp.zeros((G, 1, Co_gp), jnp.int32).at[:, 0, :Co_g].set(
        jnp.asarray(bias_all).reshape(G, Co_g))
    st = jnp.zeros((G, 1, Co_gp), jnp.float32).at[:, 0, :Co_g].set(
        jnp.asarray(scale_all).reshape(G, Co_g))

    # ---- grid & specs ---------------------------------------------------------
    J = Co_gp // TCO
    w_block_bytes = Kp * TCO                      # int8
    a_block_bytes = HS_total * Ws * Cin_g         # int8
    weights_outer = (N - 1) * J * w_block_bytes > (J - 1) * N * a_block_bytes

    x_block = (1, 1, HS_total, Ws, Cin_g)
    w_block = (1, Kp, TCO)
    v_block = (1, 1, TCO)
    o_block = (1, 1, TOH, OWp, TCO)

    if weights_outer:                             # weights fetched once
        grid = (G, J, N, T)
        x_map = lambda g, j, n, t: (n, g, 0, 0, 0)
        w_map = lambda g, j, n, t: (g, 0, j)
        v_map = lambda g, j, n, t: (g, 0, j)
        o_map = lambda g, j, n, t: (n, g, t, 0, j)
    else:                                         # activations fetched once
        grid = (N, G, J, T)
        x_map = lambda n, g, j, t: (n, g, 0, 0, 0)
        w_map = lambda n, g, j, t: (g, 0, j)
        v_map = lambda n, g, j, t: (g, 0, j)
        o_map = lambda n, g, j, t: (n, g, t, 0, j)

    kernel = functools.partial(
        _qconv_kernel, taps=taps, TOH=TOH, OWp=OWp, Cin_g=Cin_g,
        K_total=K_total, Kp=Kp, K_CHUNK=K_CHUNK, TCO=TCO,
        output_zero_point=output_zero_point, qmin=qmin, qmax=qmax)

    out = pl.pallas_call(
        kernel,
        out_shape=jax.ShapeDtypeStruct((N, G, OHp, OWp, Co_gp), jnp.int8),
        grid=grid,
        in_specs=[
            pl.BlockSpec(x_block, x_map),
            pl.BlockSpec(w_block, w_map),
            pl.BlockSpec(v_block, v_map),
            pl.BlockSpec(v_block, v_map),
        ],
        out_specs=pl.BlockSpec(o_block, o_map),
        scratch_shapes=[pltpu.VMEM((M_TILE, Kp), jnp.float32)],
        compiler_params=pltpu.CompilerParams(
            dimension_semantics=("parallel",) * 4,
            vmem_limit_bytes=_vmem_limit_bytes()),
    )(xs, wt, bt, st)

    # strip padding, (N, G, OH, OW, Co_g) -> NCHW (fuses into one XLA pass)
    out = out[:, :, :OH, :OW, :Co_g]
    out = out.transpose(0, 1, 4, 2, 3).reshape(N, Cout, OH, OW)
    return out


class QuantizedConv2dPallas:
    """Mirror of the PyTorch QuantizedConv2d module (forward only)."""

    def __init__(self, weight, bias, input_zero_point, output_zero_point,
                 input_scale, weight_scale, output_scale, stride, padding,
                 dilation, groups, feature_bitwidth=8, weight_bitwidth=8):
        self.weight = weight
        self.bias = bias
        self.input_zero_point = input_zero_point
        self.output_zero_point = output_zero_point
        self.input_scale = input_scale
        self.weight_scale = weight_scale
        self.output_scale = output_scale
        self.stride = stride
        # PyTorch module converts (ph, pw) -> F.pad order (left,right,top,bottom)
        self.padding = (padding[1], padding[1], padding[0], padding[0])
        self.dilation = dilation
        self.groups = groups
        self.feature_bitwidth = feature_bitwidth
        self.weight_bitwidth = weight_bitwidth

    def __call__(self, x):
        return quantized_conv2d_pallas(
            x, self.weight, self.bias, self.feature_bitwidth,
            self.weight_bitwidth, self.input_zero_point,
            self.output_zero_point, self.input_scale, self.weight_scale,
            self.output_scale, self.stride, self.padding, self.dilation,
            self.groups)


# ----------------------------------------------------------------------------
# numpy reference (vectorized direct int conv, matches the PyTorch CPU path)
# ----------------------------------------------------------------------------
def _ref_quantized_conv2d(x, weight, bias, feature_bitwidth, input_zero_point,
                          output_zero_point, input_scale, weight_scale,
                          output_scale, stride, padding, dilation, groups):
    x = np.asarray(x).astype(np.int64)
    w = np.asarray(weight).astype(np.int64)
    b = (np.zeros(w.shape[0], np.int64) if bias is None
         else np.asarray(bias).astype(np.int64))
    p_left, p_right, p_top, p_bot = padding
    xp = np.pad(x, ((0, 0), (0, 0), (p_top, p_bot), (p_left, p_right)),
                constant_values=input_zero_point)
    N, C, Hp, Wp = xp.shape
    Cout, Cin_g, KH, KW = w.shape
    sh, sw = stride
    dh, dw = dilation
    OH = (Hp - (dh * (KH - 1) + 1)) // sh + 1
    OW = (Wp - (dw * (KW - 1) + 1)) // sw + 1
    G = groups
    Co_g = Cout // G
    out = np.zeros((N, Cout, OH, OW), np.int64)
    for g in range(G):
        xg = xp[:, g * Cin_g:(g + 1) * Cin_g]
        wg = w[g * Co_g:(g + 1) * Co_g]
        for kh in range(KH):
            for kw in range(KW):
                patch = xg[:, :,
                           kh * dh:kh * dh + OH * sh:sh,
                           kw * dw:kw * dw + OW * sw:sw]
                out[:, g * Co_g:(g + 1) * Co_g] += np.einsum(
                    'nchw,oc->nohw', patch, wg[:, :, kh, kw])
    out += b.reshape(1, -1, 1, 1)
    qmin, qmax = get_quantized_range(feature_bitwidth)
    scale = (np.float32(input_scale) * np.asarray(weight_scale, np.float32)
             / np.float32(output_scale)).reshape(1, -1, 1, 1)
    outf = out.astype(np.float32) * scale + np.float32(output_zero_point)
    return np.clip(np.round(outf), qmin, qmax).astype(np.int8)


if __name__ == "__main__":
    key = jax.random.PRNGKey(0)
    k_x, k_w, k_b, k_s = jax.random.split(key, 4)

    def run_case(N, Cin, H, W, Cout, KH, KW, stride, padding_hw, dilation, groups):
        x = jax.random.randint(k_x, (N, Cin, H, W), -128, 128,
                               jnp.int32).astype(jnp.int8)
        weight = jax.random.randint(k_w, (Cout, Cin // groups, KH, KW),
                                    -128, 128, jnp.int32).astype(jnp.int8)
        bias = jax.random.randint(k_b, (Cout,), -512, 512, jnp.int32)
        weight_scale = jax.random.uniform(k_s, (Cout,), jnp.float32, 0.01, 0.05)
        input_zero_point, output_zero_point = 3, -2
        input_scale, output_scale = 0.05, 0.1

        module = QuantizedConv2dPallas(
            weight, bias, input_zero_point, output_zero_point, input_scale,
            weight_scale, output_scale, stride, padding_hw, dilation, groups,
            feature_bitwidth=8, weight_bitwidth=8)

        out = jax.block_until_ready(module(x))
        ref = _ref_quantized_conv2d(
            x, weight, bias, 8, input_zero_point, output_zero_point,
            input_scale, np.asarray(weight_scale), output_scale, stride,
            module.padding, dilation, groups)

        got = np.asarray(out).astype(np.int32)
        exp = ref.astype(np.int32)
        assert got.shape == exp.shape, (got.shape, exp.shape)
        diff = np.abs(got - exp)
        # The integer conv + bias is bit-exact; allow at most a rare 1-LSB
        # requant rounding-boundary discrepancy from float op ordering.
        assert diff.max() <= 1 and (diff != 0).mean() <= 1e-3, (
            "mismatch", int(diff.max()), float((diff != 0).mean()))

    # stride-1, groups=1 (common path: no phase decomposition)
    run_case(2, 4, 16, 16, 8, 3, 3, (1, 1), (1, 1), (1, 1), 1)
    # strided + grouped conv (phase-decomposed path, groups grid axis)
    run_case(2, 4, 16, 16, 8, 3, 3, (2, 2), (1, 1), (1, 1), 2)

    print("KERNEL_OK")
</pallas_src>

<mosaic_0001>
module attributes {stable_mosaic.version = 11 : i64} {
  func.func @_qconv_kernel(%arg0: i32, %arg1: i32, %arg2: i32, %arg3: i32, %arg4: memref<1x1x18x18x4xi8, #tpu.memory_space<vmem>>, %arg5: memref<1x128x128xi8, #tpu.memory_space<vmem>>, %arg6: memref<1x1x128xi32, #tpu.memory_space<vmem>>, %arg7: memref<1x1x128xf32, #tpu.memory_space<vmem>>, %arg8: memref<1x1x16x16x128xi8, #tpu.memory_space<vmem>>, %arg9: memref<256x128xf32, #tpu.memory_space<vmem>>) attributes {dimension_semantics = [#tpu.dimension_semantics<parallel>, #tpu.dimension_semantics<parallel>, #tpu.dimension_semantics<parallel>, #tpu.dimension_semantics<parallel>], iteration_bounds = array<i64: 1, 1, 2, 1>, scalar_prefetch = 0 : i64, scratch_operands = 1 : i64, tpu.core_type = #tpu.core_type<tc>, window_params = [{transform_indices = @transform_0, window_bounds = array<i64: 1, 1, 18, 18, 4>}, {transform_indices = @transform_1, window_bounds = array<i64: 1, 128, 128>}, {transform_indices = @transform_2, window_bounds = array<i64: 1, 1, 128>}, {transform_indices = @transform_3, window_bounds = array<i64: 1, 1, 128>}, {transform_indices = @transform_4, window_bounds = array<i64: 1, 1, 16, 16, 128>}]} {
    %c16_i32 = arith.constant 16 : i32
    %0 = arith.muli %arg3, %c16_i32 : i32
    %cst = arith.constant 0.000000e+00 : f32
    %1 = vector.broadcast %cst : f32 to vector<256x92xf32>
    %c0 = arith.constant 0 : index
    %c36 = arith.constant 36 : index
    %2 = vector.load %arg9[%c0, %c36] : memref<256x128xf32, #tpu.memory_space<vmem>>, vector<256x92xf32>
    tpu.vector_store %arg9[%c0, %c36], %1 {strides = array<i32>} : memref<256x128xf32, #tpu.memory_space<vmem>>, vector<256x92xf32>,
    %c0_i32 = arith.constant 0 : i32
    %3 = arith.addi %0, %c0_i32 : i32
    %c0_0 = arith.constant 0 : index
    %c0_1 = arith.constant 0 : index
    %4 = arith.index_cast %3 : i32 to index
    %c0_2 = arith.constant 0 : index
    %c0_3 = arith.constant 0 : index
    %5 = vector.load %arg4[%c0_0, %c0_1, %4, %c0_2, %c0_3] : memref<1x1x18x18x4xi8, #tpu.memory_space<vmem>>, vector<1x1x16x16x4xi8>
    %6 = vector.shape_cast %5 : vector<1x1x16x16x4xi8> to vector<16x16x4xi8>
    %7 = arith.sitofp %6 : vector<16x16x4xi8> to vector<16x16x4xf32>
    %8 = vector.shape_cast %7 : vector<16x16x4xf32> to vector<256x4xf32>
    %c0_4 = arith.constant 0 : index
    %c0_5 = arith.constant 0 : index
    %9 = vector.load %arg9[%c0_4, %c0_5] : memref<256x128xf32, #tpu.memory_space<vmem>>, vector<256x4xf32>
    tpu.vector_store %arg9[%c0_4, %c0_5], %8 {strides = array<i32>} : memref<256x128xf32, #tpu.memory_space<vmem>>, vector<256x4xf32>,
    %c0_i32_6 = arith.constant 0 : i32
    %10 = arith.addi %0, %c0_i32_6 : i32
    %c0_7 = arith.constant 0 : index
    %c0_8 = arith.constant 0 : index
    %11 = arith.index_cast %10 : i32 to index
    %c1 = arith.constant 1 : index
    %c0_9 = arith.constant 0 : index
    %12 = vector.load %arg4[%c0_7, %c0_8, %11, %c1, %c0_9] : memref<1x1x18x18x4xi8, #tpu.memory_space<vmem>>, vector<1x1x16x16x4xi8>
    %13 = vector.shape_cast %12 : vector<1x1x16x16x4xi8> to vector<16x16x4xi8>
    %14 = arith.sitofp %13 : vector<16x16x4xi8> to vector<16x16x4xf32>
    %15 = vector.shape_cast %14 : vector<16x16x4xf32> to vector<256x4xf32>
    %c0_10 = arith.constant 0 : index
    %c4 = arith.constant 4 : index
    %16 = vector.load %arg9[%c0_10, %c4] : memref<256x128xf32, #tpu.memory_space<vmem>>, vector<256x4xf32>
    tpu.vector_store %arg9[%c0_10, %c4], %15 {strides = array<i32>} : memref<256x128xf32, #tpu.memory_space<vmem>>, vector<256x4xf32>,
    %c0_i32_11 = arith.constant 0 : i32
    %17 = arith.addi %0, %c0_i32_11 : i32
    %c0_12 = arith.constant 0 : index
    %c0_13 = arith.constant 0 : index
    %18 = arith.index_cast %17 : i32 to index
    %c2 = arith.constant 2 : index
    %c0_14 = arith.constant 0 : index
    %19 = vector.load %arg4[%c0_12, %c0_13, %18, %c2, %c0_14] : memref<1x1x18x18x4xi8, #tpu.memory_space<vmem>>, vector<1x1x16x16x4xi8>
    %20 = vector.shape_cast %19 : vector<1x1x16x16x4xi8> to vector<16x16x4xi8>
    %21 = arith.sitofp %20 : vector<16x16x4xi8> to vector<16x16x4xf32>
    %22 = vector.shape_cast %21 : vector<16x16x4xf32> to vector<256x4xf32>
    %c0_15 = arith.constant 0 : index
    %c8 = arith.constant 8 : index
    %23 = vector.load %arg9[%c0_15, %c8] : memref<256x128xf32, #tpu.memory_space<vmem>>, vector<256x4xf32>
    tpu.vector_store %arg9[%c0_15, %c8], %22 {strides = array<i32>} : memref<256x128xf32, #tpu.memory_space<vmem>>, vector<256x4xf32>,
    %c1_i32 = arith.constant 1 : i32
    %24 = arith.addi %0, %c1_i32 : i32
    %c0_16 = arith.constant 0 : index
    %c0_17 = arith.constant 0 : index
    %25 = arith.index_cast %24 : i32 to index
    %c0_18 = arith.constant 0 : index
    %c0_19 = arith.constant 0 : index
    %26 = vector.load %arg4[%c0_16, %c0_17, %25, %c0_18, %c0_19] : memref<1x1x18x18x4xi8, #tpu.memory_space<vmem>>, vector<1x1x16x16x4xi8>
    %27 = vector.shape_cast %26 : vector<1x1x16x16x4xi8> to vector<16x16x4xi8>
    %28 = arith.sitofp %27 : vector<16x16x4xi8> to vector<16x16x4xf32>
    %29 = vector.shape_cast %28 : vector<16x16x4xf32> to vector<256x4xf32>
    %c0_20 = arith.constant 0 : index
    %c12 = arith.constant 12 : index
    %30 = vector.load %arg9[%c0_20, %c12] : memref<256x128xf32, #tpu.memory_space<vmem>>, vector<256x4xf32>
    tpu.vector_store %arg9[%c0_20, %c12], %29 {strides = array<i32>} : memref<256x128xf32, #tpu.memory_space<vmem>>, vector<256x4xf32>,
    %c1_i32_21 = arith.constant 1 : i32
    %31 = arith.addi %0, %c1_i32_21 : i32
    %c0_22 = arith.constant 0 : index
    %c0_23 = arith.constant 0 : index
    %32 = arith.index_cast %31 : i32 to index
    %c1_24 = arith.constant 1 : index
    %c0_25 = arith.constant 0 : index
    %33 = vector.load %arg4[%c0_22, %c0_23, %32, %c1_24, %c0_25] : memref<1x1x18x18x4xi8, #tpu.memory_space<vmem>>, vector<1x1x16x16x4xi8>
    %34 = vector.shape_cast %33 : vector<1x1x16x16x4xi8> to vector<16x16x4xi8>
    %35 = arith.sitofp %34 : vector<16x16x4xi8> to vector<16x16x4xf32>
    %36 = vector.shape_cast %35 : vector<16x16x4xf32> to vector<256x4xf32>
    %c0_26 = arith.constant 0 : index
    %c16 = arith.constant 16 : index
    %37 = vector.load %arg9[%c0_26, %c16] : memref<256x128xf32, #tpu.memory_space<vmem>>, vector<256x4xf32>
    tpu.vector_store %arg9[%c0_26, %c16], %36 {strides = array<i32>} : memref<256x128xf32, #tpu.memory_space<vmem>>, vector<256x4xf32>,
    %c1_i32_27 = arith.constant 1 : i32
    %38 = arith.addi %0, %c1_i32_27 : i32
    %c0_28 = arith.constant 0 : index
    %c0_29 = arith.constant 0 : index
    %39 = arith.index_cast %38 : i32 to index
    %c2_30 = arith.constant 2 : index
    %c0_31 = arith.constant 0 : index
    %40 = vector.load %arg4[%c0_28, %c0_29, %39, %c2_30, %c0_31] : memref<1x1x18x18x4xi8, #tpu.memory_space<vmem>>, vector<1x1x16x16x4xi8>
    %41 = vector.shape_cast %40 : vector<1x1x16x16x4xi8> to vector<16x16x4xi8>
    %42 = arith.sitofp %41 : vector<16x16x4xi8> to vector<16x16x4xf32>
    %43 = vector.shape_cast %42 : vector<16x16x4xf32> to vector<256x4xf32>
    %c0_32 = arith.constant 0 : index
    %c20 = arith.constant 20 : index
    %44 = vector.load %arg9[%c0_32, %c20] : memref<256x128xf32, #tpu.memory_space<vmem>>, vector<256x4xf32>
    tpu.vector_store %arg9[%c0_32, %c20], %43 {strides = array<i32>} : memref<256x128xf32, #tpu.memory_space<vmem>>, vector<256x4xf32>,
    %c2_i32 = arith.constant 2 : i32
    %45 = arith.addi %0, %c2_i32 : i32
    %c0_33 = arith.constant 0 : index
    %c0_34 = arith.constant 0 : index
    %46 = arith.index_cast %45 : i32 to index
    %c0_35 = arith.constant 0 : index
    %c0_36 = arith.constant 0 : index
    %47 = vector.load %arg4[%c0_33, %c0_34, %46, %c0_35, %c0_36] : memref<1x1x18x18x4xi8, #tpu.memory_space<vmem>>, vector<1x1x16x16x4xi8>
    %48 = vector.shape_cast %47 : vector<1x1x16x16x4xi8> to vector<16x16x4xi8>
    %49 = arith.sitofp %48 : vector<16x16x4xi8> to vector<16x16x4xf32>
    %50 = vector.shape_cast %49 : vector<16x16x4xf32> to vector<256x4xf32>
    %c0_37 = arith.constant 0 : index
    %c24 = arith.constant 24 : index
    %51 = vector.load %arg9[%c0_37, %c24] : memref<256x128xf32, #tpu.memory_space<vmem>>, vector<256x4xf32>
    tpu.vector_store %arg9[%c0_37, %c24], %50 {strides = array<i32>} : memref<256x128xf32, #tpu.memory_space<vmem>>, vector<256x4xf32>,
    %c2_i32_38 = arith.constant 2 : i32
    %52 = arith.addi %0, %c2_i32_38 : i32
    %c0_39 = arith.constant 0 : index
    %c0_40 = arith.constant 0 : index
    %53 = arith.index_cast %52 : i32 to index
    %c1_41 = arith.constant 1 : index
    %c0_42 = arith.constant 0 : index
    %54 = vector.load %arg4[%c0_39, %c0_40, %53, %c1_41, %c0_42] : memref<1x1x18x18x4xi8, #tpu.memory_space<vmem>>, vector<1x1x16x16x4xi8>
    %55 = vector.shape_cast %54 : vector<1x1x16x16x4xi8> to vector<16x16x4xi8>
    %56 = arith.sitofp %55 : vector<16x16x4xi8> to vector<16x16x4xf32>
    %57 = vector.shape_cast %56 : vector<16x16x4xf32> to vector<256x4xf32>
    %c0_43 = arith.constant 0 : index
    %c28 = arith.constant 28 : index
    %58 = vector.load %arg9[%c0_43, %c28] : memref<256x128xf32, #tpu.memory_space<vmem>>, vector<256x4xf32>
    tpu.vector_store %arg9[%c0_43, %c28], %57 {strides = array<i32>} : memref<256x128xf32, #tpu.memory_space<vmem>>, vector<256x4xf32>,
    %c2_i32_44 = arith.constant 2 : i32
    %59 = arith.addi %0, %c2_i32_44 : i32
    %c0_45 = arith.constant 0 : index
    %c0_46 = arith.constant 0 : index
    %60 = arith.index_cast %59 : i32 to index
    %c2_47 = arith.constant 2 : index
    %c0_48 = arith.constant 0 : index
    %61 = vector.load %arg4[%c0_45, %c0_46, %60, %c2_47, %c0_48] : memref<1x1x18x18x4xi8, #tpu.memory_space<vmem>>, vector<1x1x16x16x4xi8>
    %62 = vector.shape_cast %61 : vector<1x1x16x16x4xi8> to vector<16x16x4xi8>
    %63 = arith.sitofp %62 : vector<16x16x4xi8> to vector<16x16x4xf32>
    %64 = vector.shape_cast %63 : vector<16x16x4xf32> to vector<256x4xf32>
    %c0_49 = arith.constant 0 : index
    %c32 = arith.constant 32 : index
    %65 = vector.load %arg9[%c0_49, %c32] : memref<256x128xf32, #tpu.memory_space<vmem>>, vector<256x4xf32>
    tpu.vector_store %arg9[%c0_49, %c32], %64 {strides = array<i32>} : memref<256x128xf32, #tpu.memory_space<vmem>>, vector<256x4xf32>,
    %c0_i32_50 = arith.constant 0 : i32
    %66 = vector.broadcast %c0_i32_50 : i32 to vector<256x128xi32>
    %c0_51 = arith.constant 0 : index
    %c0_52 = arith.constant 0 : index
    %67 = vector.load %arg9[%c0_51, %c0_52] : memref<256x128xf32, #tpu.memory_space<vmem>>, vector<256x128xf32>
    %68 = arith.truncf %67 : vector<256x128xf32> to vector<256x128xbf16>
    %c0_53 = arith.constant 0 : index
    %c0_54 = arith.constant 0 : index
    %c0_55 = arith.constant 0 : index
    %69 = vector.load %arg5[%c0_53, %c0_54, %c0_55] : memref<1x128x128xi8, #tpu.memory_space<vmem>>, vector<1x128x128xi8>
    %70 = vector.shape_cast %69 : vector<1x128x128xi8> to vector<128x128xi8>
    %71 = arith.sitofp %70 : vector<128x128xi8> to vector<128x128xbf16>
    %cst_56 = arith.constant dense<0.000000e+00> : vector<256x128xf32>
    %72 = tpu.matmul %68, %71, %cst_56 {dimension_numbers = #tpu.dot_dimension_numbers<[1], [0], [0], [1], [0, 0, 1, 1], [], []>} : vector<256x128xbf16>, vector<128x128xbf16>, vector<256x128xf32> -> vector<256x128xf32>
    %73 = arith.fptosi %72 : vector<256x128xf32> to vector<256x128xi32>
    %74 = arith.addi %66, %73 : vector<256x128xi32>
    %c0_57 = arith.constant 0 : index
    %c0_58 = arith.constant 0 : index
    %c0_59 = arith.constant 0 : index
    %75 = vector.load %arg6[%c0_57, %c0_58, %c0_59] : memref<1x1x128xi32, #tpu.memory_space<vmem>>, vector<1x1x128xi32>
    %76 = vector.shape_cast %75 : vector<1x1x128xi32> to vector<1x128xi32>
    %77 = vector.broadcast %76 : vector<1x128xi32> to vector<256x128xi32>
    %78 = arith.addi %74, %77 : vector<256x128xi32>
    %79 = arith.sitofp %78 : vector<256x128xi32> to vector<256x128xf32>
    %c0_60 = arith.constant 0 : index
    %c0_61 = arith.constant 0 : index
    %c0_62 = arith.constant 0 : index
    %80 = vector.load %arg7[%c0_60, %c0_61, %c0_62] : memref<1x1x128xf32, #tpu.memory_space<vmem>>, vector<1x1x128xf32>
    %81 = vector.shape_cast %80 : vector<1x1x128xf32> to vector<1x128xf32>
    %82 = vector.broadcast %81 : vector<1x128xf32> to vector<256x128xf32>
    %83 = arith.mulf %79, %82 : vector<256x128xf32>
    %cst_63 = arith.constant -2.000000e+00 : f32
    %84 = vector.broadcast %cst_63 : f32 to vector<256x128xf32>
    %85 = arith.addf %83, %84 : vector<256x128xf32>
    %86 = math.roundeven %85 : vector<256x128xf32>
    %c-128_i32 = arith.constant -128 : i32
    %c127_i32 = arith.constant 127 : i32
    %87 = arith.sitofp %c-128_i32 : i32 to f32
    %88 = vector.broadcast %87 : f32 to vector<256x128xf32>
    %89 = arith.maximumf %88, %86 : vector<256x128xf32>
    %90 = arith.sitofp %c127_i32 : i32 to f32
    %91 = vector.broadcast %90 : f32 to vector<256x128xf32>
    %92 = arith.minimumf %91, %89 : vector<256x128xf32>
    %93 = vector.shape_cast %92 : vector<256x128xf32> to vector<16x16x128xf32>
    %94 = arith.fptosi %93 : vector<16x16x128xf32> to vector<16x16x128xi32>
    %95 = arith.trunci %94 : vector<16x16x128xi32> to vector<16x16x128xi8>
    %c0_64 = arith.constant 0 : index
    %c0_65 = arith.constant 0 : index
    %c0_66 = arith.constant 0 : index
    %c0_67 = arith.constant 0 : index
    %c0_68 = arith.constant 0 : index
    %96 = vector.load %arg8[%c0_64, %c0_65, %c0_66, %c0_67, %c0_68] : memref<1x1x16x16x128xi8, #tpu.memory_space<vmem>>, vector<1x1x16x16x128xi8>
    %97 = vector.shape_cast %96 : vector<1x1x16x16x128xi8> to vector<16x16x128xi8>
    %98 = vector.shape_cast %95 : vector<16x16x128xi8> to vector<1x1x16x16x128xi8>
    tpu.vector_store %arg8[%c0_64, %c0_65, %c0_66, %c0_67, %c0_68], %98 {strides = array<i32>} : memref<1x1x16x16x128xi8, #tpu.memory_space<vmem>>, vector<1x1x16x16x128xi8>,
    return
  }
  func.func @transform_0(%arg0: i32, %arg1: i32, %arg2: i32, %arg3: i32) -> (i32, i32, i32, i32, i32) {
    %c0_i32 = arith.constant 0 : i32
    %c0_i32_0 = arith.constant 0 : i32
    %c0_i32_1 = arith.constant 0 : i32
    %c0_i32_2 = arith.constant 0 : i32
    return %arg2, %arg0, %c0_i32, %c0_i32_0, %c0_i32_1 : i32, i32, i32, i32, i32
  }
  func.func @transform_1(%arg0: i32, %arg1: i32, %arg2: i32, %arg3: i32) -> (i32, i32, i32) {
    %c0_i32 = arith.constant 0 : i32
    %c0_i32_0 = arith.constant 0 : i32
    return %arg0, %c0_i32, %arg1 : i32, i32, i32
  }
  func.func @transform_2(%arg0: i32, %arg1: i32, %arg2: i32, %arg3: i32) -> (i32, i32, i32) {
    %c0_i32 = arith.constant 0 : i32
    %c0_i32_0 = arith.constant 0 : i32
    return %arg0, %c0_i32, %arg1 : i32, i32, i32
  }
  func.func @transform_3(%arg0: i32, %arg1: i32, %arg2: i32, %arg3: i32) -> (i32, i32, i32) {
    %c0_i32 = arith.constant 0 : i32
    %c0_i32_0 = arith.constant 0 : i32
    return %arg0, %c0_i32, %arg1 : i32, i32, i32
  }
  func.func @transform_4(%arg0: i32, %arg1: i32, %arg2: i32, %arg3: i32) -> (i32, i32, i32, i32, i32) {
    %c0_i32 = arith.constant 0 : i32
    %c0_i32_0 = arith.constant 0 : i32
    return %arg2, %arg0, %arg3, %c0_i32, %arg1 : i32, i32, i32, i32, i32
  }
}

</mosaic_0001>

<llo_original>
// kernel: tpu_custom_call.1
$region0: #{tpu_custom_call.1}
  #allocation0 [shape = 'u32[]', space=smem, size = 0x4, offset = 0x4, fixed_abs, tag = 'smem constant byte address 0x4 - core index']
  #allocation1 [shape = 'u32[72,128]{1,0:T(1,128)}', space=vmem, size = 0x9000, scoped, tag = 'internal scratch']
  #allocation2 [shape = 'f32[256,128]{1,0:T(8,128)}', space=vmem, size = 0x20000, scoped, tag = 'scratch operand']
  %s0 = inlined_call_operand.vmem [shape: s8[2,1,18,18,4], index: 0, kind: input, shape index: {}]
  %s1 = inlined_call_operand.vmem [shape: s8[1,128,128], index: 1, kind: input, shape index: {}]
  %s2 = inlined_call_operand.vmem [shape: s32[1,1,128], index: 2, kind: input, shape index: {}]
  %s3 = inlined_call_operand.vmem [shape: f32[1,1,128], index: 3, kind: input, shape index: {}]
  %s4 = inlined_call_operand.hbm [shape: s8[2,1,16,16,128], index: 4, kind: output, shape index: {}]
  %s5 = sld [smem:[#allocation0]]
  $region49: #{tpu_custom_call.1} parent=0
    _
  %s7 = ssub.s32 1, %s5
  %s8 = scalar_select 0, %s7, %s5
  $region1: #{tpu_custom_call.1} parent=0
    #allocation3 [shape = 'u8[65536]{0}', space=vmem, size = 0x10000, scoped, tag = 'output window, operand 0']
    #allocation4 [shape = 's32[2]{0}', space=sflag, size = 0x8, scoped, tag = 'scoped memory for tpu_custom_call.1']
    %9 = vsyncpa [#allocation4], 0
    %s10 = scalar_lea.sflag [#allocation4], 1
    %11 = vsyncpa %s10, 0
    loop: start=0, step=1, limit=4
    $region2: #{tpu_custom_call.1} parent=1 // loop_pre_header
      _
    $region3: #{tpu_custom_call.1} parent=1 // loop_header
      %s13 = sphi 0, %s17
      %p14 = scmp.ge.s32.totalorder %s13, 4
      %s20 = sphi 0, %s46
      %s21 = sphi 0, %s42
      %s22 = sphi 0, %s38
      %s23 = sphi 0, %s34
      %s24 = sphi 0, %s20
      %s25 = sphi 0, %s21
      %s26 = sphi 0, %s22
      %s27 = sphi 0, %s23
      %s28 = sphi 0, %s24
      %s29 = sphi 0, %s25
      %s30 = sphi 0, %s26
      %s31 = sphi 0, %s27
      %s51 = sphi 0, %s53
      %s54 = sphi 0, %s51
      %s55 = sphi 0, %s54
      %s71 = sphi 0, %s55
      %s79 = sphi 0, %s81
      %s82 = sphi 0, %s79
      %s83 = sphi 0, %s82
      %s99 = sphi 0, %s83
      %s107 = sphi 0, %s109
      %s110 = sphi 0, %s107
      %s111 = sphi 0, %s110
      %s127 = sphi 0, %s111
      %s135 = sphi 0, %s137
      %s138 = sphi 0, %s135
      %s139 = sphi 0, %s138
      %s155 = sphi 0, %s139
      %s167 = sphi 0, %s169
      %s170 = sphi 0, %s167
      %s171 = sphi 0, %s170
      %s187 = sphi 0, %s171
    $region4: #{tpu_custom_call.1} parent=1 // loop_header_branch
      %16 = sbr.rel (%p14) target = $region8
    $region5: #{tpu_custom_call.1} parent=1 // loop_body
      %s18 = ssub.s32 %s13, 1
      %s19 = ssub.s32 %s13, 2
      %s32 = sadd.s32 1, %s23
      %p33 = scmp.ge.s32.totalorder %s32, 1
      %s34 = scalar_select %p33, 0, %s32
      %s35 = sadd.s32 1, %s22
      %s36 = scalar_select %p33, %s35, %s22
      %p37 = scmp.ge.s32.totalorder %s36, 2
      %s38 = scalar_select %p37, 0, %s36
      %s39 = sadd.s32 1, %s21
      %s40 = scalar_select %p37, %s39, %s21
      %p41 = scmp.ge.s32.totalorder %s40, 1
      %s42 = scalar_select %p41, 0, %s40
      %s43 = sadd.s32 1, %s20
      %s44 = scalar_select %p41, %s43, %s20
      %p45 = scmp.ge.s32.totalorder %s44, 1
      %s46 = scalar_select %p45, 0, %s44
      %s47 = ssub.s32 %s22, %s38
      %s48 = ssub.s32 %s20, %s46
      %s49 = sor.u32 %s47, %s48
      %p50 = scmp.eq.s32.totalorder %s49, 0
      %s52 = sadd.s32 %s51, 1
      %s53 = scalar_select %p50, %s51, %s52
      %p56 = pneg %p50
      %p57 = scmp.eq.s32.totalorder %s13, 1
      %p58 = por %p56, %p57
      %p59 = scmp.ne.s32.totalorder %s51, %s54
      %p60 = scmp.eq.s32.totalorder %s13, 0
      %p61 = por %p59, %p60
      %p62 = scmp.ne.s32.totalorder %s51, %s54
      %p63 = scmp.eq.s32.totalorder %s18, 1
      %p64 = por %p62, %p63
      %p65 = scmp.ne.s32.totalorder %s54, %s55
      %p66 = scmp.eq.s32.totalorder %s18, 0
      %p67 = por %p65, %p66
      %p68 = scmp.ne.s32.totalorder %s54, %s55
      %p69 = scmp.eq.s32.totalorder %s19, 1
      %p70 = por %p68, %p69
      %p72 = scmp.ne.s32.totalorder %s55, %s71
      %p73 = scmp.eq.s32.totalorder %s19, 0
      %p74 = por %p72, %p73
      %s75 = ssub.s32 %s20, %s46
      %s76 = ssub.s32 %s21, %s42
      %s77 = sor.u32 %s75, %s76
      %p78 = scmp.eq.s32.totalorder %s77, 0
      %s80 = sadd.s32 %s79, 1
      %s81 = scalar_select %p78, %s79, %s80
      %p84 = pneg %p78
      %p85 = scmp.eq.s32.totalorder %s13, 1
      %p86 = por %p84, %p85
      %p87 = scmp.ne.s32.totalorder %s79, %s82
      %p88 = scmp.eq.s32.totalorder %s13, 0
      %p89 = por %p87, %p88
      %p90 = scmp.ne.s32.totalorder %s79, %s82
      %p91 = scmp.eq.s32.totalorder %s18, 1
      %p92 = por %p90, %p91
      %p93 = scmp.ne.s32.totalorder %s82, %s83
      %p94 = scmp.eq.s32.totalorder %s18, 0
      %p95 = por %p93, %p94
      %p96 = scmp.ne.s32.totalorder %s82, %s83
      %p97 = scmp.eq.s32.totalorder %s19, 1
      %p98 = por %p96, %p97
      %p100 = scmp.ne.s32.totalorder %s83, %s99
      %p101 = scmp.eq.s32.totalorder %s19, 0
      %p102 = por %p100, %p101
      %s103 = ssub.s32 %s20, %s46
      %s104 = ssub.s32 %s21, %s42
      %s105 = sor.u32 %s103, %s104
      %p106 = scmp.eq.s32.totalorder %s105, 0
      %s108 = sadd.s32 %s107, 1
      %s109 = scalar_select %p106, %s107, %s108
      %p112 = pneg %p106
      %p113 = scmp.eq.s32.totalorder %s13, 1
      %p114 = por %p112, %p113
      %p115 = scmp.ne.s32.totalorder %s107, %s110
      %p116 = scmp.eq.s32.totalorder %s13, 0
      %p117 = por %p115, %p116
      %p118 = scmp.ne.s32.totalorder %s107, %s110
      %p119 = scmp.eq.s32.totalorder %s18, 1
      %p120 = por %p118, %p119
      %p121 = scmp.ne.s32.totalorder %s110, %s111
      %p122 = scmp.eq.s32.totalorder %s18, 0
      %p123 = por %p121, %p122
      %p124 = scmp.ne.s32.totalorder %s110, %s111
      %p125 = scmp.eq.s32.totalorder %s19, 1
      %p126 = por %p124, %p125
      %p128 = scmp.ne.s32.totalorder %s111, %s127
      %p129 = scmp.eq.s32.totalorder %s19, 0
      %p130 = por %p128, %p129
      %s131 = ssub.s32 %s20, %s46
      %s132 = ssub.s32 %s21, %s42
      %s133 = sor.u32 %s131, %s132
      %p134 = scmp.eq.s32.totalorder %s133, 0
      %s136 = sadd.s32 %s135, 1
      %s137 = scalar_select %p134, %s135, %s136
      %p140 = pneg %p134
      %p141 = scmp.eq.s32.totalorder %s13, 1
      %p142 = por %p140, %p141
      %p143 = scmp.ne.s32.totalorder %s135, %s138
      %p144 = scmp.eq.s32.totalorder %s13, 0
      %p145 = por %p143, %p144
      %p146 = scmp.ne.s32.totalorder %s135, %s138
      %p147 = scmp.eq.s32.totalorder %s18, 1
      %p148 = por %p146, %p147
      %p149 = scmp.ne.s32.totalorder %s138, %s139
      %p150 = scmp.eq.s32.totalorder %s18, 0
      %p151 = por %p149, %p150
      %p152 = scmp.ne.s32.totalorder %s138, %s139
      %p153 = scmp.eq.s32.totalorder %s19, 1
      %p154 = por %p152, %p153
      %p156 = scmp.ne.s32.totalorder %s139, %s155
      %p157 = scmp.eq.s32.totalorder %s19, 0
      %p158 = por %p156, %p157
      %s159 = ssub.s32 %s22, %s38
      %s160 = ssub.s32 %s20, %s46
      %s161 = sor.u32 %s159, %s160
      %s162 = ssub.s32 %s23, %s34
      %s163 = sor.u32 %s161, %s162
      %s164 = ssub.s32 %s21, %s42
      %s165 = sor.u32 %s163, %s164
      %p166 = scmp.eq.s32.totalorder %s165, 0
      %s168 = sadd.s32 %s167, 1
      %s169 = scalar_select %p166, %s167, %s168
      %p172 = pneg %p166
      %p173 = scmp.eq.s32.totalorder %s13, 1
      %p174 = por %p172, %p173
      %p175 = scmp.ne.s32.totalorder %s167, %s170
      %p176 = scmp.eq.s32.totalorder %s13, 0
      %p177 = por %p175, %p176
      %p178 = scmp.ne.s32.totalorder %s167, %s170
      %p179 = scmp.eq.s32.totalorder %s18, 1
      %p180 = por %p178, %p179
      %p181 = scmp.ne.s32.totalorder %s170, %s171
      %p182 = scmp.eq.s32.totalorder %s18, 0
      %p183 = por %p181, %p182
      %p184 = scmp.ne.s32.totalorder %s170, %s171
      %p185 = scmp.eq.s32.totalorder %s19, 1
      %p186 = por %p184, %p185
      %p188 = scmp.ne.s32.totalorder %s171, %s187
      %p189 = scmp.eq.s32.totalorder %s19, 0
      %p190 = por %p188, %p189
      %p191 = scmp.le.s32.totalorder 1, %s13
      %p192 = scmp.lt.s32.totalorder %s13, 3
      %p193 = pnand %p191, %p192
      %p194 = pneg %p193
      // Predicated region
      $region9: #{tpu_custom_call.1} parent=5 // pred_check
        _
      $region10: #{tpu_custom_call.1} parent=5 // pred_check_branch
        %196 = sbr.rel (%p193) target = $region12
      $region11: #{tpu_custom_call.1} parent=5 // pred_region
        %s197 = ssub.s32 %s13, 1
        // Predicated region
        $region13: #{tpu_custom_call.1} parent=11 // pred_check
          %p198 = pneg %p95
        $region14: #{tpu_custom_call.1} parent=11 // pred_check_branch
          %200 = sbr.rel (%p198) target = $region16
        $region15: #{tpu_custom_call.1} parent=11 // pred_region
          %p201 = scmp.lt.s32.totalorder %s24, 0
          %s202 = scalar_select %p201, %s24, 0
          %p203 = scmp.lt.s32.totalorder %s25, 0
          %s204 = scalar_select %p203, %s25, 0
          %s205 = smul.addr %s202, 4
          %s206 = sadd.s32 %s204, %s205
          %s207 = smul.addr %s206, 8
          %s208 = scalar_lea.vmem %s1, %s207
        $region16: #{tpu_custom_call.1} parent=11 // pred_fallthru
          _
        // Predicated region
        $region17: #{tpu_custom_call.1} parent=11 // pred_check
          %p209 = pneg %p123
        $region18: #{tpu_custom_call.1} parent=11 // pred_check_branch
          %211 = sbr.rel (%p209) target = $region20
        $region19: #{tpu_custom_call.1} parent=11 // pred_region
          %p212 = scmp.lt.s32.totalorder %s24, 0
          %s213 = scalar_select %p212, %s24, 0
          %p214 = scmp.lt.s32.totalorder %s25, 0
          %s215 = scalar_select %p214, %s25, 0
          %s216 = sadd.s32 %s215, %s213
          %s217 = scalar_lea.vmem %s2, %s216
        $region20: #{tpu_custom_call.1} parent=11 // pred_fallthru
          _
        // Predicated region
        $region21: #{tpu_custom_call.1} parent=11 // pred_check
          %p218 = pneg %p151
        $region22: #{tpu_custom_call.1} parent=11 // pred_check_branch
          %220 = sbr.rel (%p218) target = $region24
        $region23: #{tpu_custom_call.1} parent=11 // pred_region
          %p221 = scmp.lt.s32.totalorder %s24, 0
          %s222 = scalar_select %p221, %s24, 0
          %p223 = scmp.lt.s32.totalorder %s25, 0
          %s224 = scalar_select %p223, %s25, 0
          %s225 = sadd.s32 %s224, %s222
          %s226 = scalar_lea.vmem %s3, %s225
        $region24: #{tpu_custom_call.1} parent=11 // pred_fallthru
          _
      $region12: #{tpu_custom_call.1} parent=5 // pred_fallthru
        _
      %p227 = scmp.lt.s32.totalorder %s13, 2
      // Predicated region
      $region25: #{tpu_custom_call.1} parent=5 // pred_check
        %p228 = pneg %p227
      $region26: #{tpu_custom_call.1} parent=5 // pred_check_branch
        %230 = sbr.rel (%p228) target = $region28
      $region27: #{tpu_custom_call.1} parent=5 // pred_region
        // Predicated region
        $region29: #{tpu_custom_call.1} parent=27 // pred_check
          %p231 = pneg %p61
        $region30: #{tpu_custom_call.1} parent=27 // pred_check_branch
          %233 = sbr.rel (%p231) target = $region32
        $region31: #{tpu_custom_call.1} parent=27 // pred_region
          %p234 = scmp.lt.s32.totalorder %s22, 1
          %s235 = scalar_select %p234, %s22, 1
          %p236 = scmp.lt.s32.totalorder %s20, 0
          %s237 = scalar_select %p236, %s20, 0
          %s238 = smul.addr %s237, 54
          %s239 = smul.addr %s235, 54
          %s240 = sadd.s32 %s238, %s239
          %s241 = smul.addr %s240, 2
          %s242 = scalar_lea.vmem %s0, %s241
        $region32: #{tpu_custom_call.1} parent=27 // pred_fallthru
          _
      $region28: #{tpu_custom_call.1} parent=5 // pred_fallthru
        _
      %p243 = scmp.le.s32.totalorder 1, %s13
      %p244 = scmp.lt.s32.totalorder %s13, 3
      %p245 = pnand %p243, %p244
      %p246 = pneg %p245
      // Predicated region
      $region33: #{tpu_custom_call.1} parent=5 // pred_check
        _
      $region34: #{tpu_custom_call.1} parent=5 // pred_check_branch
        %248 = sbr.rel (%p245) target = $region36
      $region35: #{tpu_custom_call.1} parent=5 // pred_region
        %s249 = ssub.s32 %s13, 1
        %p250 = scmp.lt.s32.totalorder %s26, 1
        %s251 = scalar_select %p250, %s26, 1
        %p252 = scmp.lt.s32.totalorder %s24, 0
        %s253 = scalar_select %p252, %s24, 0
        %s254 = smul.addr %s253, 54
        %s255 = smul.addr %s251, 54
        %s256 = sadd.s32 %s254, %s255
        %s257 = smul.addr %s256, 2
        %s258 = scalar_lea.vmem %s0, %s257
        %p259 = pneg %p67
        %p260 = pneg %p64
        %p261 = scmp.lt.s32.totalorder %s24, 0
        %s262 = scalar_select %p261, %s24, 0
        %p263 = scmp.lt.s32.totalorder %s25, 0
        %s264 = scalar_select %p263, %s25, 0
        %s265 = smul.addr %s262, 4
        %s266 = sadd.s32 %s264, %s265
        %s267 = smul.addr %s266, 8
        %s268 = scalar_lea.vmem %s1, %s267
        %p269 = pneg %p95
        %p270 = pneg %p92
        %p271 = scmp.lt.s32.totalorder %s24, 0
        %s272 = scalar_select %p271, %s24, 0
        %p273 = scmp.lt.s32.totalorder %s25, 0
        %s274 = scalar_select %p273, %s25, 0
        %s275 = sadd.s32 %s274, %s272
        %s276 = scalar_lea.vmem %s2, %s275
        %p277 = pneg %p123
        %p278 = pneg %p120
        %p279 = scmp.lt.s32.totalorder %s24, 0
        %s280 = scalar_select %p279, %s24, 0
        %p281 = scmp.lt.s32.totalorder %s25, 0
        %s282 = scalar_select %p281, %s25, 0
        %s283 = sadd.s32 %s282, %s280
        %s284 = scalar_lea.vmem %s3, %s283
        %p285 = pneg %p151
        %p286 = pneg %p148
        %p287 = pneg %p183
        %p288 = pneg %p180
        %s289 = sand.u32 %s170, 1
        %s290 = scalar_lea.sflag [#allocation4], %s289
        %s291 = sand.u32 %s170, 1
        %s292 = smul.addr %s291, 64
        %s293 = scalar_lea.vmem [#allocation3], %s292
        %p294 = scmp.lt.s32.totalorder %s26, 1
        %s295 = scalar_select %p294, %s26, 1
        %p296 = scmp.lt.s32.totalorder %s24, 0
        %s297 = scalar_select %p296, %s24, 0
        %s298 = smul.addr %s297, 54
        %s299 = smul.addr %s295, 54
        %s300 = sadd.s32 %s298, %s299
        %s301 = smul.addr %s300, 2
        %s302 = scalar_lea.vmem %s0, %s301
        %p303 = scmp.lt.s32.totalorder %s24, 0
        %s304 = scalar_select %p303, %s24, 0
        %p305 = scmp.lt.s32.totalorder %s25, 0
        %s306 = scalar_select %p305, %s25, 0
        %s307 = smul.addr %s304, 4
        %s308 = sadd.s32 %s306, %s307
        %s309 = smul.addr %s308, 8
        %s310 = scalar_lea.vmem %s1, %s309
        %p311 = scmp.lt.s32.totalorder %s24, 0
        %s312 = scalar_select %p311, %s24, 0
        %p313 = scmp.lt.s32.totalorder %s25, 0
        %s314 = scalar_select %p313, %s25, 0
        %s315 = sadd.s32 %s314, %s312
        %s316 = scalar_lea.vmem %s2, %s315
        %p317 = scmp.lt.s32.totalorder %s24, 0
        %s318 = scalar_select %p317, %s24, 0
        %p319 = scmp.lt.s32.totalorder %s25, 0
        %s320 = scalar_select %p319, %s25, 0
        %s321 = sadd.s32 %s320, %s318
        %s322 = scalar_lea.vmem %s3, %s321
        %s323 = smul.u32 16, %s27
        %s324 = smul.u32 %s27, 16
        %vm325 = vcmask 1047840
        %326 = vst.msk [vmem:[#allocation2] sm:$0xff] %vm325, 0.0
        %327 = vst.msk [vmem:[#allocation2 + $0x8] sm:$0xff] %vm325, 0.0
        %328 = vst.msk [vmem:[#allocation2 + $0x10] sm:$0xff] %vm325, 0.0
        %329 = vst.msk [vmem:[#allocation2 + $0x18] sm:$0xff] %vm325, 0.0
        %330 = vst.msk [vmem:[#allocation2 + $0x20] sm:$0xff] %vm325, 0.0
        %331 = vst.msk [vmem:[#allocation2 + $0x28] sm:$0xff] %vm325, 0.0
        %332 = vst.msk [vmem:[#allocation2 + $0x30] sm:$0xff] %vm325, 0.0
        %333 = vst.msk [vmem:[#allocation2 + $0x38] sm:$0xff] %vm325, 0.0
        %334 = vst.msk [vmem:[#allocation2 + $0x40] sm:$0xff] %vm325, 0.0
        %335 = vst.msk [vmem:[#allocation2 + $0x48] sm:$0xff] %vm325, 0.0
        %336 = vst.msk [vmem:[#allocation2 + $0x50] sm:$0xff] %vm325, 0.0
        %337 = vst.msk [vmem:[#allocation2 + $0x58] sm:$0xff] %vm325, 0.0
        %338 = vst.msk [vmem:[#allocation2 + $0x60] sm:$0xff] %vm325, 0.0
        %339 = vst.msk [vmem:[#allocation2 + $0x68] sm:$0xff] %vm325, 0.0
        %340 = vst.msk [vmem:[#allocation2 + $0x70] sm:$0xff] %vm325, 0.0
        %341 = vst.msk [vmem:[#allocation2 + $0x78] sm:$0xff] %vm325, 0.0
        %342 = vst.msk [vmem:[#allocation2 + $0x80] sm:$0xff] %vm325, 0.0
        %343 = vst.msk [vmem:[#allocation2 + $0x88] sm:$0xff] %vm325, 0.0
        %344 = vst.msk [vmem:[#allocation2 + $0x90] sm:$0xff] %vm325, 0.0
        %345 = vst.msk [vmem:[#allocation2 + $0x98] sm:$0xff] %vm325, 0.0
        %346 = vst.msk [vmem:[#allocation2 + $0xa0] sm:$0xff] %vm325, 0.0
        %347 = vst.msk [vmem:[#allocation2 + $0xa8] sm:$0xff] %vm325, 0.0
        %348 = vst.msk [vmem:[#allocation2 + $0xb0] sm:$0xff] %vm325, 0.0
        %349 = vst.msk [vmem:[#allocation2 + $0xb8] sm:$0xff] %vm325, 0.0
        %350 = vst.msk [vmem:[#allocation2 + $0xc0] sm:$0xff] %vm325, 0.0
        %351 = vst.msk [vmem:[#allocation2 + $0xc8] sm:$0xff] %vm325, 0.0
        %352 = vst.msk [vmem:[#allocation2 + $0xd0] sm:$0xff] %vm325, 0.0
        %353 = vst.msk [vmem:[#allocation2 + $0xd8] sm:$0xff] %vm325, 0.0
        %354 = vst.msk [vmem:[#allocation2 + $0xe0] sm:$0xff] %vm325, 0.0
        %355 = vst.msk [vmem:[#allocation2 + $0xe8] sm:$0xff] %vm325, 0.0
        %356 = vst.msk [vmem:[#allocation2 + $0xf0] sm:$0xff] %vm325, 0.0
        %357 = vst.msk [vmem:[#allocation2 + $0xf8] sm:$0xff] %vm325, 0.0
        %s358 = smul.u32 %s324, 3
        %s359 = smul.addr %s358, 2
        %s360 = scalar_lea.vmem %s302, %s359
        %v361 = vld [vmem:[%s360] sm:$0x3]
        %v362 = vld [vmem:[%s360 + $0x2] sm:$0x3]
        %v363 = vld [vmem:[%s360 + $0x6] sm:$0x3]
        %v364 = vld [vmem:[%s360 + $0x8] sm:$0x3]
        %v365 = vld [vmem:[%s360 + $0xc] sm:$0x3]
        %v366 = vld [vmem:[%s360 + $0xe] sm:$0x3]
        %v367 = vld [vmem:[%s360 + $0x12] sm:$0x3]
        %v368 = vld [vmem:[%s360 + $0x14] sm:$0x3]
        %v369 = vld [vmem:[%s360 + $0x18] sm:$0x3]
        %v370 = vld [vmem:[%s360 + $0x1a] sm:$0x3]
        %v371 = vld [vmem:[%s360 + $0x1e] sm:$0x3]
        %v372 = vld [vmem:[%s360 + $0x20] sm:$0x3]
        %v373 = vld [vmem:[%s360 + $0x24] sm:$0x3]
        %v374 = vld [vmem:[%s360 + $0x26] sm:$0x3]
        %v375 = vld [vmem:[%s360 + $0x2a] sm:$0x3]
        %v376 = vld [vmem:[%s360 + $0x2c] sm:$0x3]
        %v377 = vld [vmem:[%s360 + $0x30] sm:$0x3]
        %v378 = vld [vmem:[%s360 + $0x32] sm:$0x3]
        %v379 = vld [vmem:[%s360 + $0x36] sm:$0x3]
        %v380 = vld [vmem:[%s360 + $0x38] sm:$0x3]
        %v381 = vld [vmem:[%s360 + $0x3c] sm:$0x3]
        %v382 = vld [vmem:[%s360 + $0x3e] sm:$0x3]
        %v383 = vld [vmem:[%s360 + $0x42] sm:$0x3]
        %v384 = vld [vmem:[%s360 + $0x44] sm:$0x3]
        %v385 = vld [vmem:[%s360 + $0x48] sm:$0x3]
        %v386 = vld [vmem:[%s360 + $0x4a] sm:$0x3]
        %v387 = vld [vmem:[%s360 + $0x4e] sm:$0x3]
        %v388 = vld [vmem:[%s360 + $0x50] sm:$0x3]
        %v389 = vld [vmem:[%s360 + $0x54] sm:$0x3]
        %v390 = vld [vmem:[%s360 + $0x56] sm:$0x3]
        %v391 = vld [vmem:[%s360 + $0x5a] sm:$0x3]
        %v392 = vld [vmem:[%s360 + $0x5c] sm:$0x3]
        %v393 = vunpack.c.0.s8 %v361
        %v394 = vunpack.c.0.s8 %v362
        %v395 = vunpack.c.0.s8 %v363
        %v396 = vunpack.c.0.s8 %v364
        %v397 = vunpack.c.0.s8 %v365
        %v398 = vunpack.c.0.s8 %v366
        %v399 = vunpack.c.0.s8 %v367
        %v400 = vunpack.c.0.s8 %v368
        %v401 = vunpack.c.0.s8 %v369
        %v402 = vunpack.c.0.s8 %v370
        %v403 = vunpack.c.0.s8 %v371
        %v404 = vunpack.c.0.s8 %v372
        %v405 = vunpack.c.0.s8 %v373
        %v406 = vunpack.c.0.s8 %v374
        %v407 = vunpack.c.0.s8 %v375
        %v408 = vunpack.c.0.s8 %v376
        %v409 = vunpack.c.0.s8 %v377
        %v410 = vunpack.c.0.s8 %v378
        %v411 = vunpack.c.0.s8 %v379
        %v412 = vunpack.c.0.s8 %v380
        %v413 = vunpack.c.0.s8 %v381
        %v414 = vunpack.c.0.s8 %v382
        %v415 = vunpack.c.0.s8 %v383
        %v416 = vunpack.c.0.s8 %v384
        %v417 = vunpack.c.0.s8 %v385
        %v418 = vunpack.c.0.s8 %v386
        %v419 = vunpack.c.0.s8 %v387
        %v420 = vunpack.c.0.s8 %v388
        %v421 = vunpack.c.0.s8 %v389
        %v422 = vunpack.c.0.s8 %v390
        %v423 = vunpack.c.0.s8 %v391
        %v424 = vunpack.c.0.s8 %v392
        %v425 = vcvt.s32.f32 %v393
        %v426 = vcvt.s32.f32 %v394
        %v427 = vcvt.s32.f32 %v395
        %v428 = vcvt.s32.f32 %v396
        %v429 = vcvt.s32.f32 %v397
        %v430 = vcvt.s32.f32 %v398
        %v431 = vcvt.s32.f32 %v399
        %v432 = vcvt.s32.f32 %v400
        %v433 = vcvt.s32.f32 %v401
        %v434 = vcvt.s32.f32 %v402
        %v435 = vcvt.s32.f32 %v403
        %v436 = vcvt.s32.f32 %v404
        %v437 = vcvt.s32.f32 %v405
        %v438 = vcvt.s32.f32 %v406
        %v439 = vcvt.s32.f32 %v407
        %v440 = vcvt.s32.f32 %v408
        %v441 = vcvt.s32.f32 %v409
        %v442 = vcvt.s32.f32 %v410
        %v443 = vcvt.s32.f32 %v411
        %v444 = vcvt.s32.f32 %v412
        %v445 = vcvt.s32.f32 %v413
        %v446 = vcvt.s32.f32 %v414
        %v447 = vcvt.s32.f32 %v415
        %v448 = vcvt.s32.f32 %v416
        %v449 = vcvt.s32.f32 %v417
        %v450 = vcvt.s32.f32 %v418
        %v451 = vcvt.s32.f32 %v419
        %v452 = vcvt.s32.f32 %v420
        %v453 = vcvt.s32.f32 %v421
        %v454 = vcvt.s32.f32 %v422
        %v455 = vcvt.s32.f32 %v423
        %v456 = vcvt.s32.f32 %v424
        %vm457 = vcmask 31744
        %458 = vst.msk [vmem:[#allocation2] sm:$0xff] %vm457, %v425
        %459 = vst.msk [vmem:[#allocation2 + $0x8] sm:$0xff] %vm457, %v426
        %460 = vst.msk [vmem:[#allocation2 + $0x10] sm:$0xff] %vm457, %v427
        %461 = vst.msk [vmem:[#allocation2 + $0x18] sm:$0xff] %vm457, %v428
        %462 = vst.msk [vmem:[#allocation2 + $0x20] sm:$0xff] %vm457, %v429
        %463 = vst.msk [vmem:[#allocation2 + $0x28] sm:$0xff] %vm457, %v430
        %464 = vst.msk [vmem:[#allocation2 + $0x30] sm:$0xff] %vm457, %v431
        %465 = vst.msk [vmem:[#allocation2 + $0x38] sm:$0xff] %vm457, %v432
        %466 = vst.msk [vmem:[#allocation2 + $0x40] sm:$0xff] %vm457, %v433
        %467 = vst.msk [vmem:[#allocation2 + $0x48] sm:$0xff] %vm457, %v434
        %468 = vst.msk [vmem:[#allocation2 + $0x50] sm:$0xff] %vm457, %v435
        %469 = vst.msk [vmem:[#allocation2 + $0x58] sm:$0xff] %vm457, %v436
        %470 = vst.msk [vmem:[#allocation2 + $0x60] sm:$0xff] %vm457, %v437
        %471 = vst.msk [vmem:[#allocation2 + $0x68] sm:$0xff] %vm457, %v438
        %472 = vst.msk [vmem:[#allocation2 + $0x70] sm:$0xff] %vm457, %v439
        %473 = vst.msk [vmem:[#allocation2 + $0x78] sm:$0xff] %vm457, %v440
        %474 = vst.msk [vmem:[#allocation2 + $0x80] sm:$0xff] %vm457, %v441
        %475 = vst.msk [vmem:[#allocation2 + $0x88] sm:$0xff] %vm457, %v442
        %476 = vst.msk [vmem:[#allocation2 + $0x90] sm:$0xff] %vm457, %v443
        %477 = vst.msk [vmem:[#allocation2 + $0x98] sm:$0xff] %vm457, %v444
        %478 = vst.msk [vmem:[#allocation2 + $0xa0] sm:$0xff] %vm457, %v445
        %479 = vst.msk [vmem:[#allocation2 + $0xa8] sm:$0xff] %vm457, %v446
        %480 = vst.msk [vmem:[#allocation2 + $0xb0] sm:$0xff] %vm457, %v447
        %481 = vst.msk [vmem:[#allocation2 + $0xb8] sm:$0xff] %vm457, %v448
        %482 = vst.msk [vmem:[#allocation2 + $0xc0] sm:$0xff] %vm457, %v449
        %483 = vst.msk [vmem:[#allocation2 + $0xc8] sm:$0xff] %vm457, %v450
        %484 = vst.msk [vmem:[#allocation2 + $0xd0] sm:$0xff] %vm457, %v451
        %485 = vst.msk [vmem:[#allocation2 + $0xd8] sm:$0xff] %vm457, %v452
        %486 = vst.msk [vmem:[#allocation2 + $0xe0] sm:$0xff] %vm457, %v453
        %487 = vst.msk [vmem:[#allocation2 + $0xe8] sm:$0xff] %vm457, %v454
        %488 = vst.msk [vmem:[#allocation2 + $0xf0] sm:$0xff] %vm457, %v455
        %489 = vst.msk [vmem:[#allocation2 + $0xf8] sm:$0xff] %vm457, %v456
        %v490 = vld [vmem:[%s360] sm:$0x3]
        %v491 = vld [vmem:[%s360 + $0x2] sm:$0x3]
        %v492 = vld [vmem:[%s360 + $0x4] sm:$0x1]
        %v493 = vld [vmem:[%s360 + $0x6] sm:$0x3]
        %v494 = vld [vmem:[%s360 + $0x8] sm:$0x3]
        %v495 = vld [vmem:[%s360 + $0xa] sm:$0x1]
        %v496 = vld [vmem:[%s360 + $0xc] sm:$0x3]
        %v497 = vld [vmem:[%s360 + $0xe] sm:$0x3]
        %v498 = vld [vmem:[%s360 + $0x10] sm:$0x1]
        %v499 = vld [vmem:[%s360 + $0x12] sm:$0x3]
        %v500 = vld [vmem:[%s360 + $0x14] sm:$0x3]
        %v501 = vld [vmem:[%s360 + $0x16] sm:$0x1]
        %v502 = vld [vmem:[%s360 + $0x18] sm:$0x3]
        %v503 = vld [vmem:[%s360 + $0x1a] sm:$0x3]
        %v504 = vld [vmem:[%s360 + $0x1c] sm:$0x1]
        %v505 = vld [vmem:[%s360 + $0x1e] sm:$0x3]
        %v506 = vld [vmem:[%s360 + $0x20] sm:$0x3]
        %v507 = vld [vmem:[%s360 + $0x22] sm:$0x1]
        %v508 = vld [vmem:[%s360 + $0x24] sm:$0x3]
        %v509 = vld [vmem:[%s360 + $0x26] sm:$0x3]
        %v510 = vld [vmem:[%s360 + $0x28] sm:$0x1]
        %v511 = vld [vmem:[%s360 + $0x2a] sm:$0x3]
        %v512 = vld [vmem:[%s360 + $0x2c] sm:$0x3]
        %v513 = vld [vmem:[%s360 + $0x2e] sm:$0x1]
        %v514 = vld [vmem:[%s360 + $0x30] sm:$0x3]
        %v515 = vld [vmem:[%s360 + $0x32] sm:$0x3]
        %v516 = vld [vmem:[%s360 + $0x34] sm:$0x1]
        %v517 = vld [vmem:[%s360 + $0x36] sm:$0x3]
        %v518 = vld [vmem:[%s360 + $0x38] sm:$0x3]
        %v519 = vld [vmem:[%s360 + $0x3a] sm:$0x1]
        %v520 = vld [vmem:[%s360 + $0x3c] sm:$0x3]
        %v521 = vld [vmem:[%s360 + $0x3e] sm:$0x3]
        %v522 = vld [vmem:[%s360 + $0x40] sm:$0x1]
        %v523 = vld [vmem:[%s360 + $0x42] sm:$0x3]
        %v524 = vld [vmem:[%s360 + $0x44] sm:$0x3]
        %v525 = vld [vmem:[%s360 + $0x46] sm:$0x1]
        %v526 = vld [vmem:[%s360 + $0x48] sm:$0x3]
        %v527 = vld [vmem:[%s360 + $0x4a] sm:$0x3]
        %v528 = vld [vmem:[%s360 + $0x4c] sm:$0x1]
        %v529 = vld [vmem:[%s360 + $0x4e] sm:$0x3]
        %v530 = vld [vmem:[%s360 + $0x50] sm:$0x3]
        %v531 = vld [vmem:[%s360 + $0x52] sm:$0x1]
        %v532 = vld [vmem:[%s360 + $0x54] sm:$0x3]
        %v533 = vld [vmem:[%s360 + $0x56] sm:$0x3]
        %v534 = vld [vmem:[%s360 + $0x58] sm:$0x1]
        %v535 = vld [vmem:[%s360 + $0x5a] sm:$0x3]
        %v536 = vld [vmem:[%s360 + $0x5c] sm:$0x3]
        %v537 = vld [vmem:[%s360 + $0x5e] sm:$0x1]
        %v538 = vunpack.c.0.s8 %v490
        %v539 = vunpack.c.0.s8 %v491
        %v540 = vunpack.c.0.s8 %v492
        %v541 = vunpack.c.0.s8 %v493
        %v542 = vunpack.c.0.s8 %v494
        %v543 = vunpack.c.0.s8 %v495
        %v544 = vunpack.c.0.s8 %v496
        %v545 = vunpack.c.0.s8 %v497
        %v546 = vunpack.c.0.s8 %v498
        %v547 = vunpack.c.0.s8 %v499
        %v548 = vunpack.c.0.s8 %v500
        %v549 = vunpack.c.0.s8 %v501
        %v550 = vunpack.c.0.s8 %v502
        %v551 = vunpack.c.0.s8 %v503
        %v552 = vunpack.c.0.s8 %v504
        %v553 = vunpack.c.0.s8 %v505
        %v554 = vunpack.c.0.s8 %v506
        %v555 = vunpack.c.0.s8 %v507
        %v556 = vunpack.c.0.s8 %v508
        %v557 = vunpack.c.0.s8 %v509
        %v558 = vunpack.c.0.s8 %v510
        %v559 = vunpack.c.0.s8 %v511
        %v560 = vunpack.c.0.s8 %v512
        %v561 = vunpack.c.0.s8 %v513
        %v562 = vunpack.c.0.s8 %v514
        %v563 = vunpack.c.0.s8 %v515
        %v564 = vunpack.c.0.s8 %v516
        %v565 = vunpack.c.0.s8 %v517
        %v566 = vunpack.c.0.s8 %v518
        %v567 = vunpack.c.0.s8 %v519
        %v568 = vunpack.c.0.s8 %v520
        %v569 = vunpack.c.0.s8 %v521
        %v570 = vunpack.c.0.s8 %v522
        %v571 = vunpack.c.0.s8 %v523
        %v572 = vunpack.c.0.s8 %v524
        %v573 = vunpack.c.0.s8 %v525
        %v574 = vunpack.c.0.s8 %v526
        %v575 = vunpack.c.0.s8 %v527
        %v576 = vunpack.c.0.s8 %v528
        %v577 = vunpack.c.0.s8 %v529
        %v578 = vunpack.c.0.s8 %v530
        %v579 = vunpack.c.0.s8 %v531
        %v580 = vunpack.c.0.s8 %v532
        %v581 = vunpack.c.0.s8 %v533
        %v582 = vunpack.c.0.s8 %v534
        %v583 = vunpack.c.0.s8 %v535
        %v584 = vunpack.c.0.s8 %v536
        %v585 = vunpack.c.0.s8 %v537
        %v586 = vcvt.s32.f32 %v538
        %v587 = vcvt.s32.f32 %v539
        %v588 = vcvt.s32.f32 %v540
        %v589 = vcvt.s32.f32 %v541
        %v590 = vcvt.s32.f32 %v542
        %v591 = vcvt.s32.f32 %v543
        %v592 = vcvt.s32.f32 %v544
        %v593 = vcvt.s32.f32 %v545
        %v594 = vcvt.s32.f32 %v546
        %v595 = vcvt.s32.f32 %v547
        %v596 = vcvt.s32.f32 %v548
        %v597 = vcvt.s32.f32 %v549
        %v598 = vcvt.s32.f32 %v550
        %v599 = vcvt.s32.f32 %v551
        %v600 = vcvt.s32.f32 %v552
        %v601 = vcvt.s32.f32 %v553
        %v602 = vcvt.s32.f32 %v554
        %v603 = vcvt.s32.f32 %v555
        %v604 = vcvt.s32.f32 %v556
        %v605 = vcvt.s32.f32 %v557
        %v606 = vcvt.s32.f32 %v558
        %v607 = vcvt.s32.f32 %v559
        %v608 = vcvt.s32.f32 %v560
        %v609 = vcvt.s32.f32 %v561
        %v610 = vcvt.s32.f32 %v562
        %v611 = vcvt.s32.f32 %v563
        %v612 = vcvt.s32.f32 %v564
        %v613 = vcvt.s32.f32 %v565
        %v614 = vcvt.s32.f32 %v566
        %v615 = vcvt.s32.f32 %v567
        %v616 = vcvt.s32.f32 %v568
        %v617 = vcvt.s32.f32 %v569
        %v618 = vcvt.s32.f32 %v570
        %v619 = vcvt.s32.f32 %v571
        %v620 = vcvt.s32.f32 %v572
        %v621 = vcvt.s32.f32 %v573
        %v622 = vcvt.s32.f32 %v574
        %v623 = vcvt.s32.f32 %v575
        %v624 = vcvt.s32.f32 %v576
        %v625 = vcvt.s32.f32 %v577
        %v626 = vcvt.s32.f32 %v578
        %v627 = vcvt.s32.f32 %v579
        %v628 = vcvt.s32.f32 %v580
        %v629 = vcvt.s32.f32 %v581
        %v630 = vcvt.s32.f32 %v582
        %v631 = vcvt.s32.f32 %v583
        %v632 = vcvt.s32.f32 %v584
        %v633 = vcvt.s32.f32 %v585
        %vm682 = vcmask 1046528
        %v683 = vrot.slane %v586, 1
        %v684 = vrot.slane %v587, 1
        %v685 = vsel %vm682, %v683, %v684
        %v686 = vrot.slane %v588, 1
        %v687 = vsel %vm682, %v684, %v686
        %v688 = vrot.slane %v589, 1
        %v689 = vrot.slane %v590, 1
        %v690 = vsel %vm682, %v688, %v689
        %v691 = vrot.slane %v591, 1
        %v692 = vsel %vm682, %v689, %v691
        %v693 = vrot.slane %v592, 1
        %v694 = vrot.slane %v593, 1
        %v695 = vsel %vm682, %v693, %v694
        %v696 = vrot.slane %v594, 1
        %v697 = vsel %vm682, %v694, %v696
        %v698 = vrot.slane %v595, 1
        %v699 = vrot.slane %v596, 1
        %v700 = vsel %vm682, %v698, %v699
        %v701 = vrot.slane %v597, 1
        %v702 = vsel %vm682, %v699, %v701
        %v703 = vrot.slane %v598, 1
        %v704 = vrot.slane %v599, 1
        %v705 = vsel %vm682, %v703, %v704
        %v706 = vrot.slane %v600, 1
        %v707 = vsel %vm682, %v704, %v706
        %v708 = vrot.slane %v601, 1
        %v709 = vrot.slane %v602, 1
        %v710 = vsel %vm682, %v708, %v709
        %v711 = vrot.slane %v603, 1
        %v712 = vsel %vm682, %v709, %v711
        %v713 = vrot.slane %v604, 1
        %v714 = vrot.slane %v605, 1
        %v715 = vsel %vm682, %v713, %v714
        %v716 = vrot.slane %v606, 1
        %v717 = vsel %vm682, %v714, %v716
        %v718 = vrot.slane %v607, 1
        %v719 = vrot.slane %v608, 1
        %v720 = vsel %vm682, %v718, %v719
        %v721 = vrot.slane %v609, 1
        %v722 = vsel %vm682, %v719, %v721
        %v723 = vrot.slane %v610, 1
        %v724 = vrot.slane %v611, 1
        %v725 = vsel %vm682, %v723, %v724
        %v726 = vrot.slane %v612, 1
        %v727 = vsel %vm682, %v724, %v726
        %v728 = vrot.slane %v613, 1
        %v729 = vrot.slane %v614, 1
        %v730 = vsel %vm682, %v728, %v729
        %v731 = vrot.slane %v615, 1
        %v732 = vsel %vm682, %v729, %v731
        %v733 = vrot.slane %v616, 1
        %v734 = vrot.slane %v617, 1
        %v735 = vsel %vm682, %v733, %v734
        %v736 = vrot.slane %v618, 1
        %v737 = vsel %vm682, %v734, %v736
        %v738 = vrot.slane %v619, 1
        %v739 = vrot.slane %v620, 1
        %v740 = vsel %vm682, %v738, %v739
        %v741 = vrot.slane %v621, 1
        %v742 = vsel %vm682, %v739, %v741
        %v743 = vrot.slane %v622, 1
        %v744 = vrot.slane %v623, 1
        %v745 = vsel %vm682, %v743, %v744
        %v746 = vrot.slane %v624, 1
        %v747 = vsel %vm682, %v744, %v746
        %v748 = vrot.slane %v625, 1
        %v749 = vrot.slane %v626, 1
        %v750 = vsel %vm682, %v748, %v749
        %v751 = vrot.slane %v627, 1
        %v752 = vsel %vm682, %v749, %v751
        %v753 = vrot.slane %v628, 1
        %v754 = vrot.slane %v629, 1
        %v755 = vsel %vm682, %v753, %v754
        %v756 = vrot.slane %v630, 1
        %v757 = vsel %vm682, %v754, %v756
        %v758 = vrot.slane %v631, 1
        %v759 = vrot.slane %v632, 1
        %v760 = vsel %vm682, %v758, %v759
        %v761 = vrot.slane %v633, 1
        %v762 = vsel %vm682, %v759, %v761
        %763 = vrot.lane.b32.xlu0 %v685, 4
        %v764 = vpop.permute.xlu0 %763
        %765 = vrot.lane.b32.xlu0 %v687, 4
        %v766 = vpop.permute.xlu0 %765
        %767 = vrot.lane.b32.xlu0 %v690, 4
        %v768 = vpop.permute.xlu0 %767
        %769 = vrot.lane.b32.xlu0 %v692, 4
        %v770 = vpop.permute.xlu0 %769
        %771 = vrot.lane.b32.xlu0 %v695, 4
        %v772 = vpop.permute.xlu0 %771
        %773 = vrot.lane.b32.xlu0 %v697, 4
        %v774 = vpop.permute.xlu0 %773
        %775 = vrot.lane.b32.xlu0 %v700, 4
        %v776 = vpop.permute.xlu0 %775
        %777 = vrot.lane.b32.xlu0 %v702, 4
        %v778 = vpop.permute.xlu0 %777
        %779 = vrot.lane.b32.xlu0 %v705, 4
        %v780 = vpop.permute.xlu0 %779
        %781 = vrot.lane.b32.xlu0 %v707, 4
        %v782 = vpop.permute.xlu0 %781
        %783 = vrot.lane.b32.xlu0 %v710, 4
        %v784 = vpop.permute.xlu0 %783
        %785 = vrot.lane.b32.xlu0 %v712, 4
        %v786 = vpop.permute.xlu0 %785
        %787 = vrot.lane.b32.xlu0 %v715, 4
        %v788 = vpop.permute.xlu0 %787
        %789 = vrot.lane.b32.xlu0 %v717, 4
        %v790 = vpop.permute.xlu0 %789
        %791 = vrot.lane.b32.xlu0 %v720, 4
        %v792 = vpop.permute.xlu0 %791
        %793 = vrot.lane.b32.xlu0 %v722, 4
        %v794 = vpop.permute.xlu0 %793
        %795 = vrot.lane.b32.xlu0 %v725, 4
        %v796 = vpop.permute.xlu0 %795
        %797 = vrot.lane.b32.xlu0 %v727, 4
        %v798 = vpop.permute.xlu0 %797
        %799 = vrot.lane.b32.xlu0 %v730, 4
        %v800 = vpop.permute.xlu0 %799
        %801 = vrot.lane.b32.xlu0 %v732, 4
        %v802 = vpop.permute.xlu0 %801
        %803 = vrot.lane.b32.xlu0 %v735, 4
        %v804 = vpop.permute.xlu0 %803
        %805 = vrot.lane.b32.xlu0 %v737, 4
        %v806 = vpop.permute.xlu0 %805
        %807 = vrot.lane.b32.xlu0 %v740, 4
        %v808 = vpop.permute.xlu0 %807
        %809 = vrot.lane.b32.xlu0 %v742, 4
        %v810 = vpop.permute.xlu0 %809
        %811 = vrot.lane.b32.xlu0 %v745, 4
        %v812 = vpop.permute.xlu0 %811
        %813 = vrot.lane.b32.xlu0 %v747, 4
        %v814 = vpop.permute.xlu0 %813
        %815 = vrot.lane.b32.xlu0 %v750, 4
        %v816 = vpop.permute.xlu0 %815
        %817 = vrot.lane.b32.xlu0 %v752, 4
        %v818 = vpop.permute.xlu0 %817
        %819 = vrot.lane.b32.xlu0 %v755, 4
        %v820 = vpop.permute.xlu0 %819
        %821 = vrot.lane.b32.xlu0 %v757, 4
        %v822 = vpop.permute.xlu0 %821
        %823 = vrot.lane.b32.xlu0 %v760, 4
        %v824 = vpop.permute.xlu0 %823
        %825 = vrot.lane.b32.xlu0 %v762, 4
        %v826 = vpop.permute.xlu0 %825
        %vm859 = vcmask 64544
        %860 = vst.msk [vmem:[#allocation2] sm:$0xff] %vm859, %v764
        %861 = vst.msk [vmem:[#allocation2 + $0x8] sm:$0xff] %vm859, %v766
        %862 = vst.msk [vmem:[#allocation2 + $0x10] sm:$0xff] %vm859, %v768
        %863 = vst.msk [vmem:[#allocation2 + $0x18] sm:$0xff] %vm859, %v770
        %864 = vst.msk [vmem:[#allocation2 + $0x20] sm:$0xff] %vm859, %v772
        %865 = vst.msk [vmem:[#allocation2 + $0x28] sm:$0xff] %vm859, %v774
        %866 = vst.msk [vmem:[#allocation2 + $0x30] sm:$0xff] %vm859, %v776
        %867 = vst.msk [vmem:[#allocation2 + $0x38] sm:$0xff] %vm859, %v778
        %868 = vst.msk [vmem:[#allocation2 + $0x40] sm:$0xff] %vm859, %v780
        %869 = vst.msk [vmem:[#allocation2 + $0x48] sm:$0xff] %vm859, %v782
        %870 = vst.msk [vmem:[#allocation2 + $0x50] sm:$0xff] %vm859, %v784
        %871 = vst.msk [vmem:[#allocation2 + $0x58] sm:$0xff] %vm859, %v786
        %872 = vst.msk [vmem:[#allocation2 + $0x60] sm:$0xff] %vm859, %v788
        %873 = vst.msk [vmem:[#allocation2 + $0x68] sm:$0xff] %vm859, %v790
        %874 = vst.msk [vmem:[#allocation2 + $0x70] sm:$0xff] %vm859, %v792
        %875 = vst.msk [vmem:[#allocation2 + $0x78] sm:$0xff] %vm859, %v794
        %876 = vst.msk [vmem:[#allocation2 + $0x80] sm:$0xff] %vm859, %v796
        %877 = vst.msk [vmem:[#allocation2 + $0x88] sm:$0xff] %vm859, %v798
        %878 = vst.msk [vmem:[#allocation2 + $0x90] sm:$0xff] %vm859, %v800
        %879 = vst.msk [vmem:[#allocation2 + $0x98] sm:$0xff] %vm859, %v802
        %880 = vst.msk [vmem:[#allocation2 + $0xa0] sm:$0xff] %vm859, %v804
        %881 = vst.msk [vmem:[#allocation2 + $0xa8] sm:$0xff] %vm859, %v806
        %882 = vst.msk [vmem:[#allocation2 + $0xb0] sm:$0xff] %vm859, %v808
        %883 = vst.msk [vmem:[#allocation2 + $0xb8] sm:$0xff] %vm859, %v810
        %884 = vst.msk [vmem:[#allocation2 + $0xc0] sm:$0xff] %vm859, %v812
        %885 = vst.msk [vmem:[#allocation2 + $0xc8] sm:$0xff] %vm859, %v814
        %886 = vst.msk [vmem:[#allocation2 + $0xd0] sm:$0xff] %vm859, %v816
        %887 = vst.msk [vmem:[#allocation2 + $0xd8] sm:$0xff] %vm859, %v818
        %888 = vst.msk [vmem:[#allocation2 + $0xe0] sm:$0xff] %vm859, %v820
        %889 = vst.msk [vmem:[#allocation2 + $0xe8] sm:$0xff] %vm859, %v822
        %890 = vst.msk [vmem:[#allocation2 + $0xf0] sm:$0xff] %vm859, %v824
        %891 = vst.msk [vmem:[#allocation2 + $0xf8] sm:$0xff] %vm859, %v826
        %v892 = vld [vmem:[%s360] sm:$0x3]
        %v893 = vld [vmem:[%s360 + $0x2] sm:$0x3]
        %v894 = vld [vmem:[%s360 + $0x4] sm:$0x1]
        %v895 = vld [vmem:[%s360 + $0x6] sm:$0x3]
        %v896 = vld [vmem:[%s360 + $0x8] sm:$0x3]
        %v897 = vld [vmem:[%s360 + $0xa] sm:$0x1]
        %v898 = vld [vmem:[%s360 + $0xc] sm:$0x3]
        %v899 = vld [vmem:[%s360 + $0xe] sm:$0x3]
        %v900 = vld [vmem:[%s360 + $0x10] sm:$0x1]
        %v901 = vld [vmem:[%s360 + $0x12] sm:$0x3]
        %v902 = vld [vmem:[%s360 + $0x14] sm:$0x3]
        %v903 = vld [vmem:[%s360 + $0x16] sm:$0x1]
        %v904 = vld [vmem:[%s360 + $0x18] sm:$0x3]
        %v905 = vld [vmem:[%s360 + $0x1a] sm:$0x3]
        %v906 = vld [vmem:[%s360 + $0x1c] sm:$0x1]
        %v907 = vld [vmem:[%s360 + $0x1e] sm:$0x3]
        %v908 = vld [vmem:[%s360 + $0x20] sm:$0x3]
        %v909 = vld [vmem:[%s360 + $0x22] sm:$0x1]
        %v910 = vld [vmem:[%s360 + $0x24] sm:$0x3]
        %v911 = vld [vmem:[%s360 + $0x26] sm:$0x3]
        %v912 = vld [vmem:[%s360 + $0x28] sm:$0x1]
        %v913 = vld [vmem:[%s360 + $0x2a] sm:$0x3]
        %v914 = vld [vmem:[%s360 + $0x2c] sm:$0x3]
        %v915 = vld [vmem:[%s360 + $0x2e] sm:$0x1]
        %v916 = vld [vmem:[%s360 + $0x30] sm:$0x3]
        %v917 = vld [vmem:[%s360 + $0x32] sm:$0x3]
        %v918 = vld [vmem:[%s360 + $0x34] sm:$0x1]
        %v919 = vld [vmem:[%s360 + $0x36] sm:$0x3]
        %v920 = vld [vmem:[%s360 + $0x38] sm:$0x3]
        %v921 = vld [vmem:[%s360 + $0x3a] sm:$0x1]
        %v922 = vld [vmem:[%s360 + $0x3c] sm:$0x3]
        %v923 = vld [vmem:[%s360 + $0x3e] sm:$0x3]
        %v924 = vld [vmem:[%s360 + $0x40] sm:$0x1]
        %v925 = vld [vmem:[%s360 + $0x42] sm:$0x3]
        %v926 = vld [vmem:[%s360 + $0x44] sm:$0x3]
        %v927 = vld [vmem:[%s360 + $0x46] sm:$0x1]
        %v928 = vld [vmem:[%s360 + $0x48] sm:$0x3]
        %v929 = vld [vmem:[%s360 + $0x4a] sm:$0x3]
        %v930 = vld [vmem:[%s360 + $0x4c] sm:$0x1]
        %v931 = vld [vmem:[%s360 + $0x4e] sm:$0x3]
        %v932 = vld [vmem:[%s360 + $0x50] sm:$0x3]
        %v933 = vld [vmem:[%s360 + $0x52] sm:$0x1]
        %v934 = vld [vmem:[%s360 + $0x54] sm:$0x3]
        %v935 = vld [vmem:[%s360 + $0x56] sm:$0x3]
        %v936 = vld [vmem:[%s360 + $0x58] sm:$0x1]
        %v937 = vld [vmem:[%s360 + $0x5a] sm:$0x3]
        %v938 = vld [vmem:[%s360 + $0x5c] sm:$0x3]
        %v939 = vld [vmem:[%s360 + $0x5e] sm:$0x1]
        %v940 = vunpack.c.0.s8 %v892
        %v941 = vunpack.c.0.s8 %v893
        %v942 = vunpack.c.0.s8 %v894
        %v943 = vunpack.c.0.s8 %v895
        %v944 = vunpack.c.0.s8 %v896
        %v945 = vunpack.c.0.s8 %v897
        %v946 = vunpack.c.0.s8 %v898
        %v947 = vunpack.c.0.s8 %v899
        %v948 = vunpack.c.0.s8 %v900
        %v949 = vunpack.c.0.s8 %v901
        %v950 = vunpack.c.0.s8 %v902
        %v951 = vunpack.c.0.s8 %v903
        %v952 = vunpack.c.0.s8 %v904
        %v953 = vunpack.c.0.s8 %v905
        %v954 = vunpack.c.0.s8 %v906
        %v955 = vunpack.c.0.s8 %v907
        %v956 = vunpack.c.0.s8 %v908
        %v957 = vunpack.c.0.s8 %v909
        %v958 = vunpack.c.0.s8 %v910
        %v959 = vunpack.c.0.s8 %v911
        %v960 = vunpack.c.0.s8 %v912
        %v961 = vunpack.c.0.s8 %v913
        %v962 = vunpack.c.0.s8 %v914
        %v963 = vunpack.c.0.s8 %v915
        %v964 = vunpack.c.0.s8 %v916
        %v965 = vunpack.c.0.s8 %v917
        %v966 = vunpack.c.0.s8 %v918
        %v967 = vunpack.c.0.s8 %v919
        %v968 = vunpack.c.0.s8 %v920
        %v969 = vunpack.c.0.s8 %v921
        %v970 = vunpack.c.0.s8 %v922
        %v971 = vunpack.c.0.s8 %v923
        %v972 = vunpack.c.0.s8 %v924
        %v973 = vunpack.c.0.s8 %v925
        %v974 = vunpack.c.0.s8 %v926
        %v975 = vunpack.c.0.s8 %v927
        %v976 = vunpack.c.0.s8 %v928
        %v977 = vunpack.c.0.s8 %v929
        %v978 = vunpack.c.0.s8 %v930
        %v979 = vunpack.c.0.s8 %v931
        %v980 = vunpack.c.0.s8 %v932
        %v981 = vunpack.c.0.s8 %v933
        %v982 = vunpack.c.0.s8 %v934
        %v983 = vunpack.c.0.s8 %v935
        %v984 = vunpack.c.0.s8 %v936
        %v985 = vunpack.c.0.s8 %v937
        %v986 = vunpack.c.0.s8 %v938
        %v987 = vunpack.c.0.s8 %v939
        %v988 = vcvt.s32.f32 %v940
        %v989 = vcvt.s32.f32 %v941
        %v990 = vcvt.s32.f32 %v942
        %v991 = vcvt.s32.f32 %v943
        %v992 = vcvt.s32.f32 %v944
        %v993 = vcvt.s32.f32 %v945
        %v994 = vcvt.s32.f32 %v946
        %v995 = vcvt.s32.f32 %v947
        %v996 = vcvt.s32.f32 %v948
        %v997 = vcvt.s32.f32 %v949
        %v998 = vcvt.s32.f32 %v950
        %v999 = vcvt.s32.f32 %v951
        %v1000 = vcvt.s32.f32 %v952
        %v1001 = vcvt.s32.f32 %v953
        %v1002 = vcvt.s32.f32 %v954
        %v1003 = vcvt.s32.f32 %v955
        %v1004 = vcvt.s32.f32 %v956
        %v1005 = vcvt.s32.f32 %v957
        %v1006 = vcvt.s32.f32 %v958
        %v1007 = vcvt.s32.f32 %v959
        %v1008 = vcvt.s32.f32 %v960
        %v1009 = vcvt.s32.f32 %v961
        %v1010 = vcvt.s32.f32 %v962
        %v1011 = vcvt.s32.f32 %v963
        %v1012 = vcvt.s32.f32 %v964
        %v1013 = vcvt.s32.f32 %v965
        %v1014 = vcvt.s32.f32 %v966
        %v1015 = vcvt.s32.f32 %v967
        %v1016 = vcvt.s32.f32 %v968
        %v1017 = vcvt.s32.f32 %v969
        %v1018 = vcvt.s32.f32 %v970
        %v1019 = vcvt.s32.f32 %v971
        %v1020 = vcvt.s32.f32 %v972
        %v1021 = vcvt.s32.f32 %v973
        %v1022 = vcvt.s32.f32 %v974
        %v1023 = vcvt.s32.f32 %v975
        %v1024 = vcvt.s32.f32 %v976
        %v1025 = vcvt.s32.f32 %v977
        %v1026 = vcvt.s32.f32 %v978
        %v1027 = vcvt.s32.f32 %v979
        %v1028 = vcvt.s32.f32 %v980
        %v1029 = vcvt.s32.f32 %v981
        %v1030 = vcvt.s32.f32 %v982
        %v1031 = vcvt.s32.f32 %v983
        %v1032 = vcvt.s32.f32 %v984
        %v1033 = vcvt.s32.f32 %v985
        %v1034 = vcvt.s32.f32 %v986
        %v1035 = vcvt.s32.f32 %v987
        %vm1084 = vcmask 1045504
        %v1085 = vrot.slane %v988, 2
        %v1086 = vrot.slane %v989, 2
        %v1087 = vsel %vm1084, %v1085, %v1086
        %v1088 = vrot.slane %v990, 2
        %v1089 = vsel %vm1084, %v1086, %v1088
        %v1090 = vrot.slane %v991, 2
        %v1091 = vrot.slane %v992, 2
        %v1092 = vsel %vm1084, %v1090, %v1091
        %v1093 = vrot.slane %v993, 2
        %v1094 = vsel %vm1084, %v1091, %v1093
        %v1095 = vrot.slane %v994, 2
        %v1096 = vrot.slane %v995, 2
        %v1097 = vsel %vm1084, %v1095, %v1096
        %v1098 = vrot.slane %v996, 2
        %v1099 = vsel %vm1084, %v1096, %v1098
        %v1100 = vrot.slane %v997, 2
        %v1101 = vrot.slane %v998, 2
        %v1102 = vsel %vm1084, %v1100, %v1101
        %v1103 = vrot.slane %v999, 2
        %v1104 = vsel %vm1084, %v1101, %v1103
        %v1105 = vrot.slane %v1000, 2
        %v1106 = vrot.slane %v1001, 2
        %v1107 = vsel %vm1084, %v1105, %v1106
        %v1108 = vrot.slane %v1002, 2
        %v1109 = vsel %vm1084, %v1106, %v1108
        %v1110 = vrot.slane %v1003, 2
        %v1111 = vrot.slane %v1004, 2
        %v1112 = vsel %vm1084, %v1110, %v1111
        %v1113 = vrot.slane %v1005, 2
        %v1114 = vsel %vm1084, %v1111, %v1113
        %v1115 = vrot.slane %v1006, 2
        %v1116 = vrot.slane %v1007, 2
        %v1117 = vsel %vm1084, %v1115, %v1116
        %v1118 = vrot.slane %v1008, 2
        %v1119 = vsel %vm1084, %v1116, %v1118
        %v1120 = vrot.slane %v1009, 2
        %v1121 = vrot.slane %v1010, 2
        %v1122 = vsel %vm1084, %v1120, %v1121
        %v1123 = vrot.slane %v1011, 2
        %v1124 = vsel %vm1084, %v1121, %v1123
        %v1125 = vrot.slane %v1012, 2
        %v1126 = vrot.slane %v1013, 2
        %v1127 = vsel %vm1084, %v1125, %v1126
        %v1128 = vrot.slane %v1014, 2
        %v1129 = vsel %vm1084, %v1126, %v1128
        %v1130 = vrot.slane %v1015, 2
        %v1131 = vrot.slane %v1016, 2
        %v1132 = vsel %vm1084, %v1130, %v1131
        %v1133 = vrot.slane %v1017, 2
        %v1134 = vsel %vm1084, %v1131, %v1133
        %v1135 = vrot.slane %v1018, 2
        %v1136 = vrot.slane %v1019, 2
        %v1137 = vsel %vm1084, %v1135, %v1136
        %v1138 = vrot.slane %v1020, 2
        %v1139 = vsel %vm1084, %v1136, %v1138
        %v1140 = vrot.slane %v1021, 2
        %v1141 = vrot.slane %v1022, 2
        %v1142 = vsel %vm1084, %v1140, %v1141
        %v1143 = vrot.slane %v1023, 2
        %v1144 = vsel %vm1084, %v1141, %v1143
        %v1145 = vrot.slane %v1024, 2
        %v1146 = vrot.slane %v1025, 2
        %v1147 = vsel %vm1084, %v1145, %v1146
        %v1148 = vrot.slane %v1026, 2
        %v1149 = vsel %vm1084, %v1146, %v1148
        %v1150 = vrot.slane %v1027, 2
        %v1151 = vrot.slane %v1028, 2
        %v1152 = vsel %vm1084, %v1150, %v1151
        %v1153 = vrot.slane %v1029, 2
        %v1154 = vsel %vm1084, %v1151, %v1153
        %v1155 = vrot.slane %v1030, 2
        %v1156 = vrot.slane %v1031, 2
        %v1157 = vsel %vm1084, %v1155, %v1156
        %v1158 = vrot.slane %v1032, 2
        %v1159 = vsel %vm1084, %v1156, %v1158
        %v1160 = vrot.slane %v1033, 2
        %v1161 = vrot.slane %v1034, 2
        %v1162 = vsel %vm1084, %v1160, %v1161
        %v1163 = vrot.slane %v1035, 2
        %v1164 = vsel %vm1084, %v1161, %v1163
        %1165 = vrot.lane.b32.xlu0 %v1087, 8
        %v1166 = vpop.permute.xlu0 %1165
        %1167 = vrot.lane.b32.xlu0 %v1089, 8
        %v1168 = vpop.permute.xlu0 %1167
        %1169 = vrot.lane.b32.xlu0 %v1092, 8
        %v1170 = vpop.permute.xlu0 %1169
        %1171 = vrot.lane.b32.xlu0 %v1094, 8
        %v1172 = vpop.permute.xlu0 %1171
        %1173 = vrot.lane.b32.xlu0 %v1097, 8
        %v1174 = vpop.permute.xlu0 %1173
        %1175 = vrot.lane.b32.xlu0 %v1099, 8
        %v1176 = vpop.permute.xlu0 %1175
        %1177 = vrot.lane.b32.xlu0 %v1102, 8
        %v1178 = vpop.permute.xlu0 %1177
        %1179 = vrot.lane.b32.xlu0 %v1104, 8
        %v1180 = vpop.permute.xlu0 %1179
        %1181 = vrot.lane.b32.xlu0 %v1107, 8
        %v1182 = vpop.permute.xlu0 %1181
        %1183 = vrot.lane.b32.xlu0 %v1109, 8
        %v1184 = vpop.permute.xlu0 %1183
        %1185 = vrot.lane.b32.xlu0 %v1112, 8
        %v1186 = vpop.permute.xlu0 %1185
        %1187 = vrot.lane.b32.xlu0 %v1114, 8
        %v1188 = vpop.permute.xlu0 %1187
        %1189 = vrot.lane.b32.xlu0 %v1117, 8
        %v1190 = vpop.permute.xlu0 %1189
        %1191 = vrot.lane.b32.xlu0 %v1119, 8
        %v1192 = vpop.permute.xlu0 %1191
        %1193 = vrot.lane.b32.xlu0 %v1122, 8
        %v1194 = vpop.permute.xlu0 %1193
        %1195 = vrot.lane.b32.xlu0 %v1124, 8
        %v1196 = vpop.permute.xlu0 %1195
        %1197 = vrot.lane.b32.xlu0 %v1127, 8
        %v1198 = vpop.permute.xlu0 %1197
        %1199 = vrot.lane.b32.xlu0 %v1129, 8
        %v1200 = vpop.permute.xlu0 %1199
        %1201 = vrot.lane.b32.xlu0 %v1132, 8
        %v1202 = vpop.permute.xlu0 %1201
        %1203 = vrot.lane.b32.xlu0 %v1134, 8
        %v1204 = vpop.permute.xlu0 %1203
        %1205 = vrot.lane.b32.xlu0 %v1137, 8
        %v1206 = vpop.permute.xlu0 %1205
        %1207 = vrot.lane.b32.xlu0 %v1139, 8
        %v1208 = vpop.permute.xlu0 %1207
        %1209 = vrot.lane.b32.xlu0 %v1142, 8
        %v1210 = vpop.permute.xlu0 %1209
        %1211 = vrot.lane.b32.xlu0 %v1144, 8
        %v1212 = vpop.permute.xlu0 %1211
        %1213 = vrot.lane.b32.xlu0 %v1147, 8
        %v1214 = vpop.permute.xlu0 %1213
        %1215 = vrot.lane.b32.xlu0 %v1149, 8
        %v1216 = vpop.permute.xlu0 %1215
        %1217 = vrot.lane.b32.xlu0 %v1152, 8
        %v1218 = vpop.permute.xlu0 %1217
        %1219 = vrot.lane.b32.xlu0 %v1154, 8
        %v1220 = vpop.permute.xlu0 %1219
        %1221 = vrot.lane.b32.xlu0 %v1157, 8
        %v1222 = vpop.permute.xlu0 %1221
        %1223 = vrot.lane.b32.xlu0 %v1159, 8
        %v1224 = vpop.permute.xlu0 %1223
        %1225 = vrot.lane.b32.xlu0 %v1162, 8
        %v1226 = vpop.permute.xlu0 %1225
        %1227 = vrot.lane.b32.xlu0 %v1164, 8
        %v1228 = vpop.permute.xlu0 %1227
        %vm1261 = vcmask 97344
        %1262 = vst.msk [vmem:[#allocation2] sm:$0xff] %vm1261, %v1166
        %1263 = vst.msk [vmem:[#allocation2 + $0x8] sm:$0xff] %vm1261, %v1168
        %1264 = vst.msk [vmem:[#allocation2 + $0x10] sm:$0xff] %vm1261, %v1170
        %1265 = vst.msk [vmem:[#allocation2 + $0x18] sm:$0xff] %vm1261, %v1172
        %1266 = vst.msk [vmem:[#allocation2 + $0x20] sm:$0xff] %vm1261, %v1174
        %1267 = vst.msk [vmem:[#allocation2 + $0x28] sm:$0xff] %vm1261, %v1176
        %1268 = vst.msk [vmem:[#allocation2 + $0x30] sm:$0xff] %vm1261, %v1178
        %1269 = vst.msk [vmem:[#allocation2 + $0x38] sm:$0xff] %vm1261, %v1180
        %1270 = vst.msk [vmem:[#allocation2 + $0x40] sm:$0xff] %vm1261, %v1182
        %1271 = vst.msk [vmem:[#allocation2 + $0x48] sm:$0xff] %vm1261, %v1184
        %1272 = vst.msk [vmem:[#allocation2 + $0x50] sm:$0xff] %vm1261, %v1186
        %1273 = vst.msk [vmem:[#allocation2 + $0x58] sm:$0xff] %vm1261, %v1188
        %1274 = vst.msk [vmem:[#allocation2 + $0x60] sm:$0xff] %vm1261, %v1190
        %1275 = vst.msk [vmem:[#allocation2 + $0x68] sm:$0xff] %vm1261, %v1192
        %1276 = vst.msk [vmem:[#allocation2 + $0x70] sm:$0xff] %vm1261, %v1194
        %1277 = vst.msk [vmem:[#allocation2 + $0x78] sm:$0xff] %vm1261, %v1196
        %1278 = vst.msk [vmem:[#allocation2 + $0x80] sm:$0xff] %vm1261, %v1198
        %1279 = vst.msk [vmem:[#allocation2 + $0x88] sm:$0xff] %vm1261, %v1200
        %1280 = vst.msk [vmem:[#allocation2 + $0x90] sm:$0xff] %vm1261, %v1202
        %1281 = vst.msk [vmem:[#allocation2 + $0x98] sm:$0xff] %vm1261, %v1204
        %1282 = vst.msk [vmem:[#allocation2 + $0xa0] sm:$0xff] %vm1261, %v1206
        %1283 = vst.msk [vmem:[#allocation2 + $0xa8] sm:$0xff] %vm1261, %v1208
        %1284 = vst.msk [vmem:[#allocation2 + $0xb0] sm:$0xff] %vm1261, %v1210
        %1285 = vst.msk [vmem:[#allocation2 + $0xb8] sm:$0xff] %vm1261, %v1212
        %1286 = vst.msk [vmem:[#allocation2 + $0xc0] sm:$0xff] %vm1261, %v1214
        %1287 = vst.msk [vmem:[#allocation2 + $0xc8] sm:$0xff] %vm1261, %v1216
        %1288 = vst.msk [vmem:[#allocation2 + $0xd0] sm:$0xff] %vm1261, %v1218
        %1289 = vst.msk [vmem:[#allocation2 + $0xd8] sm:$0xff] %vm1261, %v1220
        %1290 = vst.msk [vmem:[#allocation2 + $0xe0] sm:$0xff] %vm1261, %v1222
        %1291 = vst.msk [vmem:[#allocation2 + $0xe8] sm:$0xff] %vm1261, %v1224
        %1292 = vst.msk [vmem:[#allocation2 + $0xf0] sm:$0xff] %vm1261, %v1226
        %1293 = vst.msk [vmem:[#allocation2 + $0xf8] sm:$0xff] %vm1261, %v1228
        %s1294 = sadd.s32 %s324, 1
        %s1295 = smul.u32 %s1294, 3
        %s1296 = smul.addr %s1295, 2
        %s1297 = scalar_lea.vmem %s302, %s1296
        %v1298 = vld [vmem:[%s1297] sm:$0x3]
        %v1299 = vld [vmem:[%s1297 + $0x2] sm:$0x3]
        %v1300 = vld [vmem:[%s1297 + $0x6] sm:$0x3]
        %v1301 = vld [vmem:[%s1297 + $0x8] sm:$0x3]
        %v1302 = vld [vmem:[%s1297 + $0xc] sm:$0x3]
        %v1303 = vld [vmem:[%s1297 + $0xe] sm:$0x3]
        %v1304 = vld [vmem:[%s1297 + $0x12] sm:$0x3]
        %v1305 = vld [vmem:[%s1297 + $0x14] sm:$0x3]
        %v1306 = vld [vmem:[%s1297 + $0x18] sm:$0x3]
        %v1307 = vld [vmem:[%s1297 + $0x1a] sm:$0x3]
        %v1308 = vld [vmem:[%s1297 + $0x1e] sm:$0x3]
        %v1309 = vld [vmem:[%s1297 + $0x20] sm:$0x3]
        %v1310 = vld [vmem:[%s1297 + $0x24] sm:$0x3]
        %v1311 = vld [vmem:[%s1297 + $0x26] sm:$0x3]
        %v1312 = vld [vmem:[%s1297 + $0x2a] sm:$0x3]
        %v1313 = vld [vmem:[%s1297 + $0x2c] sm:$0x3]
        %v1314 = vld [vmem:[%s1297 + $0x30] sm:$0x3]
        %v1315 = vld [vmem:[%s1297 + $0x32] sm:$0x3]
        %v1316 = vld [vmem:[%s1297 + $0x36] sm:$0x3]
        %v1317 = vld [vmem:[%s1297 + $0x38] sm:$0x3]
        %v1318 = vld [vmem:[%s1297 + $0x3c] sm:$0x3]
        %v1319 = vld [vmem:[%s1297 + $0x3e] sm:$0x3]
        %v1320 = vld [vmem:[%s1297 + $0x42] sm:$0x3]
        %v1321 = vld [vmem:[%s1297 + $0x44] sm:$0x3]
        %v1322 = vld [vmem:[%s1297 + $0x48] sm:$0x3]
        %v1323 = vld [vmem:[%s1297 + $0x4a] sm:$0x3]
        %v1324 = vld [vmem:[%s1297 + $0x4e] sm:$0x3]
        %v1325 = vld [vmem:[%s1297 + $0x50] sm:$0x3]
        %v1326 = vld [vmem:[%s1297 + $0x54] sm:$0x3]
        %v1327 = vld [vmem:[%s1297 + $0x56] sm:$0x3]
        %v1328 = vld [vmem:[%s1297 + $0x5a] sm:$0x3]
        %v1329 = vld [vmem:[%s1297 + $0x5c] sm:$0x3]
        %v1330 = vunpack.c.0.s8 %v1298
        %v1331 = vunpack.c.0.s8 %v1299
        %v1332 = vunpack.c.0.s8 %v1300
        %v1333 = vunpack.c.0.s8 %v1301
        %v1334 = vunpack.c.0.s8 %v1302
        %v1335 = vunpack.c.0.s8 %v1303
        %v1336 = vunpack.c.0.s8 %v1304
        %v1337 = vunpack.c.0.s8 %v1305
        %v1338 = vunpack.c.0.s8 %v1306
        %v1339 = vunpack.c.0.s8 %v1307
        %v1340 = vunpack.c.0.s8 %v1308
        %v1341 = vunpack.c.0.s8 %v1309
        %v1342 = vunpack.c.0.s8 %v1310
        %v1343 = vunpack.c.0.s8 %v1311
        %v1344 = vunpack.c.0.s8 %v1312
        %v1345 = vunpack.c.0.s8 %v1313
        %v1346 = vunpack.c.0.s8 %v1314
        %v1347 = vunpack.c.0.s8 %v1315
        %v1348 = vunpack.c.0.s8 %v1316
        %v1349 = vunpack.c.0.s8 %v1317
        %v1350 = vunpack.c.0.s8 %v1318
        %v1351 = vunpack.c.0.s8 %v1319
        %v1352 = vunpack.c.0.s8 %v1320
        %v1353 = vunpack.c.0.s8 %v1321
        %v1354 = vunpack.c.0.s8 %v1322
        %v1355 = vunpack.c.0.s8 %v1323
        %v1356 = vunpack.c.0.s8 %v1324
        %v1357 = vunpack.c.0.s8 %v1325
        %v1358 = vunpack.c.0.s8 %v1326
        %v1359 = vunpack.c.0.s8 %v1327
        %v1360 = vunpack.c.0.s8 %v1328
        %v1361 = vunpack.c.0.s8 %v1329
        %v1362 = vcvt.s32.f32 %v1330
        %v1363 = vcvt.s32.f32 %v1331
        %v1364 = vcvt.s32.f32 %v1332
        %v1365 = vcvt.s32.f32 %v1333
        %v1366 = vcvt.s32.f32 %v1334
        %v1367 = vcvt.s32.f32 %v1335
        %v1368 = vcvt.s32.f32 %v1336
        %v1369 = vcvt.s32.f32 %v1337
        %v1370 = vcvt.s32.f32 %v1338
        %v1371 = vcvt.s32.f32 %v1339
        %v1372 = vcvt.s32.f32 %v1340
        %v1373 = vcvt.s32.f32 %v1341
        %v1374 = vcvt.s32.f32 %v1342
        %v1375 = vcvt.s32.f32 %v1343
        %v1376 = vcvt.s32.f32 %v1344
        %v1377 = vcvt.s32.f32 %v1345
        %v1378 = vcvt.s32.f32 %v1346
        %v1379 = vcvt.s32.f32 %v1347
        %v1380 = vcvt.s32.f32 %v1348
        %v1381 = vcvt.s32.f32 %v1349
        %v1382 = vcvt.s32.f32 %v1350
        %v1383 = vcvt.s32.f32 %v1351
        %v1384 = vcvt.s32.f32 %v1352
        %v1385 = vcvt.s32.f32 %v1353
        %v1386 = vcvt.s32.f32 %v1354
        %v1387 = vcvt.s32.f32 %v1355
        %v1388 = vcvt.s32.f32 %v1356
        %v1389 = vcvt.s32.f32 %v1357
        %v1390 = vcvt.s32.f32 %v1358
        %v1391 = vcvt.s32.f32 %v1359
        %v1392 = vcvt.s32.f32 %v1360
        %v1393 = vcvt.s32.f32 %v1361
        %1426 = vrot.lane.b32.xlu0 %v1362, 12
        %v1427 = vpop.permute.xlu0 %1426
        %1428 = vrot.lane.b32.xlu0 %v1363, 12
        %v1429 = vpop.permute.xlu0 %1428
        %1430 = vrot.lane.b32.xlu0 %v1364, 12
        %v1431 = vpop.permute.xlu0 %1430
        %1432 = vrot.lane.b32.xlu0 %v1365, 12
        %v1433 = vpop.permute.xlu0 %1432
        %1434 = vrot.lane.b32.xlu0 %v1366, 12
        %v1435 = vpop.permute.xlu0 %1434
        %1436 = vrot.lane.b32.xlu0 %v1367, 12
        %v1437 = vpop.permute.xlu0 %1436
        %1438 = vrot.lane.b32.xlu0 %v1368, 12
        %v1439 = vpop.permute.xlu0 %1438
        %1440 = vrot.lane.b32.xlu0 %v1369, 12
        %v1441 = vpop.permute.xlu0 %1440
        %1442 = vrot.lane.b32.xlu0 %v1370, 12
        %v1443 = vpop.permute.xlu0 %1442
        %1444 = vrot.lane.b32.xlu0 %v1371, 12
        %v1445 = vpop.permute.xlu0 %1444
        %1446 = vrot.lane.b32.xlu0 %v1372, 12
        %v1447 = vpop.permute.xlu0 %1446
        %1448 = vrot.lane.b32.xlu0 %v1373, 12
        %v1449 = vpop.permute.xlu0 %1448
        %1450 = vrot.lane.b32.xlu0 %v1374, 12
        %v1451 = vpop.permute.xlu0 %1450
        %1452 = vrot.lane.b32.xlu0 %v1375, 12
        %v1453 = vpop.permute.xlu0 %1452
        %1454 = vrot.lane.b32.xlu0 %v1376, 12
        %v1455 = vpop.permute.xlu0 %1454
        %1456 = vrot.lane.b32.xlu0 %v1377, 12
        %v1457 = vpop.permute.xlu0 %1456
        %1458 = vrot.lane.b32.xlu0 %v1378, 12
        %v1459 = vpop.permute.xlu0 %1458
        %1460 = vrot.lane.b32.xlu0 %v1379, 12
        %v1461 = vpop.permute.xlu0 %1460
        %1462 = vrot.lane.b32.xlu0 %v1380, 12
        %v1463 = vpop.permute.xlu0 %1462
        %1464 = vrot.lane.b32.xlu0 %v1381, 12
        %v1465 = vpop.permute.xlu0 %1464
        %1466 = vrot.lane.b32.xlu0 %v1382, 12
        %v1467 = vpop.permute.xlu0 %1466
        %1468 = vrot.lane.b32.xlu0 %v1383, 12
        %v1469 = vpop.permute.xlu0 %1468
        %1470 = vrot.lane.b32.xlu0 %v1384, 12
        %v1471 = vpop.permute.xlu0 %1470
        %1472 = vrot.lane.b32.xlu0 %v1385, 12
        %v1473 = vpop.permute.xlu0 %1472
        %1474 = vrot.lane.b32.xlu0 %v1386, 12
        %v1475 = vpop.permute.xlu0 %1474
        %1476 = vrot.lane.b32.xlu0 %v1387, 12
        %v1477 = vpop.permute.xlu0 %1476
        %1478 = vrot.lane.b32.xlu0 %v1388, 12
        %v1479 = vpop.permute.xlu0 %1478
        %1480 = vrot.lane.b32.xlu0 %v1389, 12
        %v1481 = vpop.permute.xlu0 %1480
        %1482 = vrot.lane.b32.xlu0 %v1390, 12
        %v1483 = vpop.permute.xlu0 %1482
        %1484 = vrot.lane.b32.xlu0 %v1391, 12
        %v1485 = vpop.permute.xlu0 %1484
        %1486 = vrot.lane.b32.xlu0 %v1392, 12
        %v1487 = vpop.permute.xlu0 %1486
        %1488 = vrot.lane.b32.xlu0 %v1393, 12
        %v1489 = vpop.permute.xlu0 %1488
        %vm1522 = vcmask 130144
        %1523 = vst.msk [vmem:[#allocation2] sm:$0xff] %vm1522, %v1427
        %1524 = vst.msk [vmem:[#allocation2 + $0x8] sm:$0xff] %vm1522, %v1429
        %1525 = vst.msk [vmem:[#allocation2 + $0x10] sm:$0xff] %vm1522, %v1431
        %1526 = vst.msk [vmem:[#allocation2 + $0x18] sm:$0xff] %vm1522, %v1433
        %1527 = vst.msk [vmem:[#allocation2 + $0x20] sm:$0xff] %vm1522, %v1435
        %1528 = vst.msk [vmem:[#allocation2 + $0x28] sm:$0xff] %vm1522, %v1437
        %1529 = vst.msk [vmem:[#allocation2 + $0x30] sm:$0xff] %vm1522, %v1439
        %1530 = vst.msk [vmem:[#allocation2 + $0x38] sm:$0xff] %vm1522, %v1441
        %1531 = vst.msk [vmem:[#allocation2 + $0x40] sm:$0xff] %vm1522, %v1443
        %1532 = vst.msk [vmem:[#allocation2 + $0x48] sm:$0xff] %vm1522, %v1445
        %1533 = vst.msk [vmem:[#allocation2 + $0x50] sm:$0xff] %vm1522, %v1447
        %1534 = vst.msk [vmem:[#allocation2 + $0x58] sm:$0xff] %vm1522, %v1449
        %1535 = vst.msk [vmem:[#allocation2 + $0x60] sm:$0xff] %vm1522, %v1451
        %1536 = vst.msk [vmem:[#allocation2 + $0x68] sm:$0xff] %vm1522, %v1453
        %1537 = vst.msk [vmem:[#allocation2 + $0x70] sm:$0xff] %vm1522, %v1455
        %1538 = vst.msk [vmem:[#allocation2 + $0x78] sm:$0xff] %vm1522, %v1457
        %1539 = vst.msk [vmem:[#allocation2 + $0x80] sm:$0xff] %vm1522, %v1459
        %1540 = vst.msk [vmem:[#allocation2 + $0x88] sm:$0xff] %vm1522, %v1461
        %1541 = vst.msk [vmem:[#allocation2 + $0x90] sm:$0xff] %vm1522, %v1463
        %1542 = vst.msk [vmem:[#allocation2 + $0x98] sm:$0xff] %vm1522, %v1465
        %1543 = vst.msk [vmem:[#allocation2 + $0xa0] sm:$0xff] %vm1522, %v1467
        %1544 = vst.msk [vmem:[#allocation2 + $0xa8] sm:$0xff] %vm1522, %v1469
        %1545 = vst.msk [vmem:[#allocation2 + $0xb0] sm:$0xff] %vm1522, %v1471
        %1546 = vst.msk [vmem:[#allocation2 + $0xb8] sm:$0xff] %vm1522, %v1473
        %1547 = vst.msk [vmem:[#allocation2 + $0xc0] sm:$0xff] %vm1522, %v1475
        %1548 = vst.msk [vmem:[#allocation2 + $0xc8] sm:$0xff] %vm1522, %v1477
        %1549 = vst.msk [vmem:[#allocation2 + $0xd0] sm:$0xff] %vm1522, %v1479
        %1550 = vst.msk [vmem:[#allocation2 + $0xd8] sm:$0xff] %vm1522, %v1481
        %1551 = vst.msk [vmem:[#allocation2 + $0xe0] sm:$0xff] %vm1522, %v1483
        %1552 = vst.msk [vmem:[#allocation2 + $0xe8] sm:$0xff] %vm1522, %v1485
        %1553 = vst.msk [vmem:[#allocation2 + $0xf0] sm:$0xff] %vm1522, %v1487
        %1554 = vst.msk [vmem:[#allocation2 + $0xf8] sm:$0xff] %vm1522, %v1489
        %v1555 = vld [vmem:[%s1297] sm:$0x3]
        %v1556 = vld [vmem:[%s1297 + $0x2] sm:$0x3]
        %v1557 = vld [vmem:[%s1297 + $0x4] sm:$0x1]
        %v1558 = vld [vmem:[%s1297 + $0x6] sm:$0x3]
        %v1559 = vld [vmem:[%s1297 + $0x8] sm:$0x3]
        %v1560 = vld [vmem:[%s1297 + $0xa] sm:$0x1]
        %v1561 = vld [vmem:[%s1297 + $0xc] sm:$0x3]
        %v1562 = vld [vmem:[%s1297 + $0xe] sm:$0x3]
        %v1563 = vld [vmem:[%s1297 + $0x10] sm:$0x1]
        %v1564 = vld [vmem:[%s1297 + $0x12] sm:$0x3]
        %v1565 = vld [vmem:[%s1297 + $0x14] sm:$0x3]
        %v1566 = vld [vmem:[%s1297 + $0x16] sm:$0x1]
        %v1567 = vld [vmem:[%s1297 + $0x18] sm:$0x3]
        %v1568 = vld [vmem:[%s1297 + $0x1a] sm:$0x3]
        %v1569 = vld [vmem:[%s1297 + $0x1c] sm:$0x1]
        %v1570 = vld [vmem:[%s1297 + $0x1e] sm:$0x3]
        %v1571 = vld [vmem:[%s1297 + $0x20] sm:$0x3]
        %v1572 = vld [vmem:[%s1297 + $0x22] sm:$0x1]
        %v1573 = vld [vmem:[%s1297 + $0x24] sm:$0x3]
        %v1574 = vld [vmem:[%s1297 + $0x26] sm:$0x3]
        %v1575 = vld [vmem:[%s1297 + $0x28] sm:$0x1]
        %v1576 = vld [vmem:[%s1297 + $0x2a] sm:$0x3]
        %v1577 = vld [vmem:[%s1297 + $0x2c] sm:$0x3]
        %v1578 = vld [vmem:[%s1297 + $0x2e] sm:$0x1]
        %v1579 = vld [vmem:[%s1297 + $0x30] sm:$0x3]
        %v1580 = vld [vmem:[%s1297 + $0x32] sm:$0x3]
        %v1581 = vld [vmem:[%s1297 + $0x34] sm:$0x1]
        %v1582 = vld [vmem:[%s1297 + $0x36] sm:$0x3]
        %v1583 = vld [vmem:[%s1297 + $0x38] sm:$0x3]
        %v1584 = vld [vmem:[%s1297 + $0x3a] sm:$0x1]
        %v1585 = vld [vmem:[%s1297 + $0x3c] sm:$0x3]
        %v1586 = vld [vmem:[%s1297 + $0x3e] sm:$0x3]
        %v1587 = vld [vmem:[%s1297 + $0x40] sm:$0x1]
        %v1588 = vld [vmem:[%s1297 + $0x42] sm:$0x3]
        %v1589 = vld [vmem:[%s1297 + $0x44] sm:$0x3]
        %v1590 = vld [vmem:[%s1297 + $0x46] sm:$0x1]
        %v1591 = vld [vmem:[%s1297 + $0x48] sm:$0x3]
        %v1592 = vld [vmem:[%s1297 + $0x4a] sm:$0x3]
        %v1593 = vld [vmem:[%s1297 + $0x4c] sm:$0x1]
        %v1594 = vld [vmem:[%s1297 + $0x4e] sm:$0x3]
        %v1595 = vld [vmem:[%s1297 + $0x50] sm:$0x3]
        %v1596 = vld [vmem:[%s1297 + $0x52] sm:$0x1]
        %v1597 = vld [vmem:[%s1297 + $0x54] sm:$0x3]
        %v1598 = vld [vmem:[%s1297 + $0x56] sm:$0x3]
        %v1599 = vld [vmem:[%s1297 + $0x58] sm:$0x1]
        %v1600 = vld [vmem:[%s1297 + $0x5a] sm:$0x3]
        %v1601 = vld [vmem:[%s1297 + $0x5c] sm:$0x3]
        %v1602 = vld [vmem:[%s1297 + $0x5e] sm:$0x1]
        %v1603 = vunpack.c.0.s8 %v1555
        %v1604 = vunpack.c.0.s8 %v1556
        %v1605 = vunpack.c.0.s8 %v1557
        %v1606 = vunpack.c.0.s8 %v1558
        %v1607 = vunpack.c.0.s8 %v1559
        %v1608 = vunpack.c.0.s8 %v1560
        %v1609 = vunpack.c.0.s8 %v1561
        %v1610 = vunpack.c.0.s8 %v1562
        %v1611 = vunpack.c.0.s8 %v1563
        %v1612 = vunpack.c.0.s8 %v1564
        %v1613 = vunpack.c.0.s8 %v1565
        %v1614 = vunpack.c.0.s8 %v1566
        %v1615 = vunpack.c.0.s8 %v1567
        %v1616 = vunpack.c.0.s8 %v1568
        %v1617 = vunpack.c.0.s8 %v1569
        %v1618 = vunpack.c.0.s8 %v1570
        %v1619 = vunpack.c.0.s8 %v1571
        %v1620 = vunpack.c.0.s8 %v1572
        %v1621 = vunpack.c.0.s8 %v1573
        %v1622 = vunpack.c.0.s8 %v1574
        %v1623 = vunpack.c.0.s8 %v1575
        %v1624 = vunpack.c.0.s8 %v1576
        %v1625 = vunpack.c.0.s8 %v1577
        %v1626 = vunpack.c.0.s8 %v1578
        %v1627 = vunpack.c.0.s8 %v1579
        %v1628 = vunpack.c.0.s8 %v1580
        %v1629 = vunpack.c.0.s8 %v1581
        %v1630 = vunpack.c.0.s8 %v1582
        %v1631 = vunpack.c.0.s8 %v1583
        %v1632 = vunpack.c.0.s8 %v1584
        %v1633 = vunpack.c.0.s8 %v1585
        %v1634 = vunpack.c.0.s8 %v1586
        %v1635 = vunpack.c.0.s8 %v1587
        %v1636 = vunpack.c.0.s8 %v1588
        %v1637 = vunpack.c.0.s8 %v1589
        %v1638 = vunpack.c.0.s8 %v1590
        %v1639 = vunpack.c.0.s8 %v1591
        %v1640 = vunpack.c.0.s8 %v1592
        %v1641 = vunpack.c.0.s8 %v1593
        %v1642 = vunpack.c.0.s8 %v1594
        %v1643 = vunpack.c.0.s8 %v1595
        %v1644 = vunpack.c.0.s8 %v1596
        %v1645 = vunpack.c.0.s8 %v1597
        %v1646 = vunpack.c.0.s8 %v1598
        %v1647 = vunpack.c.0.s8 %v1599
        %v1648 = vunpack.c.0.s8 %v1600
        %v1649 = vunpack.c.0.s8 %v1601
        %v1650 = vunpack.c.0.s8 %v1602
        %v1651 = vcvt.s32.f32 %v1603
        %v1652 = vcvt.s32.f32 %v1604
        %v1653 = vcvt.s32.f32 %v1605
        %v1654 = vcvt.s32.f32 %v1606
        %v1655 = vcvt.s32.f32 %v1607
        %v1656 = vcvt.s32.f32 %v1608
        %v1657 = vcvt.s32.f32 %v1609
        %v1658 = vcvt.s32.f32 %v1610
        %v1659 = vcvt.s32.f32 %v1611
        %v1660 = vcvt.s32.f32 %v1612
        %v1661 = vcvt.s32.f32 %v1613
        %v1662 = vcvt.s32.f32 %v1614
        %v1663 = vcvt.s32.f32 %v1615
        %v1664 = vcvt.s32.f32 %v1616
        %v1665 = vcvt.s32.f32 %v1617
        %v1666 = vcvt.s32.f32 %v1618
        %v1667 = vcvt.s32.f32 %v1619
        %v1668 = vcvt.s32.f32 %v1620
        %v1669 = vcvt.s32.f32 %v1621
        %v1670 = vcvt.s32.f32 %v1622
        %v1671 = vcvt.s32.f32 %v1623
        %v1672 = vcvt.s32.f32 %v1624
        %v1673 = vcvt.s32.f32 %v1625
        %v1674 = vcvt.s32.f32 %v1626
        %v1675 = vcvt.s32.f32 %v1627
        %v1676 = vcvt.s32.f32 %v1628
        %v1677 = vcvt.s32.f32 %v1629
        %v1678 = vcvt.s32.f32 %v1630
        %v1679 = vcvt.s32.f32 %v1631
        %v1680 = vcvt.s32.f32 %v1632
        %v1681 = vcvt.s32.f32 %v1633
        %v1682 = vcvt.s32.f32 %v1634
        %v1683 = vcvt.s32.f32 %v1635
        %v1684 = vcvt.s32.f32 %v1636
        %v1685 = vcvt.s32.f32 %v1637
        %v1686 = vcvt.s32.f32 %v1638
        %v1687 = vcvt.s32.f32 %v1639
        %v1688 = vcvt.s32.f32 %v1640
        %v1689 = vcvt.s32.f32 %v1641
        %v1690 = vcvt.s32.f32 %v1642
        %v1691 = vcvt.s32.f32 %v1643
        %v1692 = vcvt.s32.f32 %v1644
        %v1693 = vcvt.s32.f32 %v1645
        %v1694 = vcvt.s32.f32 %v1646
        %v1695 = vcvt.s32.f32 %v1647
        %v1696 = vcvt.s32.f32 %v1648
        %v1697 = vcvt.s32.f32 %v1649
        %v1698 = vcvt.s32.f32 %v1650
        %v1747 = vrot.slane %v1651, 1
        %v1748 = vrot.slane %v1652, 1
        %v1749 = vsel %vm682, %v1747, %v1748
        %v1750 = vrot.slane %v1653, 1
        %v1751 = vsel %vm682, %v1748, %v1750
        %v1752 = vrot.slane %v1654, 1
        %v1753 = vrot.slane %v1655, 1
        %v1754 = vsel %vm682, %v1752, %v1753
        %v1755 = vrot.slane %v1656, 1
        %v1756 = vsel %vm682, %v1753, %v1755
        %v1757 = vrot.slane %v1657, 1
        %v1758 = vrot.slane %v1658, 1
        %v1759 = vsel %vm682, %v1757, %v1758
        %v1760 = vrot.slane %v1659, 1
        %v1761 = vsel %vm682, %v1758, %v1760
        %v1762 = vrot.slane %v1660, 1
        %v1763 = vrot.slane %v1661, 1
        %v1764 = vsel %vm682, %v1762, %v1763
        %v1765 = vrot.slane %v1662, 1
        %v1766 = vsel %vm682, %v1763, %v1765
        %v1767 = vrot.slane %v1663, 1
        %v1768 = vrot.slane %v1664, 1
        %v1769 = vsel %vm682, %v1767, %v1768
        %v1770 = vrot.slane %v1665, 1
        %v1771 = vsel %vm682, %v1768, %v1770
        %v1772 = vrot.slane %v1666, 1
        %v1773 = vrot.slane %v1667, 1
        %v1774 = vsel %vm682, %v1772, %v1773
        %v1775 = vrot.slane %v1668, 1
        %v1776 = vsel %vm682, %v1773, %v1775
        %v1777 = vrot.slane %v1669, 1
        %v1778 = vrot.slane %v1670, 1
        %v1779 = vsel %vm682, %v1777, %v1778
        %v1780 = vrot.slane %v1671, 1
        %v1781 = vsel %vm682, %v1778, %v1780
        %v1782 = vrot.slane %v1672, 1
        %v1783 = vrot.slane %v1673, 1
        %v1784 = vsel %vm682, %v1782, %v1783
        %v1785 = vrot.slane %v1674, 1
        %v1786 = vsel %vm682, %v1783, %v1785
        %v1787 = vrot.slane %v1675, 1
        %v1788 = vrot.slane %v1676, 1
        %v1789 = vsel %vm682, %v1787, %v1788
        %v1790 = vrot.slane %v1677, 1
        %v1791 = vsel %vm682, %v1788, %v1790
        %v1792 = vrot.slane %v1678, 1
        %v1793 = vrot.slane %v1679, 1
        %v1794 = vsel %vm682, %v1792, %v1793
        %v1795 = vrot.slane %v1680, 1
        %v1796 = vsel %vm682, %v1793, %v1795
        %v1797 = vrot.slane %v1681, 1
        %v1798 = vrot.slane %v1682, 1
        %v1799 = vsel %vm682, %v1797, %v1798
        %v1800 = vrot.slane %v1683, 1
        %v1801 = vsel %vm682, %v1798, %v1800
        %v1802 = vrot.slane %v1684, 1
        %v1803 = vrot.slane %v1685, 1
        %v1804 = vsel %vm682, %v1802, %v1803
        %v1805 = vrot.slane %v1686, 1
        %v1806 = vsel %vm682, %v1803, %v1805
        %v1807 = vrot.slane %v1687, 1
        %v1808 = vrot.slane %v1688, 1
        %v1809 = vsel %vm682, %v1807, %v1808
        %v1810 = vrot.slane %v1689, 1
        %v1811 = vsel %vm682, %v1808, %v1810
        %v1812 = vrot.slane %v1690, 1
        %v1813 = vrot.slane %v1691, 1
        %v1814 = vsel %vm682, %v1812, %v1813
        %v1815 = vrot.slane %v1692, 1
        %v1816 = vsel %vm682, %v1813, %v1815
        %v1817 = vrot.slane %v1693, 1
        %v1818 = vrot.slane %v1694, 1
        %v1819 = vsel %vm682, %v1817, %v1818
        %v1820 = vrot.slane %v1695, 1
        %v1821 = vsel %vm682, %v1818, %v1820
        %v1822 = vrot.slane %v1696, 1
        %v1823 = vrot.slane %v1697, 1
        %v1824 = vsel %vm682, %v1822, %v1823
        %v1825 = vrot.slane %v1698, 1
        %v1826 = vsel %vm682, %v1823, %v1825
        %1827 = vrot.lane.b32.xlu0 %v1749, 16
        %v1828 = vpop.permute.xlu0 %1827
        %1829 = vrot.lane.b32.xlu0 %v1751, 16
        %v1830 = vpop.permute.xlu0 %1829
        %1831 = vrot.lane.b32.xlu0 %v1754, 16
        %v1832 = vpop.permute.xlu0 %1831
        %1833 = vrot.lane.b32.xlu0 %v1756, 16
        %v1834 = vpop.permute.xlu0 %1833
        %1835 = vrot.lane.b32.xlu0 %v1759, 16
        %v1836 = vpop.permute.xlu0 %1835
        %1837 = vrot.lane.b32.xlu0 %v1761, 16
        %v1838 = vpop.permute.xlu0 %1837
        %1839 = vrot.lane.b32.xlu0 %v1764, 16
        %v1840 = vpop.permute.xlu0 %1839
        %1841 = vrot.lane.b32.xlu0 %v1766, 16
        %v1842 = vpop.permute.xlu0 %1841
        %1843 = vrot.lane.b32.xlu0 %v1769, 16
        %v1844 = vpop.permute.xlu0 %1843
        %1845 = vrot.lane.b32.xlu0 %v1771, 16
        %v1846 = vpop.permute.xlu0 %1845
        %1847 = vrot.lane.b32.xlu0 %v1774, 16
        %v1848 = vpop.permute.xlu0 %1847
        %1849 = vrot.lane.b32.xlu0 %v1776, 16
        %v1850 = vpop.permute.xlu0 %1849
        %1851 = vrot.lane.b32.xlu0 %v1779, 16
        %v1852 = vpop.permute.xlu0 %1851
        %1853 = vrot.lane.b32.xlu0 %v1781, 16
        %v1854 = vpop.permute.xlu0 %1853
        %1855 = vrot.lane.b32.xlu0 %v1784, 16
        %v1856 = vpop.permute.xlu0 %1855
        %1857 = vrot.lane.b32.xlu0 %v1786, 16
        %v1858 = vpop.permute.xlu0 %1857
        %1859 = vrot.lane.b32.xlu0 %v1789, 16
        %v1860 = vpop.permute.xlu0 %1859
        %1861 = vrot.lane.b32.xlu0 %v1791, 16
        %v1862 = vpop.permute.xlu0 %1861
        %1863 = vrot.lane.b32.xlu0 %v1794, 16
        %v1864 = vpop.permute.xlu0 %1863
        %1865 = vrot.lane.b32.xlu0 %v1796, 16
        %v1866 = vpop.permute.xlu0 %1865
        %1867 = vrot.lane.b32.xlu0 %v1799, 16
        %v1868 = vpop.permute.xlu0 %1867
        %1869 = vrot.lane.b32.xlu0 %v1801, 16
        %v1870 = vpop.permute.xlu0 %1869
        %1871 = vrot.lane.b32.xlu0 %v1804, 16
        %v1872 = vpop.permute.xlu0 %1871
        %1873 = vrot.lane.b32.xlu0 %v1806, 16
        %v1874 = vpop.permute.xlu0 %1873
        %1875 = vrot.lane.b32.xlu0 %v1809, 16
        %v1876 = vpop.permute.xlu0 %1875
        %1877 = vrot.lane.b32.xlu0 %v1811, 16
        %v1878 = vpop.permute.xlu0 %1877
        %1879 = vrot.lane.b32.xlu0 %v1814, 16
        %v1880 = vpop.permute.xlu0 %1879
        %1881 = vrot.lane.b32.xlu0 %v1816, 16
        %v1882 = vpop.permute.xlu0 %1881
        %1883 = vrot.lane.b32.xlu0 %v1819, 16
        %v1884 = vpop.permute.xlu0 %1883
        %1885 = vrot.lane.b32.xlu0 %v1821, 16
        %v1886 = vpop.permute.xlu0 %1885
        %1887 = vrot.lane.b32.xlu0 %v1824, 16
        %v1888 = vpop.permute.xlu0 %1887
        %1889 = vrot.lane.b32.xlu0 %v1826, 16
        %v1890 = vpop.permute.xlu0 %1889
        %vm1923 = vcmask 162944
        %1924 = vst.msk [vmem:[#allocation2] sm:$0xff] %vm1923, %v1828
        %1925 = vst.msk [vmem:[#allocation2 + $0x8] sm:$0xff] %vm1923, %v1830
        %1926 = vst.msk [vmem:[#allocation2 + $0x10] sm:$0xff] %vm1923, %v1832
        %1927 = vst.msk [vmem:[#allocation2 + $0x18] sm:$0xff] %vm1923, %v1834
        %1928 = vst.msk [vmem:[#allocation2 + $0x20] sm:$0xff] %vm1923, %v1836
        %1929 = vst.msk [vmem:[#allocation2 + $0x28] sm:$0xff] %vm1923, %v1838
        %1930 = vst.msk [vmem:[#allocation2 + $0x30] sm:$0xff] %vm1923, %v1840
        %1931 = vst.msk [vmem:[#allocation2 + $0x38] sm:$0xff] %vm1923, %v1842
        %1932 = vst.msk [vmem:[#allocation2 + $0x40] sm:$0xff] %vm1923, %v1844
        %1933 = vst.msk [vmem:[#allocation2 + $0x48] sm:$0xff] %vm1923, %v1846
        %1934 = vst.msk [vmem:[#allocation2 + $0x50] sm:$0xff] %vm1923, %v1848
        %1935 = vst.msk [vmem:[#allocation2 + $0x58] sm:$0xff] %vm1923, %v1850
        %1936 = vst.msk [vmem:[#allocation2 + $0x60] sm:$0xff] %vm1923, %v1852
        %1937 = vst.msk [vmem:[#allocation2 + $0x68] sm:$0xff] %vm1923, %v1854
        %1938 = vst.msk [vmem:[#allocation2 + $0x70] sm:$0xff] %vm1923, %v1856
        %1939 = vst.msk [vmem:[#allocation2 + $0x78] sm:$0xff] %vm1923, %v1858
        %1940 = vst.msk [vmem:[#allocation2 + $0x80] sm:$0xff] %vm1923, %v1860
        %1941 = vst.msk [vmem:[#allocation2 + $0x88] sm:$0xff] %vm1923, %v1862
        %1942 = vst.msk [vmem:[#allocation2 + $0x90] sm:$0xff] %vm1923, %v1864
        %1943 = vst.msk [vmem:[#allocation2 + $0x98] sm:$0xff] %vm1923, %v1866
        %1944 = vst.msk [vmem:[#allocation2 + $0xa0] sm:$0xff] %vm1923, %v1868
        %1945 = vst.msk [vmem:[#allocation2 + $0xa8] sm:$0xff] %vm1923, %v1870
        %1946 = vst.msk [vmem:[#allocation2 + $0xb0] sm:$0xff] %vm1923, %v1872
        %1947 = vst.msk [vmem:[#allocation2 + $0xb8] sm:$0xff] %vm1923, %v1874
        %1948 = vst.msk [vmem:[#allocation2 + $0xc0] sm:$0xff] %vm1923, %v1876
        %1949 = vst.msk [vmem:[#allocation2 + $0xc8] sm:$0xff] %vm1923, %v1878
        %1950 = vst.msk [vmem:[#allocation2 + $0xd0] sm:$0xff] %vm1923, %v1880
        %1951 = vst.msk [vmem:[#allocation2 + $0xd8] sm:$0xff] %vm1923, %v1882
        %1952 = vst.msk [vmem:[#allocation2 + $0xe0] sm:$0xff] %vm1923, %v1884
        %1953 = vst.msk [vmem:[#allocation2 + $0xe8] sm:$0xff] %vm1923, %v1886
        %1954 = vst.msk [vmem:[#allocation2 + $0xf0] sm:$0xff] %vm1923, %v1888
        %1955 = vst.msk [vmem:[#allocation2 + $0xf8] sm:$0xff] %vm1923, %v1890
        %v1956 = vld [vmem:[%s1297] sm:$0x3]
        %v1957 = vld [vmem:[%s1297 + $0x2] sm:$0x3]
        %v1958 = vld [vmem:[%s1297 + $0x4] sm:$0x1]
        %v1959 = vld [vmem:[%s1297 + $0x6] sm:$0x3]
        %v1960 = vld [vmem:[%s1297 + $0x8] sm:$0x3]
        %v1961 = vld [vmem:[%s1297 + $0xa] sm:$0x1]
        %v1962 = vld [vmem:[%s1297 + $0xc] sm:$0x3]
        %v1963 = vld [vmem:[%s1297 + $0xe] sm:$0x3]
        %v1964 = vld [vmem:[%s1297 + $0x10] sm:$0x1]
        %v1965 = vld [vmem:[%s1297 + $0x12] sm:$0x3]
        %v1966 = vld [vmem:[%s1297 + $0x14] sm:$0x3]
        %v1967 = vld [vmem:[%s1297 + $0x16] sm:$0x1]
        %v1968 = vld [vmem:[%s1297 + $0x18] sm:$0x3]
        %v1969 = vld [vmem:[%s1297 + $0x1a] sm:$0x3]
        %v1970 = vld [vmem:[%s1297 + $0x1c] sm:$0x1]
        %v1971 = vld [vmem:[%s1297 + $0x1e] sm:$0x3]
        %v1972 = vld [vmem:[%s1297 + $0x20] sm:$0x3]
        %v1973 = vld [vmem:[%s1297 + $0x22] sm:$0x1]
        %v1974 = vld [vmem:[%s1297 + $0x24] sm:$0x3]
        %v1975 = vld [vmem:[%s1297 + $0x26] sm:$0x3]
        %v1976 = vld [vmem:[%s1297 + $0x28] sm:$0x1]
        %v1977 = vld [vmem:[%s1297 + $0x2a] sm:$0x3]
        %v1978 = vld [vmem:[%s1297 + $0x2c] sm:$0x3]
        %v1979 = vld [vmem:[%s1297 + $0x2e] sm:$0x1]
        %v1980 = vld [vmem:[%s1297 + $0x30] sm:$0x3]
        %v1981 = vld [vmem:[%s1297 + $0x32] sm:$0x3]
        %v1982 = vld [vmem:[%s1297 + $0x34] sm:$0x1]
        %v1983 = vld [vmem:[%s1297 + $0x36] sm:$0x3]
        %v1984 = vld [vmem:[%s1297 + $0x38] sm:$0x3]
        %v1985 = vld [vmem:[%s1297 + $0x3a] sm:$0x1]
        %v1986 = vld [vmem:[%s1297 + $0x3c] sm:$0x3]
        %v1987 = vld [vmem:[%s1297 + $0x3e] sm:$0x3]
        %v1988 = vld [vmem:[%s1297 + $0x40] sm:$0x1]
        %v1989 = vld [vmem:[%s1297 + $0x42] sm:$0x3]
        %v1990 = vld [vmem:[%s1297 + $0x44] sm:$0x3]
        %v1991 = vld [vmem:[%s1297 + $0x46] sm:$0x1]
        %v1992 = vld [vmem:[%s1297 + $0x48] sm:$0x3]
        %v1993 = vld [vmem:[%s1297 + $0x4a] sm:$0x3]
        %v1994 = vld [vmem:[%s1297 + $0x4c] sm:$0x1]
        %v1995 = vld [vmem:[%s1297 + $0x4e] sm:$0x3]
        %v1996 = vld [vmem:[%s1297 + $0x50] sm:$0x3]
        %v1997 = vld [vmem:[%s1297 + $0x52] sm:$0x1]
        %v1998 = vld [vmem:[%s1297 + $0x54] sm:$0x3]
        %v1999 = vld [vmem:[%s1297 + $0x56] sm:$0x3]
        %v2000 = vld [vmem:[%s1297 + $0x58] sm:$0x1]
        %v2001 = vld [vmem:[%s1297 + $0x5a] sm:$0x3]
        %v2002 = vld [vmem:[%s1297 + $0x5c] sm:$0x3]
        %v2003 = vld [vmem:[%s1297 + $0x5e] sm:$0x1]
        %v2004 = vunpack.c.0.s8 %v1956
        %v2005 = vunpack.c.0.s8 %v1957
        %v2006 = vunpack.c.0.s8 %v1958
        %v2007 = vunpack.c.0.s8 %v1959
        %v2008 = vunpack.c.0.s8 %v1960
        %v2009 = vunpack.c.0.s8 %v1961
        %v2010 = vunpack.c.0.s8 %v1962
        %v2011 = vunpack.c.0.s8 %v1963
        %v2012 = vunpack.c.0.s8 %v1964
        %v2013 = vunpack.c.0.s8 %v1965
        %v2014 = vunpack.c.0.s8 %v1966
        %v2015 = vunpack.c.0.s8 %v1967
        %v2016 = vunpack.c.0.s8 %v1968
        %v2017 = vunpack.c.0.s8 %v1969
        %v2018 = vunpack.c.0.s8 %v1970
        %v2019 = vunpack.c.0.s8 %v1971
        %v2020 = vunpack.c.0.s8 %v1972
        %v2021 = vunpack.c.0.s8 %v1973
        %v2022 = vunpack.c.0.s8 %v1974
        %v2023 = vunpack.c.0.s8 %v1975
        %v2024 = vunpack.c.0.s8 %v1976
        %v2025 = vunpack.c.0.s8 %v1977
        %v2026 = vunpack.c.0.s8 %v1978
        %v2027 = vunpack.c.0.s8 %v1979
        %v2028 = vunpack.c.0.s8 %v1980
        %v2029 = vunpack.c.0.s8 %v1981
        %v2030 = vunpack.c.0.s8 %v1982
        %v2031 = vunpack.c.0.s8 %v1983
        %v2032 = vunpack.c.0.s8 %v1984
        %v2033 = vunpack.c.0.s8 %v1985
        %v2034 = vunpack.c.0.s8 %v1986
        %v2035 = vunpack.c.0.s8 %v1987
        %v2036 = vunpack.c.0.s8 %v1988
        %v2037 = vunpack.c.0.s8 %v1989
        %v2038 = vunpack.c.0.s8 %v1990
        %v2039 = vunpack.c.0.s8 %v1991
        %v2040 = vunpack.c.0.s8 %v1992
        %v2041 = vunpack.c.0.s8 %v1993
        %v2042 = vunpack.c.0.s8 %v1994
        %v2043 = vunpack.c.0.s8 %v1995
        %v2044 = vunpack.c.0.s8 %v1996
        %v2045 = vunpack.c.0.s8 %v1997
        %v2046 = vunpack.c.0.s8 %v1998
        %v2047 = vunpack.c.0.s8 %v1999
        %v2048 = vunpack.c.0.s8 %v2000
        %v2049 = vunpack.c.0.s8 %v2001
        %v2050 = vunpack.c.0.s8 %v2002
        %v2051 = vunpack.c.0.s8 %v2003
        %v2052 = vcvt.s32.f32 %v2004
        %v2053 = vcvt.s32.f32 %v2005
        %v2054 = vcvt.s32.f32 %v2006
        %v2055 = vcvt.s32.f32 %v2007
        %v2056 = vcvt.s32.f32 %v2008
        %v2057 = vcvt.s32.f32 %v2009
        %v2058 = vcvt.s32.f32 %v2010
        %v2059 = vcvt.s32.f32 %v2011
        %v2060 = vcvt.s32.f32 %v2012
        %v2061 = vcvt.s32.f32 %v2013
        %v2062 = vcvt.s32.f32 %v2014
        %v2063 = vcvt.s32.f32 %v2015
        %v2064 = vcvt.s32.f32 %v2016
        %v2065 = vcvt.s32.f32 %v2017
        %v2066 = vcvt.s32.f32 %v2018
        %v2067 = vcvt.s32.f32 %v2019
        %v2068 = vcvt.s32.f32 %v2020
        %v2069 = vcvt.s32.f32 %v2021
        %v2070 = vcvt.s32.f32 %v2022
        %v2071 = vcvt.s32.f32 %v2023
        %v2072 = vcvt.s32.f32 %v2024
        %v2073 = vcvt.s32.f32 %v2025
        %v2074 = vcvt.s32.f32 %v2026
        %v2075 = vcvt.s32.f32 %v2027
        %v2076 = vcvt.s32.f32 %v2028
        %v2077 = vcvt.s32.f32 %v2029
        %v2078 = vcvt.s32.f32 %v2030
        %v2079 = vcvt.s32.f32 %v2031
        %v2080 = vcvt.s32.f32 %v2032
        %v2081 = vcvt.s32.f32 %v2033
        %v2082 = vcvt.s32.f32 %v2034
        %v2083 = vcvt.s32.f32 %v2035
        %v2084 = vcvt.s32.f32 %v2036
        %v2085 = vcvt.s32.f32 %v2037
        %v2086 = vcvt.s32.f32 %v2038
        %v2087 = vcvt.s32.f32 %v2039
        %v2088 = vcvt.s32.f32 %v2040
        %v2089 = vcvt.s32.f32 %v2041
        %v2090 = vcvt.s32.f32 %v2042
        %v2091 = vcvt.s32.f32 %v2043
        %v2092 = vcvt.s32.f32 %v2044
        %v2093 = vcvt.s32.f32 %v2045
        %v2094 = vcvt.s32.f32 %v2046
        %v2095 = vcvt.s32.f32 %v2047
        %v2096 = vcvt.s32.f32 %v2048
        %v2097 = vcvt.s32.f32 %v2049
        %v2098 = vcvt.s32.f32 %v2050
        %v2099 = vcvt.s32.f32 %v2051
        %v2148 = vrot.slane %v2052, 2
        %v2149 = vrot.slane %v2053, 2
        %v2150 = vsel %vm1084, %v2148, %v2149
        %v2151 = vrot.slane %v2054, 2
        %v2152 = vsel %vm1084, %v2149, %v2151
        %v2153 = vrot.slane %v2055, 2
        %v2154 = vrot.slane %v2056, 2
        %v2155 = vsel %vm1084, %v2153, %v2154
        %v2156 = vrot.slane %v2057, 2
        %v2157 = vsel %vm1084, %v2154, %v2156
        %v2158 = vrot.slane %v2058, 2
        %v2159 = vrot.slane %v2059, 2
        %v2160 = vsel %vm1084, %v2158, %v2159
        %v2161 = vrot.slane %v2060, 2
        %v2162 = vsel %vm1084, %v2159, %v2161
        %v2163 = vrot.slane %v2061, 2
        %v2164 = vrot.slane %v2062, 2
        %v2165 = vsel %vm1084, %v2163, %v2164
        %v2166 = vrot.slane %v2063, 2
        %v2167 = vsel %vm1084, %v2164, %v2166
        %v2168 = vrot.slane %v2064, 2
        %v2169 = vrot.slane %v2065, 2
        %v2170 = vsel %vm1084, %v2168, %v2169
        %v2171 = vrot.slane %v2066, 2
        %v2172 = vsel %vm1084, %v2169, %v2171
        %v2173 = vrot.slane %v2067, 2
        %v2174 = vrot.slane %v2068, 2
        %v2175 = vsel %vm1084, %v2173, %v2174
        %v2176 = vrot.slane %v2069, 2
        %v2177 = vsel %vm1084, %v2174, %v2176
        %v2178 = vrot.slane %v2070, 2
        %v2179 = vrot.slane %v2071, 2
        %v2180 = vsel %vm1084, %v2178, %v2179
        %v2181 = vrot.slane %v2072, 2
        %v2182 = vsel %vm1084, %v2179, %v2181
        %v2183 = vrot.slane %v2073, 2
        %v2184 = vrot.slane %v2074, 2
        %v2185 = vsel %vm1084, %v2183, %v2184
        %v2186 = vrot.slane %v2075, 2
        %v2187 = vsel %vm1084, %v2184, %v2186
        %v2188 = vrot.slane %v2076, 2
        %v2189 = vrot.slane %v2077, 2
        %v2190 = vsel %vm1084, %v2188, %v2189
        %v2191 = vrot.slane %v2078, 2
        %v2192 = vsel %vm1084, %v2189, %v2191
        %v2193 = vrot.slane %v2079, 2
        %v2194 = vrot.slane %v2080, 2
        %v2195 = vsel %vm1084, %v2193, %v2194
        %v2196 = vrot.slane %v2081, 2
        %v2197 = vsel %vm1084, %v2194, %v2196
        %v2198 = vrot.slane %v2082, 2
        %v2199 = vrot.slane %v2083, 2
        %v2200 = vsel %vm1084, %v2198, %v2199
        %v2201 = vrot.slane %v2084, 2
        %v2202 = vsel %vm1084, %v2199, %v2201
        %v2203 = vrot.slane %v2085, 2
        %v2204 = vrot.slane %v2086, 2
        %v2205 = vsel %vm1084, %v2203, %v2204
        %v2206 = vrot.slane %v2087, 2
        %v2207 = vsel %vm1084, %v2204, %v2206
        %v2208 = vrot.slane %v2088, 2
        %v2209 = vrot.slane %v2089, 2
        %v2210 = vsel %vm1084, %v2208, %v2209
        %v2211 = vrot.slane %v2090, 2
        %v2212 = vsel %vm1084, %v2209, %v2211
        %v2213 = vrot.slane %v2091, 2
        %v2214 = vrot.slane %v2092, 2
        %v2215 = vsel %vm1084, %v2213, %v2214
        %v2216 = vrot.slane %v2093, 2
        %v2217 = vsel %vm1084, %v2214, %v2216
        %v2218 = vrot.slane %v2094, 2
        %v2219 = vrot.slane %v2095, 2
        %v2220 = vsel %vm1084, %v2218, %v2219
        %v2221 = vrot.slane %v2096, 2
        %v2222 = vsel %vm1084, %v2219, %v2221
        %v2223 = vrot.slane %v2097, 2
        %v2224 = vrot.slane %v2098, 2
        %v2225 = vsel %vm1084, %v2223, %v2224
        %v2226 = vrot.slane %v2099, 2
        %v2227 = vsel %vm1084, %v2224, %v2226
        %2228 = vrot.lane.b32.xlu0 %v2150, 20
        %v2229 = vpop.permute.xlu0 %2228
        %2230 = vrot.lane.b32.xlu0 %v2152, 20
        %v2231 = vpop.permute.xlu0 %2230
        %2232 = vrot.lane.b32.xlu0 %v2155, 20
        %v2233 = vpop.permute.xlu0 %2232
        %2234 = vrot.lane.b32.xlu0 %v2157, 20
        %v2235 = vpop.permute.xlu0 %2234
        %2236 = vrot.lane.b32.xlu0 %v2160, 20
        %v2237 = vpop.permute.xlu0 %2236
        %2238 = vrot.lane.b32.xlu0 %v2162, 20
        %v2239 = vpop.permute.xlu0 %2238
        %2240 = vrot.lane.b32.xlu0 %v2165, 20
        %v2241 = vpop.permute.xlu0 %2240
        %2242 = vrot.lane.b32.xlu0 %v2167, 20
        %v2243 = vpop.permute.xlu0 %2242
        %2244 = vrot.lane.b32.xlu0 %v2170, 20
        %v2245 = vpop.permute.xlu0 %2244
        %2246 = vrot.lane.b32.xlu0 %v2172, 20
        %v2247 = vpop.permute.xlu0 %2246
        %2248 = vrot.lane.b32.xlu0 %v2175, 20
        %v2249 = vpop.permute.xlu0 %2248
        %2250 = vrot.lane.b32.xlu0 %v2177, 20
        %v2251 = vpop.permute.xlu0 %2250
        %2252 = vrot.lane.b32.xlu0 %v2180, 20
        %v2253 = vpop.permute.xlu0 %2252
        %2254 = vrot.lane.b32.xlu0 %v2182, 20
        %v2255 = vpop.permute.xlu0 %2254
        %2256 = vrot.lane.b32.xlu0 %v2185, 20
        %v2257 = vpop.permute.xlu0 %2256
        %2258 = vrot.lane.b32.xlu0 %v2187, 20
        %v2259 = vpop.permute.xlu0 %2258
        %2260 = vrot.lane.b32.xlu0 %v2190, 20
        %v2261 = vpop.permute.xlu0 %2260
        %2262 = vrot.lane.b32.xlu0 %v2192, 20
        %v2263 = vpop.permute.xlu0 %2262
        %2264 = vrot.lane.b32.xlu0 %v2195, 20
        %v2265 = vpop.permute.xlu0 %2264
        %2266 = vrot.lane.b32.xlu0 %v2197, 20
        %v2267 = vpop.permute.xlu0 %2266
        %2268 = vrot.lane.b32.xlu0 %v2200, 20
        %v2269 = vpop.permute.xlu0 %2268
        %2270 = vrot.lane.b32.xlu0 %v2202, 20
        %v2271 = vpop.permute.xlu0 %2270
        %2272 = vrot.lane.b32.xlu0 %v2205, 20
        %v2273 = vpop.permute.xlu0 %2272
        %2274 = vrot.lane.b32.xlu0 %v2207, 20
        %v2275 = vpop.permute.xlu0 %2274
        %2276 = vrot.lane.b32.xlu0 %v2210, 20
        %v2277 = vpop.permute.xlu0 %2276
        %2278 = vrot.lane.b32.xlu0 %v2212, 20
        %v2279 = vpop.permute.xlu0 %2278
        %2280 = vrot.lane.b32.xlu0 %v2215, 20
        %v2281 = vpop.permute.xlu0 %2280
        %2282 = vrot.lane.b32.xlu0 %v2217, 20
        %v2283 = vpop.permute.xlu0 %2282
        %2284 = vrot.lane.b32.xlu0 %v2220, 20
        %v2285 = vpop.permute.xlu0 %2284
        %2286 = vrot.lane.b32.xlu0 %v2222, 20
        %v2287 = vpop.permute.xlu0 %2286
        %2288 = vrot.lane.b32.xlu0 %v2225, 20
        %v2289 = vpop.permute.xlu0 %2288
        %2290 = vrot.lane.b32.xlu0 %v2227, 20
        %v2291 = vpop.permute.xlu0 %2290
        %vm2324 = vcmask 195744
        %2325 = vst.msk [vmem:[#allocation2] sm:$0xff] %vm2324, %v2229
        %2326 = vst.msk [vmem:[#allocation2 + $0x8] sm:$0xff] %vm2324, %v2231
        %2327 = vst.msk [vmem:[#allocation2 + $0x10] sm:$0xff] %vm2324, %v2233
        %2328 = vst.msk [vmem:[#allocation2 + $0x18] sm:$0xff] %vm2324, %v2235
        %2329 = vst.msk [vmem:[#allocation2 + $0x20] sm:$0xff] %vm2324, %v2237
        %2330 = vst.msk [vmem:[#allocation2 + $0x28] sm:$0xff] %vm2324, %v2239
        %2331 = vst.msk [vmem:[#allocation2 + $0x30] sm:$0xff] %vm2324, %v2241
        %2332 = vst.msk [vmem:[#allocation2 + $0x38] sm:$0xff] %vm2324, %v2243
        %2333 = vst.msk [vmem:[#allocation2 + $0x40] sm:$0xff] %vm2324, %v2245
        %2334 = vst.msk [vmem:[#allocation2 + $0x48] sm:$0xff] %vm2324, %v2247
        %2335 = vst.msk [vmem:[#allocation2 + $0x50] sm:$0xff] %vm2324, %v2249
        %2336 = vst.msk [vmem:[#allocation2 + $0x58] sm:$0xff] %vm2324, %v2251
        %2337 = vst.msk [vmem:[#allocation2 + $0x60] sm:$0xff] %vm2324, %v2253
        %2338 = vst.msk [vmem:[#allocation2 + $0x68] sm:$0xff] %vm2324, %v2255
        %2339 = vst.msk [vmem:[#allocation2 + $0x70] sm:$0xff] %vm2324, %v2257
        %2340 = vst.msk [vmem:[#allocation2 + $0x78] sm:$0xff] %vm2324, %v2259
        %2341 = vst.msk [vmem:[#allocation2 + $0x80] sm:$0xff] %vm2324, %v2261
        %2342 = vst.msk [vmem:[#allocation2 + $0x88] sm:$0xff] %vm2324, %v2263
        %2343 = vst.msk [vmem:[#allocation2 + $0x90] sm:$0xff] %vm2324, %v2265
        %2344 = vst.msk [vmem:[#allocation2 + $0x98] sm:$0xff] %vm2324, %v2267
        %2345 = vst.msk [vmem:[#allocation2 + $0xa0] sm:$0xff] %vm2324, %v2269
        %2346 = vst.msk [vmem:[#allocation2 + $0xa8] sm:$0xff] %vm2324, %v2271
        %2347 = vst.msk [vmem:[#allocation2 + $0xb0] sm:$0xff] %vm2324, %v2273
        %2348 = vst.msk [vmem:[#allocation2 + $0xb8] sm:$0xff] %vm2324, %v2275
        %2349 = vst.msk [vmem:[#allocation2 + $0xc0] sm:$0xff] %vm2324, %v2277
        %2350 = vst.msk [vmem:[#allocation2 + $0xc8] sm:$0xff] %vm2324, %v2279
        %2351 = vst.msk [vmem:[#allocation2 + $0xd0] sm:$0xff] %vm2324, %v2281
        %2352 = vst.msk [vmem:[#allocation2 + $0xd8] sm:$0xff] %vm2324, %v2283
        %2353 = vst.msk [vmem:[#allocation2 + $0xe0] sm:$0xff] %vm2324, %v2285
        %2354 = vst.msk [vmem:[#allocation2 + $0xe8] sm:$0xff] %vm2324, %v2287
        %2355 = vst.msk [vmem:[#allocation2 + $0xf0] sm:$0xff] %vm2324, %v2289
        %2356 = vst.msk [vmem:[#allocation2 + $0xf8] sm:$0xff] %vm2324, %v2291
        %s2357 = sadd.s32 %s324, 2
        %s2358 = smul.u32 %s2357, 3
        %s2359 = smul.addr %s2358, 2
        %s2360 = scalar_lea.vmem %s302, %s2359
        %v2361 = vld [vmem:[%s2360] sm:$0x3]
        %v2362 = vld [vmem:[%s2360 + $0x2] sm:$0x3]
        %v2363 = vld [vmem:[%s2360 + $0x6] sm:$0x3]
        %v2364 = vld [vmem:[%s2360 + $0x8] sm:$0x3]
        %v2365 = vld [vmem:[%s2360 + $0xc] sm:$0x3]
        %v2366 = vld [vmem:[%s2360 + $0xe] sm:$0x3]
        %v2367 = vld [vmem:[%s2360 + $0x12] sm:$0x3]
        %v2368 = vld [vmem:[%s2360 + $0x14] sm:$0x3]
        %v2369 = vld [vmem:[%s2360 + $0x18] sm:$0x3]
        %v2370 = vld [vmem:[%s2360 + $0x1a] sm:$0x3]
        %v2371 = vld [vmem:[%s2360 + $0x1e] sm:$0x3]
        %v2372 = vld [vmem:[%s2360 + $0x20] sm:$0x3]
        %v2373 = vld [vmem:[%s2360 + $0x24] sm:$0x3]
        %v2374 = vld [vmem:[%s2360 + $0x26] sm:$0x3]
        %v2375 = vld [vmem:[%s2360 + $0x2a] sm:$0x3]
        %v2376 = vld [vmem:[%s2360 + $0x2c] sm:$0x3]
        %v2377 = vld [vmem:[%s2360 + $0x30] sm:$0x3]
        %v2378 = vld [vmem:[%s2360 + $0x32] sm:$0x3]
        %v2379 = vld [vmem:[%s2360 + $0x36] sm:$0x3]
        %v2380 = vld [vmem:[%s2360 + $0x38] sm:$0x3]
        %v2381 = vld [vmem:[%s2360 + $0x3c] sm:$0x3]
        %v2382 = vld [vmem:[%s2360 + $0x3e] sm:$0x3]
        %v2383 = vld [vmem:[%s2360 + $0x42] sm:$0x3]
        %v2384 = vld [vmem:[%s2360 + $0x44] sm:$0x3]
        %v2385 = vld [vmem:[%s2360 + $0x48] sm:$0x3]
        %v2386 = vld [vmem:[%s2360 + $0x4a] sm:$0x3]
        %v2387 = vld [vmem:[%s2360 + $0x4e] sm:$0x3]
        %v2388 = vld [vmem:[%s2360 + $0x50] sm:$0x3]
        %v2389 = vld [vmem:[%s2360 + $0x54] sm:$0x3]
        %v2390 = vld [vmem:[%s2360 + $0x56] sm:$0x3]
        %v2391 = vld [vmem:[%s2360 + $0x5a] sm:$0x3]
        %v2392 = vld [vmem:[%s2360 + $0x5c] sm:$0x3]
        %v2393 = vunpack.c.0.s8 %v2361
        %v2394 = vunpack.c.0.s8 %v2362
        %v2395 = vunpack.c.0.s8 %v2363
        %v2396 = vunpack.c.0.s8 %v2364
        %v2397 = vunpack.c.0.s8 %v2365
        %v2398 = vunpack.c.0.s8 %v2366
        %v2399 = vunpack.c.0.s8 %v2367
        %v2400 = vunpack.c.0.s8 %v2368
        %v2401 = vunpack.c.0.s8 %v2369
        %v2402 = vunpack.c.0.s8 %v2370
        %v2403 = vunpack.c.0.s8 %v2371
        %v2404 = vunpack.c.0.s8 %v2372
        %v2405 = vunpack.c.0.s8 %v2373
        %v2406 = vunpack.c.0.s8 %v2374
        %v2407 = vunpack.c.0.s8 %v2375
        %v2408 = vunpack.c.0.s8 %v2376
        %v2409 = vunpack.c.0.s8 %v2377
        %v2410 = vunpack.c.0.s8 %v2378
        %v2411 = vunpack.c.0.s8 %v2379
        %v2412 = vunpack.c.0.s8 %v2380
        %v2413 = vunpack.c.0.s8 %v2381
        %v2414 = vunpack.c.0.s8 %v2382
        %v2415 = vunpack.c.0.s8 %v2383
        %v2416 = vunpack.c.0.s8 %v2384
        %v2417 = vunpack.c.0.s8 %v2385
        %v2418 = vunpack.c.0.s8 %v2386
        %v2419 = vunpack.c.0.s8 %v2387
        %v2420 = vunpack.c.0.s8 %v2388
        %v2421 = vunpack.c.0.s8 %v2389
        %v2422 = vunpack.c.0.s8 %v2390
        %v2423 = vunpack.c.0.s8 %v2391
        %v2424 = vunpack.c.0.s8 %v2392
        %v2425 = vcvt.s32.f32 %v2393
        %v2426 = vcvt.s32.f32 %v2394
        %v2427 = vcvt.s32.f32 %v2395
        %v2428 = vcvt.s32.f32 %v2396
        %v2429 = vcvt.s32.f32 %v2397
        %v2430 = vcvt.s32.f32 %v2398
        %v2431 = vcvt.s32.f32 %v2399
        %v2432 = vcvt.s32.f32 %v2400
        %v2433 = vcvt.s32.f32 %v2401
        %v2434 = vcvt.s32.f32 %v2402
        %v2435 = vcvt.s32.f32 %v2403
        %v2436 = vcvt.s32.f32 %v2404
        %v2437 = vcvt.s32.f32 %v2405
        %v2438 = vcvt.s32.f32 %v2406
        %v2439 = vcvt.s32.f32 %v2407
        %v2440 = vcvt.s32.f32 %v2408
        %v2441 = vcvt.s32.f32 %v2409
        %v2442 = vcvt.s32.f32 %v2410
        %v2443 = vcvt.s32.f32 %v2411
        %v2444 = vcvt.s32.f32 %v2412
        %v2445 = vcvt.s32.f32 %v2413
        %v2446 = vcvt.s32.f32 %v2414
        %v2447 = vcvt.s32.f32 %v2415
        %v2448 = vcvt.s32.f32 %v2416
        %v2449 = vcvt.s32.f32 %v2417
        %v2450 = vcvt.s32.f32 %v2418
        %v2451 = vcvt.s32.f32 %v2419
        %v2452 = vcvt.s32.f32 %v2420
        %v2453 = vcvt.s32.f32 %v2421
        %v2454 = vcvt.s32.f32 %v2422
        %v2455 = vcvt.s32.f32 %v2423
        %v2456 = vcvt.s32.f32 %v2424
        %2489 = vrot.lane.b32.xlu0 %v2425, 24
        %v2490 = vpop.permute.xlu0 %2489
        %2491 = vrot.lane.b32.xlu0 %v2426, 24
        %v2492 = vpop.permute.xlu0 %2491
        %2493 = vrot.lane.b32.xlu0 %v2427, 24
        %v2494 = vpop.permute.xlu0 %2493
        %2495 = vrot.lane.b32.xlu0 %v2428, 24
        %v2496 = vpop.permute.xlu0 %2495
        %2497 = vrot.lane.b32.xlu0 %v2429, 24
        %v2498 = vpop.permute.xlu0 %2497
        %2499 = vrot.lane.b32.xlu0 %v2430, 24
        %v2500 = vpop.permute.xlu0 %2499
        %2501 = vrot.lane.b32.xlu0 %v2431, 24
        %v2502 = vpop.permute.xlu0 %2501
        %2503 = vrot.lane.b32.xlu0 %v2432, 24
        %v2504 = vpop.permute.xlu0 %2503
        %2505 = vrot.lane.b32.xlu0 %v2433, 24
        %v2506 = vpop.permute.xlu0 %2505
        %2507 = vrot.lane.b32.xlu0 %v2434, 24
        %v2508 = vpop.permute.xlu0 %2507
        %2509 = vrot.lane.b32.xlu0 %v2435, 24
        %v2510 = vpop.permute.xlu0 %2509
        %2511 = vrot.lane.b32.xlu0 %v2436, 24
        %v2512 = vpop.permute.xlu0 %2511
        %2513 = vrot.lane.b32.xlu0 %v2437, 24
        %v2514 = vpop.permute.xlu0 %2513
        %2515 = vrot.lane.b32.xlu0 %v2438, 24
        %v2516 = vpop.permute.xlu0 %2515
        %2517 = vrot.lane.b32.xlu0 %v2439, 24
        %v2518 = vpop.permute.xlu0 %2517
        %2519 = vrot.lane.b32.xlu0 %v2440, 24
        %v2520 = vpop.permute.xlu0 %2519
        %2521 = vrot.lane.b32.xlu0 %v2441, 24
        %v2522 = vpop.permute.xlu0 %2521
        %2523 = vrot.lane.b32.xlu0 %v2442, 24
        %v2524 = vpop.permute.xlu0 %2523
        %2525 = vrot.lane.b32.xlu0 %v2443, 24
        %v2526 = vpop.permute.xlu0 %2525
        %2527 = vrot.lane.b32.xlu0 %v2444, 24
        %v2528 = vpop.permute.xlu0 %2527
        %2529 = vrot.lane.b32.xlu0 %v2445, 24
        %v2530 = vpop.permute.xlu0 %2529
        %2531 = vrot.lane.b32.xlu0 %v2446, 24
        %v2532 = vpop.permute.xlu0 %2531
        %2533 = vrot.lane.b32.xlu0 %v2447, 24
        %v2534 = vpop.permute.xlu0 %2533
        %2535 = vrot.lane.b32.xlu0 %v2448, 24
        %v2536 = vpop.permute.xlu0 %2535
        %2537 = vrot.lane.b32.xlu0 %v2449, 24
        %v2538 = vpop.permute.xlu0 %2537
        %2539 = vrot.lane.b32.xlu0 %v2450, 24
        %v2540 = vpop.permute.xlu0 %2539
        %2541 = vrot.lane.b32.xlu0 %v2451, 24
        %v2542 = vpop.permute.xlu0 %2541
        %2543 = vrot.lane.b32.xlu0 %v2452, 24
        %v2544 = vpop.permute.xlu0 %2543
        %2545 = vrot.lane.b32.xlu0 %v2453, 24
        %v2546 = vpop.permute.xlu0 %2545
        %2547 = vrot.lane.b32.xlu0 %v2454, 24
        %v2548 = vpop.permute.xlu0 %2547
        %2549 = vrot.lane.b32.xlu0 %v2455, 24
        %v2550 = vpop.permute.xlu0 %2549
        %2551 = vrot.lane.b32.xlu0 %v2456, 24
        %v2552 = vpop.permute.xlu0 %2551
        %vm2585 = vcmask 228544
        %2586 = vst.msk [vmem:[#allocation2] sm:$0xff] %vm2585, %v2490
        %2587 = vst.msk [vmem:[#allocation2 + $0x8] sm:$0xff] %vm2585, %v2492
        %2588 = vst.msk [vmem:[#allocation2 + $0x10] sm:$0xff] %vm2585, %v2494
        %2589 = vst.msk [vmem:[#allocation2 + $0x18] sm:$0xff] %vm2585, %v2496
        %2590 = vst.msk [vmem:[#allocation2 + $0x20] sm:$0xff] %vm2585, %v2498
        %2591 = vst.msk [vmem:[#allocation2 + $0x28] sm:$0xff] %vm2585, %v2500
        %2592 = vst.msk [vmem:[#allocation2 + $0x30] sm:$0xff] %vm2585, %v2502
        %2593 = vst.msk [vmem:[#allocation2 + $0x38] sm:$0xff] %vm2585, %v2504
        %2594 = vst.msk [vmem:[#allocation2 + $0x40] sm:$0xff] %vm2585, %v2506
        %2595 = vst.msk [vmem:[#allocation2 + $0x48] sm:$0xff] %vm2585, %v2508
        %2596 = vst.msk [vmem:[#allocation2 + $0x50] sm:$0xff] %vm2585, %v2510
        %2597 = vst.msk [vmem:[#allocation2 + $0x58] sm:$0xff] %vm2585, %v2512
        %2598 = vst.msk [vmem:[#allocation2 + $0x60] sm:$0xff] %vm2585, %v2514
        %2599 = vst.msk [vmem:[#allocation2 + $0x68] sm:$0xff] %vm2585, %v2516
        %2600 = vst.msk [vmem:[#allocation2 + $0x70] sm:$0xff] %vm2585, %v2518
        %2601 = vst.msk [vmem:[#allocation2 + $0x78] sm:$0xff] %vm2585, %v2520
        %2602 = vst.msk [vmem:[#allocation2 + $0x80] sm:$0xff] %vm2585, %v2522
        %2603 = vst.msk [vmem:[#allocation2 + $0x88] sm:$0xff] %vm2585, %v2524
        %2604 = vst.msk [vmem:[#allocation2 + $0x90] sm:$0xff] %vm2585, %v2526
        %2605 = vst.msk [vmem:[#allocation2 + $0x98] sm:$0xff] %vm2585, %v2528
        %2606 = vst.msk [vmem:[#allocation2 + $0xa0] sm:$0xff] %vm2585, %v2530
        %2607 = vst.msk [vmem:[#allocation2 + $0xa8] sm:$0xff] %vm2585, %v2532
        %2608 = vst.msk [vmem:[#allocation2 + $0xb0] sm:$0xff] %vm2585, %v2534
        %2609 = vst.msk [vmem:[#allocation2 + $0xb8] sm:$0xff] %vm2585, %v2536
        %2610 = vst.msk [vmem:[#allocation2 + $0xc0] sm:$0xff] %vm2585, %v2538
        %2611 = vst.msk [vmem:[#allocation2 + $0xc8] sm:$0xff] %vm2585, %v2540
        %2612 = vst.msk [vmem:[#allocation2 + $0xd0] sm:$0xff] %vm2585, %v2542
        %2613 = vst.msk [vmem:[#allocation2 + $0xd8] sm:$0xff] %vm2585, %v2544
        %2614 = vst.msk [vmem:[#allocation2 + $0xe0] sm:$0xff] %vm2585, %v2546
        %2615 = vst.msk [vmem:[#allocation2 + $0xe8] sm:$0xff] %vm2585, %v2548
        %2616 = vst.msk [vmem:[#allocation2 + $0xf0] sm:$0xff] %vm2585, %v2550
        %2617 = vst.msk [vmem:[#allocation2 + $0xf8] sm:$0xff] %vm2585, %v2552
        %v2618 = vld [vmem:[%s2360] sm:$0x3]
        %v2619 = vld [vmem:[%s2360 + $0x2] sm:$0x3]
        %v2620 = vld [vmem:[%s2360 + $0x4] sm:$0x1]
        %v2621 = vld [vmem:[%s2360 + $0x6] sm:$0x3]
        %v2622 = vld [vmem:[%s2360 + $0x8] sm:$0x3]
        %v2623 = vld [vmem:[%s2360 + $0xa] sm:$0x1]
        %v2624 = vld [vmem:[%s2360 + $0xc] sm:$0x3]
        %v2625 = vld [vmem:[%s2360 + $0xe] sm:$0x3]
        %v2626 = vld [vmem:[%s2360 + $0x10] sm:$0x1]
        %v2627 = vld [vmem:[%s2360 + $0x12] sm:$0x3]
        %v2628 = vld [vmem:[%s2360 + $0x14] sm:$0x3]
        %v2629 = vld [vmem:[%s2360 + $0x16] sm:$0x1]
        %v2630 = vld [vmem:[%s2360 + $0x18] sm:$0x3]
        %v2631 = vld [vmem:[%s2360 + $0x1a] sm:$0x3]
        %v2632 = vld [vmem:[%s2360 + $0x1c] sm:$0x1]
        %v2633 = vld [vmem:[%s2360 + $0x1e] sm:$0x3]
        %v2634 = vld [vmem:[%s2360 + $0x20] sm:$0x3]
        %v2635 = vld [vmem:[%s2360 + $0x22] sm:$0x1]
        %v2636 = vld [vmem:[%s2360 + $0x24] sm:$0x3]
        %v2637 = vld [vmem:[%s2360 + $0x26] sm:$0x3]
        %v2638 = vld [vmem:[%s2360 + $0x28] sm:$0x1]
        %v2639 = vld [vmem:[%s2360 + $0x2a] sm:$0x3]
        %v2640 = vld [vmem:[%s2360 + $0x2c] sm:$0x3]
        %v2641 = vld [vmem:[%s2360 + $0x2e] sm:$0x1]
        %v2642 = vld [vmem:[%s2360 + $0x30] sm:$0x3]
        %v2643 = vld [vmem:[%s2360 + $0x32] sm:$0x3]
        %v2644 = vld [vmem:[%s2360 + $0x34] sm:$0x1]
        %v2645 = vld [vmem:[%s2360 + $0x36] sm:$0x3]
        %v2646 = vld [vmem:[%s2360 + $0x38] sm:$0x3]
        %v2647 = vld [vmem:[%s2360 + $0x3a] sm:$0x1]
        %v2648 = vld [vmem:[%s2360 + $0x3c] sm:$0x3]
        %v2649 = vld [vmem:[%s2360 + $0x3e] sm:$0x3]
        %v2650 = vld [vmem:[%s2360 + $0x40] sm:$0x1]
        %v2651 = vld [vmem:[%s2360 + $0x42] sm:$0x3]
        %v2652 = vld [vmem:[%s2360 + $0x44] sm:$0x3]
        %v2653 = vld [vmem:[%s2360 + $0x46] sm:$0x1]
        %v2654 = vld [vmem:[%s2360 + $0x48] sm:$0x3]
        %v2655 = vld [vmem:[%s2360 + $0x4a] sm:$0x3]
        %v2656 = vld [vmem:[%s2360 + $0x4c] sm:$0x1]
        %v2657 = vld [vmem:[%s2360 + $0x4e] sm:$0x3]
        %v2658 = vld [vmem:[%s2360 + $0x50] sm:$0x3]
        %v2659 = vld [vmem:[%s2360 + $0x52] sm:$0x1]
        %v2660 = vld [vmem:[%s2360 + $0x54] sm:$0x3]
        %v2661 = vld [vmem:[%s2360 + $0x56] sm:$0x3]
        %v2662 = vld [vmem:[%s2360 + $0x58] sm:$0x1]
        %v2663 = vld [vmem:[%s2360 + $0x5a] sm:$0x3]
        %v2664 = vld [vmem:[%s2360 + $0x5c] sm:$0x3]
        %v2665 = vld [vmem:[%s2360 + $0x5e] sm:$0x1]
        %v2666 = vunpack.c.0.s8 %v2618
        %v2667 = vunpack.c.0.s8 %v2619
        %v2668 = vunpack.c.0.s8 %v2620
        %v2669 = vunpack.c.0.s8 %v2621
        %v2670 = vunpack.c.0.s8 %v2622
        %v2671 = vunpack.c.0.s8 %v2623
        %v2672 = vunpack.c.0.s8 %v2624
        %v2673 = vunpack.c.0.s8 %v2625
        %v2674 = vunpack.c.0.s8 %v2626
        %v2675 = vunpack.c.0.s8 %v2627
        %v2676 = vunpack.c.0.s8 %v2628
        %v2677 = vunpack.c.0.s8 %v2629
        %v2678 = vunpack.c.0.s8 %v2630
        %v2679 = vunpack.c.0.s8 %v2631
        %v2680 = vunpack.c.0.s8 %v2632
        %v2681 = vunpack.c.0.s8 %v2633
        %v2682 = vunpack.c.0.s8 %v2634
        %v2683 = vunpack.c.0.s8 %v2635
        %v2684 = vunpack.c.0.s8 %v2636
        %v2685 = vunpack.c.0.s8 %v2637
        %v2686 = vunpack.c.0.s8 %v2638
        %v2687 = vunpack.c.0.s8 %v2639
        %v2688 = vunpack.c.0.s8 %v2640
        %v2689 = vunpack.c.0.s8 %v2641
        %v2690 = vunpack.c.0.s8 %v2642
        %v2691 = vunpack.c.0.s8 %v2643
        %v2692 = vunpack.c.0.s8 %v2644
        %v2693 = vunpack.c.0.s8 %v2645
        %v2694 = vunpack.c.0.s8 %v2646
        %v2695 = vunpack.c.0.s8 %v2647
        %v2696 = vunpack.c.0.s8 %v2648
        %v2697 = vunpack.c.0.s8 %v2649
        %v2698 = vunpack.c.0.s8 %v2650
        %v2699 = vunpack.c.0.s8 %v2651
        %v2700 = vunpack.c.0.s8 %v2652
        %v2701 = vunpack.c.0.s8 %v2653
        %v2702 = vunpack.c.0.s8 %v2654
        %v2703 = vunpack.c.0.s8 %v2655
        %v2704 = vunpack.c.0.s8 %v2656
        %v2705 = vunpack.c.0.s8 %v2657
        %v2706 = vunpack.c.0.s8 %v2658
        %v2707 = vunpack.c.0.s8 %v2659
        %v2708 = vunpack.c.0.s8 %v2660
        %v2709 = vunpack.c.0.s8 %v2661
        %v2710 = vunpack.c.0.s8 %v2662
        %v2711 = vunpack.c.0.s8 %v2663
        %v2712 = vunpack.c.0.s8 %v2664
        %v2713 = vunpack.c.0.s8 %v2665
        %v2714 = vcvt.s32.f32 %v2666
        %v2715 = vcvt.s32.f32 %v2667
        %v2716 = vcvt.s32.f32 %v2668
        %v2717 = vcvt.s32.f32 %v2669
        %v2718 = vcvt.s32.f32 %v2670
        %v2719 = vcvt.s32.f32 %v2671
        %v2720 = vcvt.s32.f32 %v2672
        %v2721 = vcvt.s32.f32 %v2673
        %v2722 = vcvt.s32.f32 %v2674
        %v2723 = vcvt.s32.f32 %v2675
        %v2724 = vcvt.s32.f32 %v2676
        %v2725 = vcvt.s32.f32 %v2677
        %v2726 = vcvt.s32.f32 %v2678
        %v2727 = vcvt.s32.f32 %v2679
        %v2728 = vcvt.s32.f32 %v2680
        %v2729 = vcvt.s32.f32 %v2681
        %v2730 = vcvt.s32.f32 %v2682
        %v2731 = vcvt.s32.f32 %v2683
        %v2732 = vcvt.s32.f32 %v2684
        %v2733 = vcvt.s32.f32 %v2685
        %v2734 = vcvt.s32.f32 %v2686
        %v2735 = vcvt.s32.f32 %v2687
        %v2736 = vcvt.s32.f32 %v2688
        %v2737 = vcvt.s32.f32 %v2689
        %v2738 = vcvt.s32.f32 %v2690
        %v2739 = vcvt.s32.f32 %v2691
        %v2740 = vcvt.s32.f32 %v2692
        %v2741 = vcvt.s32.f32 %v2693
        %v2742 = vcvt.s32.f32 %v2694
        %v2743 = vcvt.s32.f32 %v2695
        %v2744 = vcvt.s32.f32 %v2696
        %v2745 = vcvt.s32.f32 %v2697
        %v2746 = vcvt.s32.f32 %v2698
        %v2747 = vcvt.s32.f32 %v2699
        %v2748 = vcvt.s32.f32 %v2700
        %v2749 = vcvt.s32.f32 %v2701
        %v2750 = vcvt.s32.f32 %v2702
        %v2751 = vcvt.s32.f32 %v2703
        %v2752 = vcvt.s32.f32 %v2704
        %v2753 = vcvt.s32.f32 %v2705
        %v2754 = vcvt.s32.f32 %v2706
        %v2755 = vcvt.s32.f32 %v2707
        %v2756 = vcvt.s32.f32 %v2708
        %v2757 = vcvt.s32.f32 %v2709
        %v2758 = vcvt.s32.f32 %v2710
        %v2759 = vcvt.s32.f32 %v2711
        %v2760 = vcvt.s32.f32 %v2712
        %v2761 = vcvt.s32.f32 %v2713
        %v2810 = vrot.slane %v2714, 1
        %v2811 = vrot.slane %v2715, 1
        %v2812 = vsel %vm682, %v2810, %v2811
        %v2813 = vrot.slane %v2716, 1
        %v2814 = vsel %vm682, %v2811, %v2813
        %v2815 = vrot.slane %v2717, 1
        %v2816 = vrot.slane %v2718, 1
        %v2817 = vsel %vm682, %v2815, %v2816
        %v2818 = vrot.slane %v2719, 1
        %v2819 = vsel %vm682, %v2816, %v2818
        %v2820 = vrot.slane %v2720, 1
        %v2821 = vrot.slane %v2721, 1
        %v2822 = vsel %vm682, %v2820, %v2821
        %v2823 = vrot.slane %v2722, 1
        %v2824 = vsel %vm682, %v2821, %v2823
        %v2825 = vrot.slane %v2723, 1
        %v2826 = vrot.slane %v2724, 1
        %v2827 = vsel %vm682, %v2825, %v2826
        %v2828 = vrot.slane %v2725, 1
        %v2829 = vsel %vm682, %v2826, %v2828
        %v2830 = vrot.slane %v2726, 1
        %v2831 = vrot.slane %v2727, 1
        %v2832 = vsel %vm682, %v2830, %v2831
        %v2833 = vrot.slane %v2728, 1
        %v2834 = vsel %vm682, %v2831, %v2833
        %v2835 = vrot.slane %v2729, 1
        %v2836 = vrot.slane %v2730, 1
        %v2837 = vsel %vm682, %v2835, %v2836
        %v2838 = vrot.slane %v2731, 1
        %v2839 = vsel %vm682, %v2836, %v2838
        %v2840 = vrot.slane %v2732, 1
        %v2841 = vrot.slane %v2733, 1
        %v2842 = vsel %vm682, %v2840, %v2841
        %v2843 = vrot.slane %v2734, 1
        %v2844 = vsel %vm682, %v2841, %v2843
        %v2845 = vrot.slane %v2735, 1
        %v2846 = vrot.slane %v2736, 1
        %v2847 = vsel %vm682, %v2845, %v2846
        %v2848 = vrot.slane %v2737, 1
        %v2849 = vsel %vm682, %v2846, %v2848
        %v2850 = vrot.slane %v2738, 1
        %v2851 = vrot.slane %v2739, 1
        %v2852 = vsel %vm682, %v2850, %v2851
        %v2853 = vrot.slane %v2740, 1
        %v2854 = vsel %vm682, %v2851, %v2853
        %v2855 = vrot.slane %v2741, 1
        %v2856 = vrot.slane %v2742, 1
        %v2857 = vsel %vm682, %v2855, %v2856
        %v2858 = vrot.slane %v2743, 1
        %v2859 = vsel %vm682, %v2856, %v2858
        %v2860 = vrot.slane %v2744, 1
        %v2861 = vrot.slane %v2745, 1
        %v2862 = vsel %vm682, %v2860, %v2861
        %v2863 = vrot.slane %v2746, 1
        %v2864 = vsel %vm682, %v2861, %v2863
        %v2865 = vrot.slane %v2747, 1
        %v2866 = vrot.slane %v2748, 1
        %v2867 = vsel %vm682, %v2865, %v2866
        %v2868 = vrot.slane %v2749, 1
        %v2869 = vsel %vm682, %v2866, %v2868
        %v2870 = vrot.slane %v2750, 1
        %v2871 = vrot.slane %v2751, 1
        %v2872 = vsel %vm682, %v2870, %v2871
        %v2873 = vrot.slane %v2752, 1
        %v2874 = vsel %vm682, %v2871, %v2873
        %v2875 = vrot.slane %v2753, 1
        %v2876 = vrot.slane %v2754, 1
        %v2877 = vsel %vm682, %v2875, %v2876
        %v2878 = vrot.slane %v2755, 1
        %v2879 = vsel %vm682, %v2876, %v2878
        %v2880 = vrot.slane %v2756, 1
        %v2881 = vrot.slane %v2757, 1
        %v2882 = vsel %vm682, %v2880, %v2881
        %v2883 = vrot.slane %v2758, 1
        %v2884 = vsel %vm682, %v2881, %v2883
        %v2885 = vrot.slane %v2759, 1
        %v2886 = vrot.slane %v2760, 1
        %v2887 = vsel %vm682, %v2885, %v2886
        %v2888 = vrot.slane %v2761, 1
        %v2889 = vsel %vm682, %v2886, %v2888
        %2890 = vrot.lane.b32.xlu0 %v2812, 28
        %v2891 = vpop.permute.xlu0 %2890
        %2892 = vrot.lane.b32.xlu0 %v2814, 28
        %v2893 = vpop.permute.xlu0 %2892
        %2894 = vrot.lane.b32.xlu0 %v2817, 28
        %v2895 = vpop.permute.xlu0 %2894
        %2896 = vrot.lane.b32.xlu0 %v2819, 28
        %v2897 = vpop.permute.xlu0 %2896
        %2898 = vrot.lane.b32.xlu0 %v2822, 28
        %v2899 = vpop.permute.xlu0 %2898
        %2900 = vrot.lane.b32.xlu0 %v2824, 28
        %v2901 = vpop.permute.xlu0 %2900
        %2902 = vrot.lane.b32.xlu0 %v2827, 28
        %v2903 = vpop.permute.xlu0 %2902
        %2904 = vrot.lane.b32.xlu0 %v2829, 28
        %v2905 = vpop.permute.xlu0 %2904
        %2906 = vrot.lane.b32.xlu0 %v2832, 28
        %v2907 = vpop.permute.xlu0 %2906
        %2908 = vrot.lane.b32.xlu0 %v2834, 28
        %v2909 = vpop.permute.xlu0 %2908
        %2910 = vrot.lane.b32.xlu0 %v2837, 28
        %v2911 = vpop.permute.xlu0 %2910
        %2912 = vrot.lane.b32.xlu0 %v2839, 28
        %v2913 = vpop.permute.xlu0 %2912
        %2914 = vrot.lane.b32.xlu0 %v2842, 28
        %v2915 = vpop.permute.xlu0 %2914
        %2916 = vrot.lane.b32.xlu0 %v2844, 28
        %v2917 = vpop.permute.xlu0 %2916
        %2918 = vrot.lane.b32.xlu0 %v2847, 28
        %v2919 = vpop.permute.xlu0 %2918
        %2920 = vrot.lane.b32.xlu0 %v2849, 28
        %v2921 = vpop.permute.xlu0 %2920
        %2922 = vrot.lane.b32.xlu0 %v2852, 28
        %v2923 = vpop.permute.xlu0 %2922
        %2924 = vrot.lane.b32.xlu0 %v2854, 28
        %v2925 = vpop.permute.xlu0 %2924
        %2926 = vrot.lane.b32.xlu0 %v2857, 28
        %v2927 = vpop.permute.xlu0 %2926
        %2928 = vrot.lane.b32.xlu0 %v2859, 28
        %v2929 = vpop.permute.xlu0 %2928
        %2930 = vrot.lane.b32.xlu0 %v2862, 28
        %v2931 = vpop.permute.xlu0 %2930
        %2932 = vrot.lane.b32.xlu0 %v2864, 28
        %v2933 = vpop.permute.xlu0 %2932
        %2934 = vrot.lane.b32.xlu0 %v2867, 28
        %v2935 = vpop.permute.xlu0 %2934
        %2936 = vrot.lane.b32.xlu0 %v2869, 28
        %v2937 = vpop.permute.xlu0 %2936
        %2938 = vrot.lane.b32.xlu0 %v2872, 28
        %v2939 = vpop.permute.xlu0 %2938
        %2940 = vrot.lane.b32.xlu0 %v2874, 28
        %v2941 = vpop.permute.xlu0 %2940
        %2942 = vrot.lane.b32.xlu0 %v2877, 28
        %v2943 = vpop.permute.xlu0 %2942
        %2944 = vrot.lane.b32.xlu0 %v2879, 28
        %v2945 = vpop.permute.xlu0 %2944
        %2946 = vrot.lane.b32.xlu0 %v2882, 28
        %v2947 = vpop.permute.xlu0 %2946
        %2948 = vrot.lane.b32.xlu0 %v2884, 28
        %v2949 = vpop.permute.xlu0 %2948
        %2950 = vrot.lane.b32.xlu0 %v2887, 28
        %v2951 = vpop.permute.xlu0 %2950
        %2952 = vrot.lane.b32.xlu0 %v2889, 28
        %v2953 = vpop.permute.xlu0 %2952
        %vm2986 = vcmask 261344
        %2987 = vst.msk [vmem:[#allocation2] sm:$0xff] %vm2986, %v2891
        %2988 = vst.msk [vmem:[#allocation2 + $0x8] sm:$0xff] %vm2986, %v2893
        %2989 = vst.msk [vmem:[#allocation2 + $0x10] sm:$0xff] %vm2986, %v2895
        %2990 = vst.msk [vmem:[#allocation2 + $0x18] sm:$0xff] %vm2986, %v2897
        %2991 = vst.msk [vmem:[#allocation2 + $0x20] sm:$0xff] %vm2986, %v2899
        %2992 = vst.msk [vmem:[#allocation2 + $0x28] sm:$0xff] %vm2986, %v2901
        %2993 = vst.msk [vmem:[#allocation2 + $0x30] sm:$0xff] %vm2986, %v2903
        %2994 = vst.msk [vmem:[#allocation2 + $0x38] sm:$0xff] %vm2986, %v2905
        %2995 = vst.msk [vmem:[#allocation2 + $0x40] sm:$0xff] %vm2986, %v2907
        %2996 = vst.msk [vmem:[#allocation2 + $0x48] sm:$0xff] %vm2986, %v2909
        %2997 = vst.msk [vmem:[#allocation2 + $0x50] sm:$0xff] %vm2986, %v2911
        %2998 = vst.msk [vmem:[#allocation2 + $0x58] sm:$0xff] %vm2986, %v2913
        %2999 = vst.msk [vmem:[#allocation2 + $0x60] sm:$0xff] %vm2986, %v2915
        %3000 = vst.msk [vmem:[#allocation2 + $0x68] sm:$0xff] %vm2986, %v2917
        %3001 = vst.msk [vmem:[#allocation2 + $0x70] sm:$0xff] %vm2986, %v2919
        %3002 = vst.msk [vmem:[#allocation2 + $0x78] sm:$0xff] %vm2986, %v2921
        %3003 = vst.msk [vmem:[#allocation2 + $0x80] sm:$0xff] %vm2986, %v2923
        %3004 = vst.msk [vmem:[#allocation2 + $0x88] sm:$0xff] %vm2986, %v2925
        %3005 = vst.msk [vmem:[#allocation2 + $0x90] sm:$0xff] %vm2986, %v2927
        %3006 = vst.msk [vmem:[#allocation2 + $0x98] sm:$0xff] %vm2986, %v2929
        %3007 = vst.msk [vmem:[#allocation2 + $0xa0] sm:$0xff] %vm2986, %v2931
        %3008 = vst.msk [vmem:[#allocation2 + $0xa8] sm:$0xff] %vm2986, %v2933
        %3009 = vst.msk [vmem:[#allocation2 + $0xb0] sm:$0xff] %vm2986, %v2935
        %3010 = vst.msk [vmem:[#allocation2 + $0xb8] sm:$0xff] %vm2986, %v2937
        %3011 = vst.msk [vmem:[#allocation2 + $0xc0] sm:$0xff] %vm2986, %v2939
        %3012 = vst.msk [vmem:[#allocation2 + $0xc8] sm:$0xff] %vm2986, %v2941
        %3013 = vst.msk [vmem:[#allocation2 + $0xd0] sm:$0xff] %vm2986, %v2943
        %3014 = vst.msk [vmem:[#allocation2 + $0xd8] sm:$0xff] %vm2986, %v2945
        %3015 = vst.msk [vmem:[#allocation2 + $0xe0] sm:$0xff] %vm2986, %v2947
        %3016 = vst.msk [vmem:[#allocation2 + $0xe8] sm:$0xff] %vm2986, %v2949
        %3017 = vst.msk [vmem:[#allocation2 + $0xf0] sm:$0xff] %vm2986, %v2951
        %3018 = vst.msk [vmem:[#allocation2 + $0xf8] sm:$0xff] %vm2986, %v2953
        %v3019 = vld [vmem:[%s2360] sm:$0x3]
        %v3020 = vld [vmem:[%s2360 + $0x2] sm:$0x3]
        %v3021 = vld [vmem:[%s2360 + $0x4] sm:$0x1]
        %v3022 = vld [vmem:[%s2360 + $0x6] sm:$0x3]
        %v3023 = vld [vmem:[%s2360 + $0x8] sm:$0x3]
        %v3024 = vld [vmem:[%s2360 + $0xa] sm:$0x1]
        %v3025 = vld [vmem:[%s2360 + $0xc] sm:$0x3]
        %v3026 = vld [vmem:[%s2360 + $0xe] sm:$0x3]
        %v3027 = vld [vmem:[%s2360 + $0x10] sm:$0x1]
        %v3028 = vld [vmem:[%s2360 + $0x12] sm:$0x3]
        %v3029 = vld [vmem:[%s2360 + $0x14] sm:$0x3]
        %v3030 = vld [vmem:[%s2360 + $0x16] sm:$0x1]
        %v3031 = vld [vmem:[%s2360 + $0x18] sm:$0x3]
        %v3032 = vld [vmem:[%s2360 + $0x1a] sm:$0x3]
        %v3033 = vld [vmem:[%s2360 + $0x1c] sm:$0x1]
        %v3034 = vld [vmem:[%s2360 + $0x1e] sm:$0x3]
        %v3035 = vld [vmem:[%s2360 + $0x20] sm:$0x3]
        %v3036 = vld [vmem:[%s2360 + $0x22] sm:$0x1]
        %v3037 = vld [vmem:[%s2360 + $0x24] sm:$0x3]
        %v3038 = vld [vmem:[%s2360 + $0x26] sm:$0x3]
        %v3039 = vld [vmem:[%s2360 + $0x28] sm:$0x1]
        %v3040 = vld [vmem:[%s2360 + $0x2a] sm:$0x3]
        %v3041 = vld [vmem:[%s2360 + $0x2c] sm:$0x3]
        %v3042 = vld [vmem:[%s2360 + $0x2e] sm:$0x1]
        %v3043 = vld [vmem:[%s2360 + $0x30] sm:$0x3]
        %v3044 = vld [vmem:[%s2360 + $0x32] sm:$0x3]
        %v3045 = vld [vmem:[%s2360 + $0x34] sm:$0x1]
        %v3046 = vld [vmem:[%s2360 + $0x36] sm:$0x3]
        %v3047 = vld [vmem:[%s2360 + $0x38] sm:$0x3]
        %v3048 = vld [vmem:[%s2360 + $0x3a] sm:$0x1]
        %v3049 = vld [vmem:[%s2360 + $0x3c] sm:$0x3]
        %v3050 = vld [vmem:[%s2360 + $0x3e] sm:$0x3]
        %v3051 = vld [vmem:[%s2360 + $0x40] sm:$0x1]
        %v3052 = vld [vmem:[%s2360 + $0x42] sm:$0x3]
        %v3053 = vld [vmem:[%s2360 + $0x44] sm:$0x3]
        %v3054 = vld [vmem:[%s2360 + $0x46] sm:$0x1]
        %v3055 = vld [vmem:[%s2360 + $0x48] sm:$0x3]
        %v3056 = vld [vmem:[%s2360 + $0x4a] sm:$0x3]
        %v3057 = vld [vmem:[%s2360 + $0x4c] sm:$0x1]
        %v3058 = vld [vmem:[%s2360 + $0x4e] sm:$0x3]
        %v3059 = vld [vmem:[%s2360 + $0x50] sm:$0x3]
        %v3060 = vld [vmem:[%s2360 + $0x52] sm:$0x1]
        %v3061 = vld [vmem:[%s2360 + $0x54] sm:$0x3]
        %v3062 = vld [vmem:[%s2360 + $0x56] sm:$0x3]
        %v3063 = vld [vmem:[%s2360 + $0x58] sm:$0x1]
        %v3064 = vld [vmem:[%s2360 + $0x5a] sm:$0x3]
        %v3065 = vld [vmem:[%s2360 + $0x5c] sm:$0x3]
        %v3066 = vld [vmem:[%s2360 + $0x5e] sm:$0x1]
        %v3067 = vunpack.c.0.s8 %v3019
        %v3068 = vunpack.c.0.s8 %v3020
        %v3069 = vunpack.c.0.s8 %v3021
        %v3070 = vunpack.c.0.s8 %v3022
        %v3071 = vunpack.c.0.s8 %v3023
        %v3072 = vunpack.c.0.s8 %v3024
        %v3073 = vunpack.c.0.s8 %v3025
        %v3074 = vunpack.c.0.s8 %v3026
        %v3075 = vunpack.c.0.s8 %v3027
        %v3076 = vunpack.c.0.s8 %v3028
        %v3077 = vunpack.c.0.s8 %v3029
        %v3078 = vunpack.c.0.s8 %v3030
        %v3079 = vunpack.c.0.s8 %v3031
        %v3080 = vunpack.c.0.s8 %v3032
        %v3081 = vunpack.c.0.s8 %v3033
        %v3082 = vunpack.c.0.s8 %v3034
        %v3083 = vunpack.c.0.s8 %v3035
        %v3084 = vunpack.c.0.s8 %v3036
        %v3085 = vunpack.c.0.s8 %v3037
        %v3086 = vunpack.c.0.s8 %v3038
        %v3087 = vunpack.c.0.s8 %v3039
        %v3088 = vunpack.c.0.s8 %v3040
        %v3089 = vunpack.c.0.s8 %v3041
        %v3090 = vunpack.c.0.s8 %v3042
        %v3091 = vunpack.c.0.s8 %v3043
        %v3092 = vunpack.c.0.s8 %v3044
        %v3093 = vunpack.c.0.s8 %v3045
        %v3094 = vunpack.c.0.s8 %v3046
        %v3095 = vunpack.c.0.s8 %v3047
        %v3096 = vunpack.c.0.s8 %v3048
        %v3097 = vunpack.c.0.s8 %v3049
        %v3098 = vunpack.c.0.s8 %v3050
        %v3099 = vunpack.c.0.s8 %v3051
        %v3100 = vunpack.c.0.s8 %v3052
        %v3101 = vunpack.c.0.s8 %v3053
        %v3102 = vunpack.c.0.s8 %v3054
        %v3103 = vunpack.c.0.s8 %v3055
        %v3104 = vunpack.c.0.s8 %v3056
        %v3105 = vunpack.c.0.s8 %v3057
        %v3106 = vunpack.c.0.s8 %v3058
        %v3107 = vunpack.c.0.s8 %v3059
        %v3108 = vunpack.c.0.s8 %v3060
        %v3109 = vunpack.c.0.s8 %v3061
        %v3110 = vunpack.c.0.s8 %v3062
        %v3111 = vunpack.c.0.s8 %v3063
        %v3112 = vunpack.c.0.s8 %v3064
        %v3113 = vunpack.c.0.s8 %v3065
        %v3114 = vunpack.c.0.s8 %v3066
        %v3115 = vcvt.s32.f32 %v3067
        %v3116 = vcvt.s32.f32 %v3068
        %v3117 = vcvt.s32.f32 %v3069
        %v3118 = vcvt.s32.f32 %v3070
        %v3119 = vcvt.s32.f32 %v3071
        %v3120 = vcvt.s32.f32 %v3072
        %v3121 = vcvt.s32.f32 %v3073
        %v3122 = vcvt.s32.f32 %v3074
        %v3123 = vcvt.s32.f32 %v3075
        %v3124 = vcvt.s32.f32 %v3076
        %v3125 = vcvt.s32.f32 %v3077
        %v3126 = vcvt.s32.f32 %v3078
        %v3127 = vcvt.s32.f32 %v3079
        %v3128 = vcvt.s32.f32 %v3080
        %v3129 = vcvt.s32.f32 %v3081
        %v3130 = vcvt.s32.f32 %v3082
        %v3131 = vcvt.s32.f32 %v3083
        %v3132 = vcvt.s32.f32 %v3084
        %v3133 = vcvt.s32.f32 %v3085
        %v3134 = vcvt.s32.f32 %v3086
        %v3135 = vcvt.s32.f32 %v3087
        %v3136 = vcvt.s32.f32 %v3088
        %v3137 = vcvt.s32.f32 %v3089
        %v3138 = vcvt.s32.f32 %v3090
        %v3139 = vcvt.s32.f32 %v3091
        %v3140 = vcvt.s32.f32 %v3092
        %v3141 = vcvt.s32.f32 %v3093
        %v3142 = vcvt.s32.f32 %v3094
        %v3143 = vcvt.s32.f32 %v3095
        %v3144 = vcvt.s32.f32 %v3096
        %v3145 = vcvt.s32.f32 %v3097
        %v3146 = vcvt.s32.f32 %v3098
        %v3147 = vcvt.s32.f32 %v3099
        %v3148 = vcvt.s32.f32 %v3100
        %v3149 = vcvt.s32.f32 %v3101
        %v3150 = vcvt.s32.f32 %v3102
        %v3151 = vcvt.s32.f32 %v3103
        %v3152 = vcvt.s32.f32 %v3104
        %v3153 = vcvt.s32.f32 %v3105
        %v3154 = vcvt.s32.f32 %v3106
        %v3155 = vcvt.s32.f32 %v3107
        %v3156 = vcvt.s32.f32 %v3108
        %v3157 = vcvt.s32.f32 %v3109
        %v3158 = vcvt.s32.f32 %v3110
        %v3159 = vcvt.s32.f32 %v3111
        %v3160 = vcvt.s32.f32 %v3112
        %v3161 = vcvt.s32.f32 %v3113
        %v3162 = vcvt.s32.f32 %v3114
        %v3211 = vrot.slane %v3115, 2
        %v3212 = vrot.slane %v3116, 2
        %v3213 = vsel %vm1084, %v3211, %v3212
        %v3214 = vrot.slane %v3117, 2
        %v3215 = vsel %vm1084, %v3212, %v3214
        %v3216 = vrot.slane %v3118, 2
        %v3217 = vrot.slane %v3119, 2
        %v3218 = vsel %vm1084, %v3216, %v3217
        %v3219 = vrot.slane %v3120, 2
        %v3220 = vsel %vm1084, %v3217, %v3219
        %v3221 = vrot.slane %v3121, 2
        %v3222 = vrot.slane %v3122, 2
        %v3223 = vsel %vm1084, %v3221, %v3222
        %v3224 = vrot.slane %v3123, 2
        %v3225 = vsel %vm1084, %v3222, %v3224
        %v3226 = vrot.slane %v3124, 2
        %v3227 = vrot.slane %v3125, 2
        %v3228 = vsel %vm1084, %v3226, %v3227
        %v3229 = vrot.slane %v3126, 2
        %v3230 = vsel %vm1084, %v3227, %v3229
        %v3231 = vrot.slane %v3127, 2
        %v3232 = vrot.slane %v3128, 2
        %v3233 = vsel %vm1084, %v3231, %v3232
        %v3234 = vrot.slane %v3129, 2
        %v3235 = vsel %vm1084, %v3232, %v3234
        %v3236 = vrot.slane %v3130, 2
        %v3237 = vrot.slane %v3131, 2
        %v3238 = vsel %vm1084, %v3236, %v3237
        %v3239 = vrot.slane %v3132, 2
        %v3240 = vsel %vm1084, %v3237, %v3239
        %v3241 = vrot.slane %v3133, 2
        %v3242 = vrot.slane %v3134, 2
        %v3243 = vsel %vm1084, %v3241, %v3242
        %v3244 = vrot.slane %v3135, 2
        %v3245 = vsel %vm1084, %v3242, %v3244
        %v3246 = vrot.slane %v3136, 2
        %v3247 = vrot.slane %v3137, 2
        %v3248 = vsel %vm1084, %v3246, %v3247
        %v3249 = vrot.slane %v3138, 2
        %v3250 = vsel %vm1084, %v3247, %v3249
        %v3251 = vrot.slane %v3139, 2
        %v3252 = vrot.slane %v3140, 2
        %v3253 = vsel %vm1084, %v3251, %v3252
        %v3254 = vrot.slane %v3141, 2
        %v3255 = vsel %vm1084, %v3252, %v3254
        %v3256 = vrot.slane %v3142, 2
        %v3257 = vrot.slane %v3143, 2
        %v3258 = vsel %vm1084, %v3256, %v3257
        %v3259 = vrot.slane %v3144, 2
        %v3260 = vsel %vm1084, %v3257, %v3259
        %v3261 = vrot.slane %v3145, 2
        %v3262 = vrot.slane %v3146, 2
        %v3263 = vsel %vm1084, %v3261, %v3262
        %v3264 = vrot.slane %v3147, 2
        %v3265 = vsel %vm1084, %v3262, %v3264
        %v3266 = vrot.slane %v3148, 2
        %v3267 = vrot.slane %v3149, 2
        %v3268 = vsel %vm1084, %v3266, %v3267
        %v3269 = vrot.slane %v3150, 2
        %v3270 = vsel %vm1084, %v3267, %v3269
        %v3271 = vrot.slane %v3151, 2
        %v3272 = vrot.slane %v3152, 2
        %v3273 = vsel %vm1084, %v3271, %v3272
        %v3274 = vrot.slane %v3153, 2
        %v3275 = vsel %vm1084, %v3272, %v3274
        %v3276 = vrot.slane %v3154, 2
        %v3277 = vrot.slane %v3155, 2
        %v3278 = vsel %vm1084, %v3276, %v3277
        %v3279 = vrot.slane %v3156, 2
        %v3280 = vsel %vm1084, %v3277, %v3279
        %v3281 = vrot.slane %v3157, 2
        %v3282 = vrot.slane %v3158, 2
        %v3283 = vsel %vm1084, %v3281, %v3282
        %v3284 = vrot.slane %v3159, 2
        %v3285 = vsel %vm1084, %v3282, %v3284
        %v3286 = vrot.slane %v3160, 2
        %v3287 = vrot.slane %v3161, 2
        %v3288 = vsel %vm1084, %v3286, %v3287
        %v3289 = vrot.slane %v3162, 2
        %v3290 = vsel %vm1084, %v3287, %v3289
        %3291 = vrot.lane.b32.xlu0 %v3213, 32
        %v3292 = vpop.permute.xlu0 %3291
        %3293 = vrot.lane.b32.xlu0 %v3215, 32
        %v3294 = vpop.permute.xlu0 %3293
        %3295 = vrot.lane.b32.xlu0 %v3218, 32
        %v3296 = vpop.permute.xlu0 %3295
        %3297 = vrot.lane.b32.xlu0 %v3220, 32
        %v3298 = vpop.permute.xlu0 %3297
        %3299 = vrot.lane.b32.xlu0 %v3223, 32
        %v3300 = vpop.permute.xlu0 %3299
        %3301 = vrot.lane.b32.xlu0 %v3225, 32
        %v3302 = vpop.permute.xlu0 %3301
        %3303 = vrot.lane.b32.xlu0 %v3228, 32
        %v3304 = vpop.permute.xlu0 %3303
        %3305 = vrot.lane.b32.xlu0 %v3230, 32
        %v3306 = vpop.permute.xlu0 %3305
        %3307 = vrot.lane.b32.xlu0 %v3233, 32
        %v3308 = vpop.permute.xlu0 %3307
        %3309 = vrot.lane.b32.xlu0 %v3235, 32
        %v3310 = vpop.permute.xlu0 %3309
        %3311 = vrot.lane.b32.xlu0 %v3238, 32
        %v3312 = vpop.permute.xlu0 %3311
        %3313 = vrot.lane.b32.xlu0 %v3240, 32
        %v3314 = vpop.permute.xlu0 %3313
        %3315 = vrot.lane.b32.xlu0 %v3243, 32
        %v3316 = vpop.permute.xlu0 %3315
        %3317 = vrot.lane.b32.xlu0 %v3245, 32
        %v3318 = vpop.permute.xlu0 %3317
        %3319 = vrot.lane.b32.xlu0 %v3248, 32
        %v3320 = vpop.permute.xlu0 %3319
        %3321 = vrot.lane.b32.xlu0 %v3250, 32
        %v3322 = vpop.permute.xlu0 %3321
        %3323 = vrot.lane.b32.xlu0 %v3253, 32
        %v3324 = vpop.permute.xlu0 %3323
        %3325 = vrot.lane.b32.xlu0 %v3255, 32
        %v3326 = vpop.permute.xlu0 %3325
        %3327 = vrot.lane.b32.xlu0 %v3258, 32
        %v3328 = vpop.permute.xlu0 %3327
        %3329 = vrot.lane.b32.xlu0 %v3260, 32
        %v3330 = vpop.permute.xlu0 %3329
        %3331 = vrot.lane.b32.xlu0 %v3263, 32
        %v3332 = vpop.permute.xlu0 %3331
        %3333 = vrot.lane.b32.xlu0 %v3265, 32
        %v3334 = vpop.permute.xlu0 %3333
        %3335 = vrot.lane.b32.xlu0 %v3268, 32
        %v3336 = vpop.permute.xlu0 %3335
        %3337 = vrot.lane.b32.xlu0 %v3270, 32
        %v3338 = vpop.permute.xlu0 %3337
        %3339 = vrot.lane.b32.xlu0 %v3273, 32
        %v3340 = vpop.permute.xlu0 %3339
        %3341 = vrot.lane.b32.xlu0 %v3275, 32
        %v3342 = vpop.permute.xlu0 %3341
        %3343 = vrot.lane.b32.xlu0 %v3278, 32
        %v3344 = vpop.permute.xlu0 %3343
        %3345 = vrot.lane.b32.xlu0 %v3280, 32
        %v3346 = vpop.permute.xlu0 %3345
        %3347 = vrot.lane.b32.xlu0 %v3283, 32
        %v3348 = vpop.permute.xlu0 %3347
        %3349 = vrot.lane.b32.xlu0 %v3285, 32
        %v3350 = vpop.permute.xlu0 %3349
        %3351 = vrot.lane.b32.xlu0 %v3288, 32
        %v3352 = vpop.permute.xlu0 %3351
        %3353 = vrot.lane.b32.xlu0 %v3290, 32
        %v3354 = vpop.permute.xlu0 %3353
        %vm3387 = vcmask 294144
        %3388 = vst.msk [vmem:[#allocation2] sm:$0xff] %vm3387, %v3292
        %3389 = vst.msk [vmem:[#allocation2 + $0x8] sm:$0xff] %vm3387, %v3294
        %3390 = vst.msk [vmem:[#allocation2 + $0x10] sm:$0xff] %vm3387, %v3296
        %3391 = vst.msk [vmem:[#allocation2 + $0x18] sm:$0xff] %vm3387, %v3298
        %3392 = vst.msk [vmem:[#allocation2 + $0x20] sm:$0xff] %vm3387, %v3300
        %3393 = vst.msk [vmem:[#allocation2 + $0x28] sm:$0xff] %vm3387, %v3302
        %3394 = vst.msk [vmem:[#allocation2 + $0x30] sm:$0xff] %vm3387, %v3304
        %3395 = vst.msk [vmem:[#allocation2 + $0x38] sm:$0xff] %vm3387, %v3306
        %3396 = vst.msk [vmem:[#allocation2 + $0x40] sm:$0xff] %vm3387, %v3308
        %3397 = vst.msk [vmem:[#allocation2 + $0x48] sm:$0xff] %vm3387, %v3310
        %3398 = vst.msk [vmem:[#allocation2 + $0x50] sm:$0xff] %vm3387, %v3312
        %3399 = vst.msk [vmem:[#allocation2 + $0x58] sm:$0xff] %vm3387, %v3314
        %3400 = vst.msk [vmem:[#allocation2 + $0x60] sm:$0xff] %vm3387, %v3316
        %3401 = vst.msk [vmem:[#allocation2 + $0x68] sm:$0xff] %vm3387, %v3318
        %3402 = vst.msk [vmem:[#allocation2 + $0x70] sm:$0xff] %vm3387, %v3320
        %3403 = vst.msk [vmem:[#allocation2 + $0x78] sm:$0xff] %vm3387, %v3322
        %3404 = vst.msk [vmem:[#allocation2 + $0x80] sm:$0xff] %vm3387, %v3324
        %3405 = vst.msk [vmem:[#allocation2 + $0x88] sm:$0xff] %vm3387, %v3326
        %3406 = vst.msk [vmem:[#allocation2 + $0x90] sm:$0xff] %vm3387, %v3328
        %3407 = vst.msk [vmem:[#allocation2 + $0x98] sm:$0xff] %vm3387, %v3330
        %3408 = vst.msk [vmem:[#allocation2 + $0xa0] sm:$0xff] %vm3387, %v3332
        %3409 = vst.msk [vmem:[#allocation2 + $0xa8] sm:$0xff] %vm3387, %v3334
        %3410 = vst.msk [vmem:[#allocation2 + $0xb0] sm:$0xff] %vm3387, %v3336
        %3411 = vst.msk [vmem:[#allocation2 + $0xb8] sm:$0xff] %vm3387, %v3338
        %3412 = vst.msk [vmem:[#allocation2 + $0xc0] sm:$0xff] %vm3387, %v3340
        %3413 = vst.msk [vmem:[#allocation2 + $0xc8] sm:$0xff] %vm3387, %v3342
        %3414 = vst.msk [vmem:[#allocation2 + $0xd0] sm:$0xff] %vm3387, %v3344
        %3415 = vst.msk [vmem:[#allocation2 + $0xd8] sm:$0xff] %vm3387, %v3346
        %3416 = vst.msk [vmem:[#allocation2 + $0xe0] sm:$0xff] %vm3387, %v3348
        %3417 = vst.msk [vmem:[#allocation2 + $0xe8] sm:$0xff] %vm3387, %v3350
        %3418 = vst.msk [vmem:[#allocation2 + $0xf0] sm:$0xff] %vm3387, %v3352
        %3419 = vst.msk [vmem:[#allocation2 + $0xf8] sm:$0xff] %vm3387, %v3354
        %v3420 = vld [vmem:[#allocation2] sm:$0xff]
        %v3421 = vld [vmem:[#allocation2 + $0x8] sm:$0xff]
        %v3422 = vld [vmem:[#allocation2 + $0x10] sm:$0xff]
        %v3423 = vld [vmem:[#allocation2 + $0x18] sm:$0xff]
        %v3424 = vld [vmem:[#allocation2 + $0x20] sm:$0xff]
        %v3425 = vld [vmem:[#allocation2 + $0x28] sm:$0xff]
        %v3426 = vld [vmem:[#allocation2 + $0x30] sm:$0xff]
        %v3427 = vld [vmem:[#allocation2 + $0x38] sm:$0xff]
        %v3428 = vld [vmem:[#allocation2 + $0x40] sm:$0xff]
        %v3429 = vld [vmem:[#allocation2 + $0x48] sm:$0xff]
        %v3430 = vld [vmem:[#allocation2 + $0x50] sm:$0xff]
        %v3431 = vld [vmem:[#allocation2 + $0x58] sm:$0xff]
        %v3432 = vld [vmem:[#allocation2 + $0x60] sm:$0xff]
        %v3433 = vld [vmem:[#allocation2 + $0x68] sm:$0xff]
        %v3434 = vld [vmem:[#allocation2 + $0x70] sm:$0xff]
        %v3435 = vld [vmem:[#allocation2 + $0x78] sm:$0xff]
        %v3436 = vld [vmem:[#allocation2 + $0x80] sm:$0xff]
        %v3437 = vld [vmem:[#allocation2 + $0x88] sm:$0xff]
        %v3438 = vld [vmem:[#allocation2 + $0x90] sm:$0xff]
        %v3439 = vld [vmem:[#allocation2 + $0x98] sm:$0xff]
        %v3440 = vld [vmem:[#allocation2 + $0xa0] sm:$0xff]
        %v3441 = vld [vmem:[#allocation2 + $0xa8] sm:$0xff]
        %v3442 = vld [vmem:[#allocation2 + $0xb0] sm:$0xff]
        %v3443 = vld [vmem:[#allocation2 + $0xb8] sm:$0xff]
        %v3444 = vld [vmem:[#allocation2 + $0xc0] sm:$0xff]
        %v3445 = vld [vmem:[#allocation2 + $0xc8] sm:$0xff]
        %v3446 = vld [vmem:[#allocation2 + $0xd0] sm:$0xff]
        %v3447 = vld [vmem:[#allocation2 + $0xd8] sm:$0xff]
        %v3448 = vld [vmem:[#allocation2 + $0xe0] sm:$0xff]
        %v3449 = vld [vmem:[#allocation2 + $0xe8] sm:$0xff]
        %v3450 = vld [vmem:[#allocation2 + $0xf0] sm:$0xff]
        %v3451 = vld [vmem:[#allocation2 + $0xf8] sm:$0xff]
        %v3452 = vpack.c.bf16 %v3421, %v3420
        %v3453 = vpack.c.bf16 %v3423, %v3422
        %v3454 = vpack.c.bf16 %v3425, %v3424
        %v3455 = vpack.c.bf16 %v3427, %v3426
        %v3456 = vpack.c.bf16 %v3429, %v3428
        %v3457 = vpack.c.bf16 %v3431, %v3430
        %v3458 = vpack.c.bf16 %v3433, %v3432
        %v3459 = vpack.c.bf16 %v3435, %v3434
        %v3460 = vpack.c.bf16 %v3437, %v3436
        %v3461 = vpack.c.bf16 %v3439, %v3438
        %v3462 = vpack.c.bf16 %v3441, %v3440
        %v3463 = vpack.c.bf16 %v3443, %v3442
        %v3464 = vpack.c.bf16 %v3445, %v3444
        %v3465 = vpack.c.bf16 %v3447, %v3446
        %v3466 = vpack.c.bf16 %v3449, %v3448
        %v3467 = vpack.c.bf16 %v3451, %v3450
        %v3468 = vld [vmem:[%s310] sm:$0xff]
        %v3469 = vld [vmem:[%s310 + $0x8] sm:$0xff]
        %v3470 = vld [vmem:[%s310 + $0x10] sm:$0xff]
        %v3471 = vld [vmem:[%s310 + $0x18] sm:$0xff]
        %v3472 = vunpack.c.0.s8 %v3468
        %v3473 = vunpack.c.1.s8 %v3468
        %v3474 = vunpack.c.2.s8 %v3468
        %v3475 = vunpack.c.3.s8 %v3468
        %v3476 = vunpack.c.0.s8 %v3469
        %v3477 = vunpack.c.1.s8 %v3469
        %v3478 = vunpack.c.2.s8 %v3469
        %v3479 = vunpack.c.3.s8 %v3469
        %v3480 = vunpack.c.0.s8 %v3470
        %v3481 = vunpack.c.1.s8 %v3470
        %v3482 = vunpack.c.2.s8 %v3470
        %v3483 = vunpack.c.3.s8 %v3470
        %v3484 = vunpack.c.0.s8 %v3471
        %v3485 = vunpack.c.1.s8 %v3471
        %v3486 = vunpack.c.2.s8 %v3471
        %v3487 = vunpack.c.3.s8 %v3471
        %v3488 = vcvt.s32.f32 %v3472
        %v3489 = vcvt.s32.f32 %v3473
        %v3490 = vcvt.s32.f32 %v3474
        %v3491 = vcvt.s32.f32 %v3475
        %v3492 = vcvt.s32.f32 %v3476
        %v3493 = vcvt.s32.f32 %v3477
        %v3494 = vcvt.s32.f32 %v3478
        %v3495 = vcvt.s32.f32 %v3479
        %v3496 = vcvt.s32.f32 %v3480
        %v3497 = vcvt.s32.f32 %v3481
        %v3498 = vcvt.s32.f32 %v3482
        %v3499 = vcvt.s32.f32 %v3483
        %v3500 = vcvt.s32.f32 %v3484
        %v3501 = vcvt.s32.f32 %v3485
        %v3502 = vcvt.s32.f32 %v3486
        %v3503 = vcvt.s32.f32 %v3487
        %v3504 = vpack.c.bf16 %v3489, %v3488
        %v3505 = vpack.c.bf16 %v3491, %v3490
        %v3506 = vpack.c.bf16 %v3493, %v3492
        %v3507 = vpack.c.bf16 %v3495, %v3494
        %v3508 = vpack.c.bf16 %v3497, %v3496
        %v3509 = vpack.c.bf16 %v3499, %v3498
        %v3510 = vpack.c.bf16 %v3501, %v3500
        %v3511 = vpack.c.bf16 %v3503, %v3502
        %3512 = vmatpush.bf16.msra.mxu0 %v3511
        %3513 = vmatpush.bf16.msra.mxu0 %v3510
        %3514 = vmatpush.bf16.msra.mxu0 %v3509
        %3515 = vmatpush.bf16.msra.mxu0 %v3508
        %3516 = vmatpush.bf16.msra.mxu0 %v3507
        %3517 = vmatpush.bf16.msra.mxu0 %v3506
        %3518 = vmatpush.bf16.msra.mxu0 %v3505
        %3519 = vmatpush.bf16.msra.mxu0 %v3504
        %3520 = vmatmul.bf16.gmra.mxu0 %v3452
        %v3521 = vpop.f32.mrf.mxu0
        %v3522 = vadd.f32 0.0, %v3521
        %v3523 = vpop.f32.mrf.mxu0
        %v3524 = vadd.f32 0.0, %v3523
        %3525 = vmatmul.bf16.gmra.mxu0 %v3453
        %v3526 = vpop.f32.mrf.mxu0
        %v3527 = vadd.f32 0.0, %v3526
        %v3528 = vpop.f32.mrf.mxu0
        %v3529 = vadd.f32 0.0, %v3528
        %3530 = vmatmul.bf16.gmra.mxu0 %v3454
        %v3531 = vpop.f32.mrf.mxu0
        %v3532 = vadd.f32 0.0, %v3531
        %v3533 = vpop.f32.mrf.mxu0
        %v3534 = vadd.f32 0.0, %v3533
        %3535 = vmatmul.bf16.gmra.mxu0 %v3455
        %v3536 = vpop.f32.mrf.mxu0
        %v3537 = vadd.f32 0.0, %v3536
        %v3538 = vpop.f32.mrf.mxu0
        %v3539 = vadd.f32 0.0, %v3538
        %3540 = vmatmul.bf16.gmra.mxu0 %v3456
        %v3541 = vpop.f32.mrf.mxu0
        %v3542 = vadd.f32 0.0, %v3541
        %v3543 = vpop.f32.mrf.mxu0
        %v3544 = vadd.f32 0.0, %v3543
        %3545 = vmatmul.bf16.gmra.mxu0 %v3457
        %v3546 = vpop.f32.mrf.mxu0
        %v3547 = vadd.f32 0.0, %v3546
        %v3548 = vpop.f32.mrf.mxu0
        %v3549 = vadd.f32 0.0, %v3548
        %3550 = vmatmul.bf16.gmra.mxu0 %v3458
        %v3551 = vpop.f32.mrf.mxu0
        %v3552 = vadd.f32 0.0, %v3551
        %v3553 = vpop.f32.mrf.mxu0
        %v3554 = vadd.f32 0.0, %v3553
        %3555 = vmatmul.bf16.gmra.mxu0 %v3459
        %v3556 = vpop.f32.mrf.mxu0
        %v3557 = vadd.f32 0.0, %v3556
        %v3558 = vpop.f32.mrf.mxu0
        %v3559 = vadd.f32 0.0, %v3558
        %3560 = vmatmul.bf16.gmra.mxu0 %v3460
        %v3561 = vpop.f32.mrf.mxu0
        %v3562 = vadd.f32 0.0, %v3561
        %v3563 = vpop.f32.mrf.mxu0
        %v3564 = vadd.f32 0.0, %v3563
        %3565 = vmatmul.bf16.gmra.mxu0 %v3461
        %v3566 = vpop.f32.mrf.mxu0
        %v3567 = vadd.f32 0.0, %v3566
        %v3568 = vpop.f32.mrf.mxu0
        %v3569 = vadd.f32 0.0, %v3568
        %3570 = vmatmul.bf16.gmra.mxu0 %v3462
        %v3571 = vpop.f32.mrf.mxu0
        %v3572 = vadd.f32 0.0, %v3571
        %v3573 = vpop.f32.mrf.mxu0
        %v3574 = vadd.f32 0.0, %v3573
        %3575 = vmatmul.bf16.gmra.mxu0 %v3463
        %v3576 = vpop.f32.mrf.mxu0
        %v3577 = vadd.f32 0.0, %v3576
        %v3578 = vpop.f32.mrf.mxu0
        %v3579 = vadd.f32 0.0, %v3578
        %3580 = vmatmul.bf16.gmra.mxu0 %v3464
        %v3581 = vpop.f32.mrf.mxu0
        %v3582 = vadd.f32 0.0, %v3581
        %v3583 = vpop.f32.mrf.mxu0
        %v3584 = vadd.f32 0.0, %v3583
        %3585 = vmatmul.bf16.gmra.mxu0 %v3465
        %v3586 = vpop.f32.mrf.mxu0
        %v3587 = vadd.f32 0.0, %v3586
        %v3588 = vpop.f32.mrf.mxu0
        %v3589 = vadd.f32 0.0, %v3588
        %3590 = vmatmul.bf16.gmra.mxu0 %v3466
        %v3591 = vpop.f32.mrf.mxu0
        %v3592 = vadd.f32 0.0, %v3591
        %v3593 = vpop.f32.mrf.mxu0
        %v3594 = vadd.f32 0.0, %v3593
        %3595 = vmatmul.bf16.gmra.mxu0 %v3467
        %v3596 = vpop.f32.mrf.mxu0
        %v3597 = vadd.f32 0.0, %v3596
        %v3598 = vpop.f32.mrf.mxu0
        %v3599 = vadd.f32 0.0, %v3598
        %3600 = vdwg.mxu0
        %v3601 = vcvt.f32.s32.to.zero.pseudo %v3522
        %v3602 = vcvt.f32.s32.to.zero.pseudo %v3524
        %v3603 = vcvt.f32.s32.to.zero.pseudo %v3527
        %v3604 = vcvt.f32.s32.to.zero.pseudo %v3529
        %v3605 = vcvt.f32.s32.to.zero.pseudo %v3532
        %v3606 = vcvt.f32.s32.to.zero.pseudo %v3534
        %v3607 = vcvt.f32.s32.to.zero.pseudo %v3537
        %v3608 = vcvt.f32.s32.to.zero.pseudo %v3539
        %v3609 = vcvt.f32.s32.to.zero.pseudo %v3542
        %v3610 = vcvt.f32.s32.to.zero.pseudo %v3544
        %v3611 = vcvt.f32.s32.to.zero.pseudo %v3547
        %v3612 = vcvt.f32.s32.to.zero.pseudo %v3549
        %v3613 = vcvt.f32.s32.to.zero.pseudo %v3552
        %v3614 = vcvt.f32.s32.to.zero.pseudo %v3554
        %v3615 = vcvt.f32.s32.to.zero.pseudo %v3557
        %v3616 = vcvt.f32.s32.to.zero.pseudo %v3559
        %v3617 = vcvt.f32.s32.to.zero.pseudo %v3562
        %v3618 = vcvt.f32.s32.to.zero.pseudo %v3564
        %v3619 = vcvt.f32.s32.to.zero.pseudo %v3567
        %v3620 = vcvt.f32.s32.to.zero.pseudo %v3569
        %v3621 = vcvt.f32.s32.to.zero.pseudo %v3572
        %v3622 = vcvt.f32.s32.to.zero.pseudo %v3574
        %v3623 = vcvt.f32.s32.to.zero.pseudo %v3577
        %v3624 = vcvt.f32.s32.to.zero.pseudo %v3579
        %v3625 = vcvt.f32.s32.to.zero.pseudo %v3582
        %v3626 = vcvt.f32.s32.to.zero.pseudo %v3584
        %v3627 = vcvt.f32.s32.to.zero.pseudo %v3587
        %v3628 = vcvt.f32.s32.to.zero.pseudo %v3589
        %v3629 = vcvt.f32.s32.to.zero.pseudo %v3592
        %v3630 = vcvt.f32.s32.to.zero.pseudo %v3594
        %v3631 = vcvt.f32.s32.to.zero.pseudo %v3597
        %v3632 = vcvt.f32.s32.to.zero.pseudo %v3599
        %v3633 = vld [vmem:[%s316] sm:$0x1]
        %v3634 = vperm.slane %v3633, 0
        %v3635 = vadd.s32 %v3601, %v3634
        %v3636 = vadd.s32 %v3602, %v3634
        %v3637 = vadd.s32 %v3603, %v3634
        %v3638 = vadd.s32 %v3604, %v3634
        %v3639 = vadd.s32 %v3605, %v3634
        %v3640 = vadd.s32 %v3606, %v3634
        %v3641 = vadd.s32 %v3607, %v3634
        %v3642 = vadd.s32 %v3608, %v3634
        %v3643 = vadd.s32 %v3609, %v3634
        %v3644 = vadd.s32 %v3610, %v3634
        %v3645 = vadd.s32 %v3611, %v3634
        %v3646 = vadd.s32 %v3612, %v3634
        %v3647 = vadd.s32 %v3613, %v3634
        %v3648 = vadd.s32 %v3614, %v3634
        %v3649 = vadd.s32 %v3615, %v3634
        %v3650 = vadd.s32 %v3616, %v3634
        %v3651 = vadd.s32 %v3617, %v3634
        %v3652 = vadd.s32 %v3618, %v3634
        %v3653 = vadd.s32 %v3619, %v3634
        %v3654 = vadd.s32 %v3620, %v3634
        %v3655 = vadd.s32 %v3621, %v3634
        %v3656 = vadd.s32 %v3622, %v3634
        %v3657 = vadd.s32 %v3623, %v3634
        %v3658 = vadd.s32 %v3624, %v3634
        %v3659 = vadd.s32 %v3625, %v3634
        %v3660 = vadd.s32 %v3626, %v3634
        %v3661 = vadd.s32 %v3627, %v3634
        %v3662 = vadd.s32 %v3628, %v3634
        %v3663 = vadd.s32 %v3629, %v3634
        %v3664 = vadd.s32 %v3630, %v3634
        %v3665 = vadd.s32 %v3631, %v3634
        %v3666 = vadd.s32 %v3632, %v3634
        %v3667 = vcvt.s32.f32 %v3635
        %v3668 = vcvt.s32.f32 %v3636
        %v3669 = vcvt.s32.f32 %v3637
        %v3670 = vcvt.s32.f32 %v3638
        %v3671 = vcvt.s32.f32 %v3639
        %v3672 = vcvt.s32.f32 %v3640
        %v3673 = vcvt.s32.f32 %v3641
        %v3674 = vcvt.s32.f32 %v3642
        %v3675 = vcvt.s32.f32 %v3643
        %v3676 = vcvt.s32.f32 %v3644
        %v3677 = vcvt.s32.f32 %v3645
        %v3678 = vcvt.s32.f32 %v3646
        %v3679 = vcvt.s32.f32 %v3647
        %v3680 = vcvt.s32.f32 %v3648
        %v3681 = vcvt.s32.f32 %v3649
        %v3682 = vcvt.s32.f32 %v3650
        %v3683 = vcvt.s32.f32 %v3651
        %v3684 = vcvt.s32.f32 %v3652
        %v3685 = vcvt.s32.f32 %v3653
        %v3686 = vcvt.s32.f32 %v3654
        %v3687 = vcvt.s32.f32 %v3655
        %v3688 = vcvt.s32.f32 %v3656
        %v3689 = vcvt.s32.f32 %v3657
        %v3690 = vcvt.s32.f32 %v3658
        %v3691 = vcvt.s32.f32 %v3659
        %v3692 = vcvt.s32.f32 %v3660
        %v3693 = vcvt.s32.f32 %v3661
        %v3694 = vcvt.s32.f32 %v3662
        %v3695 = vcvt.s32.f32 %v3663
        %v3696 = vcvt.s32.f32 %v3664
        %v3697 = vcvt.s32.f32 %v3665
        %v3698 = vcvt.s32.f32 %v3666
        %v3699 = vld [vmem:[%s322] sm:$0x1]
        %v3701 = vperm.slane %v3699, 0
        %v3703 = vmul.f32 %v3667, %v3701
        %v3704 = vmul.f32 %v3668, %v3701
        %v3705 = vmul.f32 %v3669, %v3701
        %v3706 = vmul.f32 %v3670, %v3701
        %v3707 = vmul.f32 %v3671, %v3701
        %v3708 = vmul.f32 %v3672, %v3701
        %v3709 = vmul.f32 %v3673, %v3701
        %v3710 = vmul.f32 %v3674, %v3701
        %v3711 = vmul.f32 %v3675, %v3701
        %v3712 = vmul.f32 %v3676, %v3701
        %v3713 = vmul.f32 %v3677, %v3701
        %v3714 = vmul.f32 %v3678, %v3701
        %v3715 = vmul.f32 %v3679, %v3701
        %v3716 = vmul.f32 %v3680, %v3701
        %v3717 = vmul.f32 %v3681, %v3701
        %v3718 = vmul.f32 %v3682, %v3701
        %v3719 = vmul.f32 %v3683, %v3701
        %v3720 = vmul.f32 %v3684, %v3701
        %v3721 = vmul.f32 %v3685, %v3701
        %v3722 = vmul.f32 %v3686, %v3701
        %v3723 = vmul.f32 %v3687, %v3701
        %v3724 = vmul.f32 %v3688, %v3701
        %v3725 = vmul.f32 %v3689, %v3701
        %v3726 = vmul.f32 %v3690, %v3701
        %v3727 = vmul.f32 %v3691, %v3701
        %v3728 = vmul.f32 %v3692, %v3701
        %v3729 = vmul.f32 %v3693, %v3701
        %v3730 = vmul.f32 %v3694, %v3701
        %v3731 = vmul.f32 %v3695, %v3701
        %v3732 = vmul.f32 %v3696, %v3701
        %v3733 = vmul.f32 %v3697, %v3701
        %v3734 = vmul.f32 %v3698, %v3701
        %v3735 = vadd.f32 %v3703, -2.0
        %v3736 = vadd.f32 %v3704, -2.0
        %v3737 = vadd.f32 %v3705, -2.0
        %v3738 = vadd.f32 %v3706, -2.0
        %v3739 = vadd.f32 %v3707, -2.0
        %v3740 = vadd.f32 %v3708, -2.0
        %v3741 = vadd.f32 %v3709, -2.0
        %v3742 = vadd.f32 %v3710, -2.0
        %v3743 = vadd.f32 %v3711, -2.0
        %v3744 = vadd.f32 %v3712, -2.0
        %v3745 = vadd.f32 %v3713, -2.0
        %v3746 = vadd.f32 %v3714, -2.0
        %v3747 = vadd.f32 %v3715, -2.0
        %v3748 = vadd.f32 %v3716, -2.0
        %v3749 = vadd.f32 %v3717, -2.0
        %v3750 = vadd.f32 %v3718, -2.0
        %v3751 = vadd.f32 %v3719, -2.0
        %v3752 = vadd.f32 %v3720, -2.0
        %v3753 = vadd.f32 %v3721, -2.0
        %v3754 = vadd.f32 %v3722, -2.0
        %v3755 = vadd.f32 %v3723, -2.0
        %v3756 = vadd.f32 %v3724, -2.0
        %v3757 = vadd.f32 %v3725, -2.0
        %v3758 = vadd.f32 %v3726, -2.0
        %v3759 = vadd.f32 %v3727, -2.0
        %v3760 = vadd.f32 %v3728, -2.0
        %v3761 = vadd.f32 %v3729, -2.0
        %v3762 = vadd.f32 %v3730, -2.0
        %v3763 = vadd.f32 %v3731, -2.0
        %v3764 = vadd.f32 %v3732, -2.0
        %v3765 = vadd.f32 %v3733, -2.0
        %v3766 = vadd.f32 %v3734, -2.0
        %v3767 = vround.ne.pseudo %v3735
        %v3768 = vround.ne.pseudo %v3736
        %v3769 = vround.ne.pseudo %v3737
        %v3770 = vround.ne.pseudo %v3738
        %v3771 = vround.ne.pseudo %v3739
        %v3772 = vround.ne.pseudo %v3740
        %v3773 = vround.ne.pseudo %v3741
        %v3774 = vround.ne.pseudo %v3742
        %v3775 = vround.ne.pseudo %v3743
        %v3776 = vround.ne.pseudo %v3744
        %v3777 = vround.ne.pseudo %v3745
        %v3778 = vround.ne.pseudo %v3746
        %v3779 = vround.ne.pseudo %v3747
        %v3780 = vround.ne.pseudo %v3748
        %v3781 = vround.ne.pseudo %v3749
        %v3782 = vround.ne.pseudo %v3750
        %v3783 = vround.ne.pseudo %v3751
        %v3784 = vround.ne.pseudo %v3752
        %v3785 = vround.ne.pseudo %v3753
        %v3786 = vround.ne.pseudo %v3754
        %v3787 = vround.ne.pseudo %v3755
        %v3788 = vround.ne.pseudo %v3756
        %v3789 = vround.ne.pseudo %v3757
        %v3790 = vround.ne.pseudo %v3758
        %v3791 = vround.ne.pseudo %v3759
        %v3792 = vround.ne.pseudo %v3760
        %v3793 = vround.ne.pseudo %v3761
        %v3794 = vround.ne.pseudo %v3762
        %v3795 = vround.ne.pseudo %v3763
        %v3796 = vround.ne.pseudo %v3764
        %v3797 = vround.ne.pseudo %v3765
        %v3798 = vround.ne.pseudo %v3766
        %v3799 = vmax.f32 %v3767, -128.0
        %v3800 = vmax.f32 %v3768, -128.0
        %v3801 = vmax.f32 %v3769, -128.0
        %v3802 = vmax.f32 %v3770, -128.0
        %v3803 = vmax.f32 %v3771, -128.0
        %v3804 = vmax.f32 %v3772, -128.0
        %v3805 = vmax.f32 %v3773, -128.0
        %v3806 = vmax.f32 %v3774, -128.0
        %v3807 = vmax.f32 %v3775, -128.0
        %v3808 = vmax.f32 %v3776, -128.0
        %v3809 = vmax.f32 %v3777, -128.0
        %v3810 = vmax.f32 %v3778, -128.0
        %v3811 = vmax.f32 %v3779, -128.0
        %v3812 = vmax.f32 %v3780, -128.0
        %v3813 = vmax.f32 %v3781, -128.0
        %v3814 = vmax.f32 %v3782, -128.0
        %v3815 = vmax.f32 %v3783, -128.0
        %v3816 = vmax.f32 %v3784, -128.0
        %v3817 = vmax.f32 %v3785, -128.0
        %v3818 = vmax.f32 %v3786, -128.0
        %v3819 = vmax.f32 %v3787, -128.0
        %v3820 = vmax.f32 %v3788, -128.0
        %v3821 = vmax.f32 %v3789, -128.0
        %v3822 = vmax.f32 %v3790, -128.0
        %v3823 = vmax.f32 %v3791, -128.0
        %v3824 = vmax.f32 %v3792, -128.0
        %v3825 = vmax.f32 %v3793, -128.0
        %v3826 = vmax.f32 %v3794, -128.0
        %v3827 = vmax.f32 %v3795, -128.0
        %v3828 = vmax.f32 %v3796, -128.0
        %v3829 = vmax.f32 %v3797, -128.0
        %v3830 = vmax.f32 %v3798, -128.0
        %v3831 = vmin.f32 %v3799, 127.0
        %v3832 = vmin.f32 %v3800, 127.0
        %v3833 = vmin.f32 %v3801, 127.0
        %v3834 = vmin.f32 %v3802, 127.0
        %v3835 = vmin.f32 %v3803, 127.0
        %v3836 = vmin.f32 %v3804, 127.0
        %v3837 = vmin.f32 %v3805, 127.0
        %v3838 = vmin.f32 %v3806, 127.0
        %v3839 = vmin.f32 %v3807, 127.0
        %v3840 = vmin.f32 %v3808, 127.0
        %v3841 = vmin.f32 %v3809, 127.0
        %v3842 = vmin.f32 %v3810, 127.0
        %v3843 = vmin.f32 %v3811, 127.0
        %v3844 = vmin.f32 %v3812, 127.0
        %v3845 = vmin.f32 %v3813, 127.0
        %v3846 = vmin.f32 %v3814, 127.0
        %v3847 = vmin.f32 %v3815, 127.0
        %v3848 = vmin.f32 %v3816, 127.0
        %v3849 = vmin.f32 %v3817, 127.0
        %v3850 = vmin.f32 %v3818, 127.0
        %v3851 = vmin.f32 %v3819, 127.0
        %v3852 = vmin.f32 %v3820, 127.0
        %v3853 = vmin.f32 %v3821, 127.0
        %v3854 = vmin.f32 %v3822, 127.0
        %v3855 = vmin.f32 %v3823, 127.0
        %v3856 = vmin.f32 %v3824, 127.0
        %v3857 = vmin.f32 %v3825, 127.0
        %v3858 = vmin.f32 %v3826, 127.0
        %v3859 = vmin.f32 %v3827, 127.0
        %v3860 = vmin.f32 %v3828, 127.0
        %v3861 = vmin.f32 %v3829, 127.0
        %v3862 = vmin.f32 %v3830, 127.0
        %v3863 = vcvt.f32.s32.to.zero.pseudo %v3831
        %v3864 = vcvt.f32.s32.to.zero.pseudo %v3832
        %v3865 = vcvt.f32.s32.to.zero.pseudo %v3833
        %v3866 = vcvt.f32.s32.to.zero.pseudo %v3834
        %v3867 = vcvt.f32.s32.to.zero.pseudo %v3835
        %v3868 = vcvt.f32.s32.to.zero.pseudo %v3836
        %v3869 = vcvt.f32.s32.to.zero.pseudo %v3837
        %v3870 = vcvt.f32.s32.to.zero.pseudo %v3838
        %v3871 = vcvt.f32.s32.to.zero.pseudo %v3839
        %v3872 = vcvt.f32.s32.to.zero.pseudo %v3840
        %v3873 = vcvt.f32.s32.to.zero.pseudo %v3841
        %v3874 = vcvt.f32.s32.to.zero.pseudo %v3842
        %v3875 = vcvt.f32.s32.to.zero.pseudo %v3843
        %v3876 = vcvt.f32.s32.to.zero.pseudo %v3844
        %v3877 = vcvt.f32.s32.to.zero.pseudo %v3845
        %v3878 = vcvt.f32.s32.to.zero.pseudo %v3846
        %v3879 = vcvt.f32.s32.to.zero.pseudo %v3847
        %v3880 = vcvt.f32.s32.to.zero.pseudo %v3848
        %v3881 = vcvt.f32.s32.to.zero.pseudo %v3849
        %v3882 = vcvt.f32.s32.to.zero.pseudo %v3850
        %v3883 = vcvt.f32.s32.to.zero.pseudo %v3851
        %v3884 = vcvt.f32.s32.to.zero.pseudo %v3852
        %v3885 = vcvt.f32.s32.to.zero.pseudo %v3853
        %v3886 = vcvt.f32.s32.to.zero.pseudo %v3854
        %v3887 = vcvt.f32.s32.to.zero.pseudo %v3855
        %v3888 = vcvt.f32.s32.to.zero.pseudo %v3856
        %v3889 = vcvt.f32.s32.to.zero.pseudo %v3857
        %v3890 = vcvt.f32.s32.to.zero.pseudo %v3858
        %v3891 = vcvt.f32.s32.to.zero.pseudo %v3859
        %v3892 = vcvt.f32.s32.to.zero.pseudo %v3860
        %v3893 = vcvt.f32.s32.to.zero.pseudo %v3861
        %v3894 = vcvt.f32.s32.to.zero.pseudo %v3862
        %v3895 = vpack.c.b16 %v3863, %v3863
        %v3896 = vpack.c.b8 %v3895, %v3895
        %v3897 = vpack.c.b16 %v3864, %v3864
        %v3898 = vpack.c.b8 %v3897, %v3897
        %v3899 = vpack.c.b16 %v3865, %v3865
        %v3900 = vpack.c.b8 %v3899, %v3899
        %v3901 = vpack.c.b16 %v3866, %v3866
        %v3902 = vpack.c.b8 %v3901, %v3901
        %v3903 = vpack.c.b16 %v3867, %v3867
        %v3904 = vpack.c.b8 %v3903, %v3903
        %v3905 = vpack.c.b16 %v3868, %v3868
        %v3906 = vpack.c.b8 %v3905, %v3905
        %v3907 = vpack.c.b16 %v3869, %v3869
        %v3908 = vpack.c.b8 %v3907, %v3907
        %v3909 = vpack.c.b16 %v3870, %v3870
        %v3910 = vpack.c.b8 %v3909, %v3909
        %v3911 = vpack.c.b16 %v3871, %v3871
        %v3912 = vpack.c.b8 %v3911, %v3911
        %v3913 = vpack.c.b16 %v3872, %v3872
        %v3914 = vpack.c.b8 %v3913, %v3913
        %v3915 = vpack.c.b16 %v3873, %v3873
        %v3916 = vpack.c.b8 %v3915, %v3915
        %v3917 = vpack.c.b16 %v3874, %v3874
        %v3918 = vpack.c.b8 %v3917, %v3917
        %v3919 = vpack.c.b16 %v3875, %v3875
        %v3920 = vpack.c.b8 %v3919, %v3919
        %v3921 = vpack.c.b16 %v3876, %v3876
        %v3922 = vpack.c.b8 %v3921, %v3921
        %v3923 = vpack.c.b16 %v3877, %v3877
        %v3924 = vpack.c.b8 %v3923, %v3923
        %v3925 = vpack.c.b16 %v3878, %v3878
        %v3926 = vpack.c.b8 %v3925, %v3925
        %v3927 = vpack.c.b16 %v3879, %v3879
        %v3928 = vpack.c.b8 %v3927, %v3927
        %v3929 = vpack.c.b16 %v3880, %v3880
        %v3930 = vpack.c.b8 %v3929, %v3929
        %v3931 = vpack.c.b16 %v3881, %v3881
        %v3932 = vpack.c.b8 %v3931, %v3931
        %v3933 = vpack.c.b16 %v3882, %v3882
        %v3934 = vpack.c.b8 %v3933, %v3933
        %v3935 = vpack.c.b16 %v3883, %v3883
        %v3936 = vpack.c.b8 %v3935, %v3935
        %v3937 = vpack.c.b16 %v3884, %v3884
        %v3938 = vpack.c.b8 %v3937, %v3937
        %v3939 = vpack.c.b16 %v3885, %v3885
        %v3940 = vpack.c.b8 %v3939, %v3939
        %v3941 = vpack.c.b16 %v3886, %v3886
        %v3942 = vpack.c.b8 %v3941, %v3941
        %v3943 = vpack.c.b16 %v3887, %v3887
        %v3944 = vpack.c.b8 %v3943, %v3943
        %v3945 = vpack.c.b16 %v3888, %v3888
        %v3946 = vpack.c.b8 %v3945, %v3945
        %v3947 = vpack.c.b16 %v3889, %v3889
        %v3948 = vpack.c.b8 %v3947, %v3947
        %v3949 = vpack.c.b16 %v3890, %v3890
        %v3950 = vpack.c.b8 %v3949, %v3949
        %v3951 = vpack.c.b16 %v3891, %v3891
        %v3952 = vpack.c.b8 %v3951, %v3951
        %v3953 = vpack.c.b16 %v3892, %v3892
        %v3954 = vpack.c.b8 %v3953, %v3953
        %v3955 = vpack.c.b16 %v3893, %v3893
        %v3956 = vpack.c.b8 %v3955, %v3955
        %v3957 = vpack.c.b16 %v3894, %v3894
        %v3958 = vpack.c.b8 %v3957, %v3957
        %3959 = vst [vmem:[%s293] sm:$0x3] %v3896
        %3960 = vst [vmem:[%s293 + $0x2] sm:$0x3] %v3898
        %3961 = vst [vmem:[%s293 + $0x4] sm:$0x3] %v3900
        %3962 = vst [vmem:[%s293 + $0x6] sm:$0x3] %v3902
        %3963 = vst [vmem:[%s293 + $0x8] sm:$0x3] %v3904
        %3964 = vst [vmem:[%s293 + $0xa] sm:$0x3] %v3906
        %3965 = vst [vmem:[%s293 + $0xc] sm:$0x3] %v3908
        %3966 = vst [vmem:[%s293 + $0xe] sm:$0x3] %v3910
        %3967 = vst [vmem:[%s293 + $0x10] sm:$0x3] %v3912
        %3968 = vst [vmem:[%s293 + $0x12] sm:$0x3] %v3914
        %3969 = vst [vmem:[%s293 + $0x14] sm:$0x3] %v3916
        %3970 = vst [vmem:[%s293 + $0x16] sm:$0x3] %v3918
        %3971 = vst [vmem:[%s293 + $0x18] sm:$0x3] %v3920
        %3972 = vst [vmem:[%s293 + $0x1a] sm:$0x3] %v3922
        %3973 = vst [vmem:[%s293 + $0x1c] sm:$0x3] %v3924
        %3974 = vst [vmem:[%s293 + $0x1e] sm:$0x3] %v3926
        %3975 = vst [vmem:[%s293 + $0x20] sm:$0x3] %v3928
        %3976 = vst [vmem:[%s293 + $0x22] sm:$0x3] %v3930
        %3977 = vst [vmem:[%s293 + $0x24] sm:$0x3] %v3932
        %3978 = vst [vmem:[%s293 + $0x26] sm:$0x3] %v3934
        %3979 = vst [vmem:[%s293 + $0x28] sm:$0x3] %v3936
        %3980 = vst [vmem:[%s293 + $0x2a] sm:$0x3] %v3938
        %3981 = vst [vmem:[%s293 + $0x2c] sm:$0x3] %v3940
        %3982 = vst [vmem:[%s293 + $0x2e] sm:$0x3] %v3942
        %3983 = vst [vmem:[%s293 + $0x30] sm:$0x3] %v3944
        %3984 = vst [vmem:[%s293 + $0x32] sm:$0x3] %v3946
        %3985 = vst [vmem:[%s293 + $0x34] sm:$0x3] %v3948
        %3986 = vst [vmem:[%s293 + $0x36] sm:$0x3] %v3950
        %3987 = vst [vmem:[%s293 + $0x38] sm:$0x3] %v3952
        %3988 = vst [vmem:[%s293 + $0x3a] sm:$0x3] %v3954
        %3989 = vst [vmem:[%s293 + $0x3c] sm:$0x3] %v3956
        %3990 = vst [vmem:[%s293 + $0x3e] sm:$0x3] %v3958
        %s3991 = sand.u32 %s170, 1
        %s3992 = scalar_lea.sflag [#allocation4], %s3991
        %s3993 = sand.u32 %s170, 1
        %s3994 = smul.addr %s3993, 64
        %s3995 = scalar_lea.vmem [#allocation3], %s3994
        // Predicated region
        $region37: #{tpu_custom_call.1} parent=35 // pred_check
          %p3996 = pneg %p180
        $region38: #{tpu_custom_call.1} parent=35 // pred_check_branch
          %3998 = sbr.rel (%p3996) target = $region40
        $region39: #{tpu_custom_call.1} parent=35 // pred_region
          %s3999 = smul.u32 16, %s27
          %4001 = vsyncadd %s3992, 0
          %s4002 = smul.addr %s3999, 2
          %s4003 = sadd.s32 %s25, %s4002
          %s4004 = smul.addr %s24, 32
          %s4005 = sadd.s32 %s4003, %s4004
          %s4006 = smul.addr %s26, 32
          %s4007 = sadd.s32 %s4005, %s4006
          %s4008 = smul.addr %s4007, 2
          %s4009 = scalar_lea.hbm %s4, %s4008
          %s4010 = sshll.u32 %s3995, 4
          %s4011 = int_to_ptr.vmem [resolvable:$true] %s4010
          %s4012 = sshll.u32 %s4009, 4
          %s4013 = int_to_ptr.hbm [resolvable:$true] %s4012
          %4018 = dma.vmem_to_hbm [thread:$0]  %s4011, 1024, %s4013, %s3992, 32, 32, 2
        $region40: #{tpu_custom_call.1} parent=35 // pred_fallthru
          _
      $region36: #{tpu_custom_call.1} parent=5 // pred_fallthru
        _
      %p4019 = scmp.le.s32.totalorder 2, %s13
      // Predicated region
      $region41: #{tpu_custom_call.1} parent=5 // pred_check
        %p4020 = pneg %p4019
      $region42: #{tpu_custom_call.1} parent=5 // pred_check_branch
        %4022 = sbr.rel (%p4020) target = $region44
      $region43: #{tpu_custom_call.1} parent=5 // pred_region
        %s4023 = ssub.s32 %s13, 2
        // Predicated region
        $region45: #{tpu_custom_call.1} parent=43 // pred_check
          %p4024 = pneg %p186
        $region46: #{tpu_custom_call.1} parent=43 // pred_check_branch
          %4026 = sbr.rel (%p4024) target = $region48
        $region47: #{tpu_custom_call.1} parent=43 // pred_region
          %s4027 = sand.u32 %s171, 1
          %s4028 = scalar_lea.sflag [#allocation4], %s4027
          %s4029 = sand.u32 %s171, 1
          %s4030 = smul.addr %s4029, 64
          %s4031 = scalar_lea.vmem [#allocation3], %s4030
          %4033 = dma.done %s4028, 1024
        $region48: #{tpu_custom_call.1} parent=43 // pred_fallthru
          _
      $region44: #{tpu_custom_call.1} parent=5 // pred_fallthru
        _
    $region6: #{tpu_custom_call.1} parent=1 // loop_footer
      %s17 = sadd.s32 1, %s13
    $region7: #{tpu_custom_call.1} parent=1 // loop_footer_branch
      %12 = sbr.rel target = $region3
    $region8: #{tpu_custom_call.1} parent=1 // loop_exit
      _
    %4034 = vsyncpa [#allocation4], 1
    %s4035 = scalar_lea.sflag [#allocation4], 1
    %4036 = vsyncpa %s4035, 1

</llo_original>
